<compile_context>
chip_gen: v5e
topology: v5e:2x2
jax: 0.10.0
libtpu: 0.0.40
codegen_flags: <defaults>
</compile_context>

<pallas_src>
import functools
import math

import jax
import jax.numpy as jnp
from jax.experimental import pallas as pl
from jax.experimental.pallas import tpu as pltpu

# ----------------------- small RoBERTa config ------------------------------
VOCAB = 128
HIDDEN = 32
NUM_LAYERS = 2
NUM_HEADS = 4
HEAD_DIM = HIDDEN // NUM_HEADS
INTERMEDIATE = 64
NUM_LABELS = 2
PAD_ID = 1            # RoBERTa padding_idx
MAX_POS = 16
LN_EPS = 1e-5
NEG_INF = float(jnp.finfo(jnp.float32).min)
ATT_SCALE = 1.0 / math.sqrt(HEAD_DIM)


def _full_spec(shape):
    nd = len(shape)
    return pl.BlockSpec(shape, lambda i, _nd=nd: (0,) * _nd)


# --------------------------- in-kernel helpers ------------------------------
def _layernorm(x, g, b):
    mean = jnp.mean(x, axis=-1, keepdims=True)
    var = jnp.mean(jnp.square(x - mean), axis=-1, keepdims=True)
    return (x - mean) * jax.lax.rsqrt(var + LN_EPS) * g + b


def _gelu(x):          # exact (erf) GELU, matches HF 'gelu'
    return 0.5 * x * (1.0 + jax.lax.erf(x * (1.0 / math.sqrt(2.0))))


def _dot(a, b):
    return jnp.dot(a, b, preferred_element_type=jnp.float32)


# ----------------------------- fused kernel ---------------------------------
def _fused_forward_kernel(
    h_ref, mask_ref, onehot_ref,
    emb_g_ref, emb_b_ref,
    qkv_w_ref, qkv_b_ref, ao_w_ref, ao_b_ref,
    aln_g_ref, aln_b_ref,
    i_w_ref, i_b_ref, o_w_ref, o_b_ref,
    oln_g_ref, oln_b_ref,
    cd_w_ref, cd_b_ref, co_w_ref, co_b_ref,
    logits_ref, loss_ref,
    ctx_scr, cls_scr,
    *, batch, seq):
    # Embedding LayerNorm (folded in; hidden stays in VMEM from here on)
    h = _layernorm(h_ref[...], emb_g_ref[...], emb_b_ref[...])     # (B*S, H)

    # Additive attention bias derived in-kernel from the raw (B, S) mask
    neg_bias = (1.0 - mask_ref[...]) * NEG_INF                      # (B, S)

    for l in range(NUM_LAYERS):
        # ---- fused QKV projection: one (B*S, H) x (H, 3H) MXU pass ----
        qkv = _dot(h, qkv_w_ref[l]) + qkv_b_ref[l]                  # (B*S, 3H)
        q = qkv[:, 0 * HIDDEN:1 * HIDDEN]
        k = qkv[:, 1 * HIDDEN:2 * HIDDEN]
        v = qkv[:, 2 * HIDDEN:3 * HIDDEN]

        # ---- attention, fully in VMEM/vregs (statically unrolled) ----
        for b in range(batch):
            r0, r1 = b * seq, (b + 1) * seq
            bias_b = neg_bias[b:b + 1, :]                           # (1, S)
            for hd in range(NUM_HEADS):
                c0, c1 = hd * HEAD_DIM, (hd + 1) * HEAD_DIM
                q_bh = q[r0:r1, c0:c1]
                k_bh = k[r0:r1, c0:c1]
                v_bh = v[r0:r1, c0:c1]
                s = jax.lax.dot_general(
                    q_bh, k_bh, (((1,), (1,)), ((), ())),
                    preferred_element_type=jnp.float32) * ATT_SCALE + bias_b
                m = jnp.max(s, axis=-1, keepdims=True)
                p = jnp.exp(s - m)
                p = p * pl.reciprocal(jnp.sum(p, axis=-1, keepdims=True),
                                      approx=True)
                ctx_scr[r0:r1, c0:c1] = _dot(p, v_bh)

        ctx = ctx_scr[...]                                          # (B*S, H)

        # ---- attention output projection + residual + LN (fused) ----
        attn_out = _dot(ctx, ao_w_ref[l]) + ao_b_ref[l]
        h = _layernorm(attn_out + h, aln_g_ref[l], aln_b_ref[l])

        # ---- GELU FFN + residual + LN (fused) ----
        inter = _gelu(_dot(h, i_w_ref[l]) + i_b_ref[l])
        ffn_out = _dot(inter, o_w_ref[l]) + o_b_ref[l]
        h = _layernorm(ffn_out + h, oln_g_ref[l], oln_b_ref[l])

    # ---- classification head on the <s> (first) token of each sequence ----
    for b in range(batch):
        cls_scr[b:b + 1, :] = h[b * seq:b * seq + 1, :]
    cls = jnp.tanh(_dot(cls_scr[...], cd_w_ref[...]) + cd_b_ref[...])
    logits = _dot(cls, co_w_ref[...]) + co_b_ref[...]               # (B, C)
    logits_ref[...] = logits.astype(logits_ref.dtype)

    # ---- cross-entropy (mean over batch) ----
    mx = jnp.max(logits, axis=-1, keepdims=True)
    lse = jnp.log(jnp.sum(jnp.exp(logits - mx), axis=-1, keepdims=True)) + mx
    nll = lse - jnp.sum(onehot_ref[...] * logits, axis=-1, keepdims=True)
    loss_ref[...] = jnp.mean(nll, axis=0, keepdims=True)


def fused_forward(h2d, mask_f32, onehot, p):
    bs, _ = h2d.shape
    batch = mask_f32.shape[0]
    seq = bs // batch
    inputs = [
        h2d, mask_f32, onehot,
        p["emb_ln_g"], p["emb_ln_b"],
        p["qkv_w"], p["qkv_b"], p["ao_w"], p["ao_b"],
        p["attn_ln_g"], p["attn_ln_b"],
        p["i_w"], p["i_b"], p["o_w"], p["o_b"],
        p["out_ln_g"], p["out_ln_b"],
        p["cls_dense_w"], p["cls_dense_b"], p["cls_out_w"], p["cls_out_b"],
    ]
    logits, loss = pl.pallas_call(
        functools.partial(_fused_forward_kernel, batch=batch, seq=seq),
        grid=(1,),
        in_specs=[_full_spec(x.shape) for x in inputs],
        out_specs=[_full_spec((batch, NUM_LABELS)), _full_spec((1, 1))],
        out_shape=(jax.ShapeDtypeStruct((batch, NUM_LABELS), jnp.float32),
                   jax.ShapeDtypeStruct((1, 1), jnp.float32)),
        scratch_shapes=[pltpu.VMEM((bs, HIDDEN), jnp.float32),     # attn ctx
                        pltpu.VMEM((batch, HIDDEN), jnp.float32)], # cls rows
        compiler_params=pltpu.CompilerParams(
            dimension_semantics=("arbitrary",),   # single step, one TC
            vmem_limit_bytes=4 * 1024 * 1024),    # tiny working set
    )(*inputs)
    return logits, loss


# ------------------------------ parameters ---------------------------------
def init_params(key):
    def norm(k, shape, std=0.02):
        return std * jax.random.normal(k, shape, dtype=jnp.float32)

    n_keys = 3 + 6 * NUM_LAYERS + 2
    keys = iter(jax.random.split(key, n_keys))
    zeros = lambda n: jnp.zeros((n,), jnp.float32)
    ones = lambda n: jnp.ones((n,), jnp.float32)

    p = {}
    word = norm(next(keys), (VOCAB, HIDDEN)).at[PAD_ID].set(0.0)
    pos = norm(next(keys), (MAX_POS, HIDDEN)).at[PAD_ID].set(0.0)
    p["word_emb"], p["pos_emb"] = word, pos
    p["type_emb"] = norm(next(keys), (1, HIDDEN))
    p["emb_ln_g"], p["emb_ln_b"] = ones(HIDDEN), zeros(HIDDEN)

    layers = []
    for _ in range(NUM_LAYERS):
        layers.append({
            "q_w": norm(next(keys), (HIDDEN, HIDDEN)), "q_b": zeros(HIDDEN),
            "k_w": norm(next(keys), (HIDDEN, HIDDEN)), "k_b": zeros(HIDDEN),
            "v_w": norm(next(keys), (HIDDEN, HIDDEN)), "v_b": zeros(HIDDEN),
            "ao_w": norm(next(keys), (HIDDEN, HIDDEN)), "ao_b": zeros(HIDDEN),
            "attn_ln_g": ones(HIDDEN), "attn_ln_b": zeros(HIDDEN),
            "i_w": norm(next(keys), (HIDDEN, INTERMEDIATE)), "i_b": zeros(INTERMEDIATE),
            "o_w": norm(next(keys), (INTERMEDIATE, HIDDEN)), "o_b": zeros(HIDDEN),
            "out_ln_g": ones(HIDDEN), "out_ln_b": zeros(HIDDEN),
        })
    p["layers"] = layers

    p["cls_dense_w"] = norm(next(keys), (HIDDEN, HIDDEN))
    p["cls_dense_b"] = zeros(HIDDEN)
    p["cls_out_w"] = norm(next(keys), (HIDDEN, NUM_LABELS))
    p["cls_out_b"] = zeros(NUM_LABELS)
    return p


def pack_params(p):
    """Stack per-layer weights into (NUM_LAYERS, ...) arrays; fuse Q/K/V."""
    L = p["layers"]
    stack_w = lambda name: jnp.stack([lyr[name] for lyr in L], axis=0)
    stack_v = lambda name: jnp.stack([lyr[name].reshape(1, -1) for lyr in L], axis=0)
    return {
        "word_emb": p["word_emb"], "pos_emb": p["pos_emb"], "type_emb": p["type_emb"],
        "emb_ln_g": p["emb_ln_g"].reshape(1, HIDDEN),
        "emb_ln_b": p["emb_ln_b"].reshape(1, HIDDEN),
        "qkv_w": jnp.stack(
            [jnp.concatenate([l["q_w"], l["k_w"], l["v_w"]], axis=1) for l in L], 0),
        "qkv_b": jnp.stack(
            [jnp.concatenate([l["q_b"], l["k_b"], l["v_b"]], axis=0).reshape(1, -1)
             for l in L], 0),
        "ao_w": stack_w("ao_w"), "ao_b": stack_v("ao_b"),
        "attn_ln_g": stack_v("attn_ln_g"), "attn_ln_b": stack_v("attn_ln_b"),
        "i_w": stack_w("i_w"), "i_b": stack_v("i_b"),
        "o_w": stack_w("o_w"), "o_b": stack_v("o_b"),
        "out_ln_g": stack_v("out_ln_g"), "out_ln_b": stack_v("out_ln_b"),
        "cls_dense_w": p["cls_dense_w"],
        "cls_dense_b": p["cls_dense_b"].reshape(1, -1),
        "cls_out_w": p["cls_out_w"],
        "cls_out_b": p["cls_out_b"].reshape(1, -1),
    }


# ------------------------------- forward -----------------------------------
def roberta_forward(params, input_ids, attention_mask, labels):
    B, S = input_ids.shape

    # RoBERTa position ids: cumsum over non-pad tokens, offset by padding_idx
    not_pad = (input_ids != PAD_ID).astype(jnp.int32)
    position_ids = jnp.cumsum(not_pad, axis=1) * not_pad + PAD_ID

    # TODO(synk): embedding row-gathers / cumsum / one-hot are done in XLA; the
    # rest of the forward (LN, both layers, head, loss) is one fused Pallas call.
    h = (params["word_emb"][input_ids]
         + params["pos_emb"][position_ids]
         + params["type_emb"][jnp.zeros_like(input_ids)])
    h = h.reshape(B * S, HIDDEN).astype(jnp.float32)

    mask_f32 = attention_mask.astype(jnp.float32)
    onehot = jax.nn.one_hot(labels, NUM_LABELS, dtype=jnp.float32)

    logits, loss = fused_forward(h, mask_f32, onehot, params)
    # Mymodel returns the HF SequenceClassifierOutput; we return (loss, logits).
    # (self.softmax in Mymodel.__init__ is never used in forward; dropout = eval identity.)
    return loss[0, 0], logits


# -------------------------------- driver ------------------------------------
if __name__ == "__main__":
    key = jax.random.PRNGKey(0)
    pkey, ikey, lkey = jax.random.split(key, 3)
    params = pack_params(init_params(pkey))

    B, S = 2, 8
    toks = jax.random.randint(ikey, (B, S), 3, VOCAB, dtype=jnp.int32)
    input_ids = toks.at[:, 0].set(0)                 # <s>
    input_ids = input_ids.at[0, S - 1].set(2)        # </s>
    input_ids = input_ids.at[1, S - 2].set(2)        # </s>
    input_ids = input_ids.at[1, S - 1].set(PAD_ID)   # one padded position
    attention_mask = (input_ids != PAD_ID).astype(jnp.int32)
    labels = jax.random.randint(lkey, (B,), 0, NUM_LABELS, dtype=jnp.int32)

    loss, logits = jax.jit(roberta_forward)(params, input_ids, attention_mask, labels)
    jax.block_until_ready((loss, logits))
    assert logits.shape == (B, NUM_LABELS) and loss.shape == ()
    print("KERNEL_OK")
</pallas_src>

<mosaic_0001>
module attributes {stable_mosaic.version = 11 : i64} {
  func.func @_fused_forward_kernel(%arg0: i32, %arg1: memref<16x32xf32, #tpu.memory_space<vmem>>, %arg2: memref<2x8xf32, #tpu.memory_space<vmem>>, %arg3: memref<2x2xf32, #tpu.memory_space<vmem>>, %arg4: memref<1x32xf32, #tpu.memory_space<vmem>>, %arg5: memref<1x32xf32, #tpu.memory_space<vmem>>, %arg6: memref<2x32x96xf32, #tpu.memory_space<vmem>>, %arg7: memref<2x1x96xf32, #tpu.memory_space<vmem>>, %arg8: memref<2x32x32xf32, #tpu.memory_space<vmem>>, %arg9: memref<2x1x32xf32, #tpu.memory_space<vmem>>, %arg10: memref<2x1x32xf32, #tpu.memory_space<vmem>>, %arg11: memref<2x1x32xf32, #tpu.memory_space<vmem>>, %arg12: memref<2x32x64xf32, #tpu.memory_space<vmem>>, %arg13: memref<2x1x64xf32, #tpu.memory_space<vmem>>, %arg14: memref<2x64x32xf32, #tpu.memory_space<vmem>>, %arg15: memref<2x1x32xf32, #tpu.memory_space<vmem>>, %arg16: memref<2x1x32xf32, #tpu.memory_space<vmem>>, %arg17: memref<2x1x32xf32, #tpu.memory_space<vmem>>, %arg18: memref<32x32xf32, #tpu.memory_space<vmem>>, %arg19: memref<1x32xf32, #tpu.memory_space<vmem>>, %arg20: memref<32x2xf32, #tpu.memory_space<vmem>>, %arg21: memref<1x2xf32, #tpu.memory_space<vmem>>, %arg22: memref<2x2xf32, #tpu.memory_space<vmem>>, %arg23: memref<1x1xf32, #tpu.memory_space<vmem>>, %arg24: memref<16x32xf32, #tpu.memory_space<vmem>>, %arg25: memref<2x32xf32, #tpu.memory_space<vmem>>) attributes {dimension_semantics = [#tpu.dimension_semantics<arbitrary>], iteration_bounds = array<i64: 1>, scalar_prefetch = 0 : i64, scratch_operands = 2 : i64, tpu.core_type = #tpu.core_type<tc>, window_params = [{pipeline_mode = #tpu.pipeline_mode<synchronous>, transform_indices = @transform_0, window_bounds = array<i64: 16, 32>}, {pipeline_mode = #tpu.pipeline_mode<synchronous>, transform_indices = @transform_1, window_bounds = array<i64: 2, 8>}, {pipeline_mode = #tpu.pipeline_mode<synchronous>, transform_indices = @transform_2, window_bounds = array<i64: 2, 2>}, {pipeline_mode = #tpu.pipeline_mode<synchronous>, transform_indices = @transform_3, window_bounds = array<i64: 1, 32>}, {pipeline_mode = #tpu.pipeline_mode<synchronous>, transform_indices = @transform_4, window_bounds = array<i64: 1, 32>}, {pipeline_mode = #tpu.pipeline_mode<synchronous>, transform_indices = @transform_5, window_bounds = array<i64: 2, 32, 96>}, {pipeline_mode = #tpu.pipeline_mode<synchronous>, transform_indices = @transform_6, window_bounds = array<i64: 2, 1, 96>}, {pipeline_mode = #tpu.pipeline_mode<synchronous>, transform_indices = @transform_7, window_bounds = array<i64: 2, 32, 32>}, {pipeline_mode = #tpu.pipeline_mode<synchronous>, transform_indices = @transform_8, window_bounds = array<i64: 2, 1, 32>}, {pipeline_mode = #tpu.pipeline_mode<synchronous>, transform_indices = @transform_9, window_bounds = array<i64: 2, 1, 32>}, {pipeline_mode = #tpu.pipeline_mode<synchronous>, transform_indices = @transform_10, window_bounds = array<i64: 2, 1, 32>}, {pipeline_mode = #tpu.pipeline_mode<synchronous>, transform_indices = @transform_11, window_bounds = array<i64: 2, 32, 64>}, {pipeline_mode = #tpu.pipeline_mode<synchronous>, transform_indices = @transform_12, window_bounds = array<i64: 2, 1, 64>}, {pipeline_mode = #tpu.pipeline_mode<synchronous>, transform_indices = @transform_13, window_bounds = array<i64: 2, 64, 32>}, {pipeline_mode = #tpu.pipeline_mode<synchronous>, transform_indices = @transform_14, window_bounds = array<i64: 2, 1, 32>}, {pipeline_mode = #tpu.pipeline_mode<synchronous>, transform_indices = @transform_15, window_bounds = array<i64: 2, 1, 32>}, {pipeline_mode = #tpu.pipeline_mode<synchronous>, transform_indices = @transform_16, window_bounds = array<i64: 2, 1, 32>}, {pipeline_mode = #tpu.pipeline_mode<synchronous>, transform_indices = @transform_17, window_bounds = array<i64: 32, 32>}, {pipeline_mode = #tpu.pipeline_mode<synchronous>, transform_indices = @transform_18, window_bounds = array<i64: 1, 32>}, {pipeline_mode = #tpu.pipeline_mode<synchronous>, transform_indices = @transform_19, window_bounds = array<i64: 32, 2>}, {pipeline_mode = #tpu.pipeline_mode<synchronous>, transform_indices = @transform_20, window_bounds = array<i64: 1, 2>}, {pipeline_mode = #tpu.pipeline_mode<synchronous>, transform_indices = @transform_21, window_bounds = array<i64: 2, 2>}, {pipeline_mode = #tpu.pipeline_mode<synchronous>, transform_indices = @transform_22, window_bounds = array<i64: 1, 1>}]} {
    %c0 = arith.constant 0 : index
    %c0_0 = arith.constant 0 : index
    %0 = vector.load %arg1[%c0, %c0_0] : memref<16x32xf32, #tpu.memory_space<vmem>>, vector<16x32xf32>
    %c0_1 = arith.constant 0 : index
    %c0_2 = arith.constant 0 : index
    %1 = vector.load %arg4[%c0_1, %c0_2] : memref<1x32xf32, #tpu.memory_space<vmem>>, vector<1x32xf32>
    %c0_3 = arith.constant 0 : index
    %c0_4 = arith.constant 0 : index
    %2 = vector.load %arg5[%c0_3, %c0_4] : memref<1x32xf32, #tpu.memory_space<vmem>>, vector<1x32xf32>
    %cst = arith.constant dense<0.000000e+00> : vector<16xf32>
    %3 = vector.multi_reduction <add>, %0, %cst [1] : vector<16x32xf32> to vector<16xf32>
    %4 = vector.shape_cast %3 : vector<16xf32> to vector<16x1xf32>
    %cst_5 = arith.constant 3.200000e+01 : f32
    %5 = vector.broadcast %cst_5 : f32 to vector<16x1xf32>
    %6 = arith.divf %4, %5 : vector<16x1xf32>
    %7 = vector.broadcast %6 : vector<16x1xf32> to vector<16x32xf32>
    %8 = arith.subf %0, %7 : vector<16x32xf32>
    %9 = arith.mulf %8, %8 : vector<16x32xf32>
    %cst_6 = arith.constant dense<0.000000e+00> : vector<16xf32>
    %10 = vector.multi_reduction <add>, %9, %cst_6 [1] : vector<16x32xf32> to vector<16xf32>
    %11 = vector.shape_cast %10 : vector<16xf32> to vector<16x1xf32>
    %cst_7 = arith.constant 3.200000e+01 : f32
    %12 = vector.broadcast %cst_7 : f32 to vector<16x1xf32>
    %13 = arith.divf %11, %12 : vector<16x1xf32>
    %14 = vector.broadcast %6 : vector<16x1xf32> to vector<16x32xf32>
    %15 = arith.subf %0, %14 : vector<16x32xf32>
    %cst_8 = arith.constant 9.99999974E-6 : f32
    %16 = vector.broadcast %cst_8 : f32 to vector<16x1xf32>
    %17 = arith.addf %13, %16 : vector<16x1xf32>
    %18 = math.rsqrt %17 : vector<16x1xf32>
    %19 = vector.broadcast %18 : vector<16x1xf32> to vector<16x32xf32>
    %20 = arith.mulf %15, %19 : vector<16x32xf32>
    %21 = vector.broadcast %1 : vector<1x32xf32> to vector<16x32xf32>
    %22 = arith.mulf %20, %21 : vector<16x32xf32>
    %23 = vector.broadcast %2 : vector<1x32xf32> to vector<16x32xf32>
    %24 = arith.addf %22, %23 : vector<16x32xf32>
    %c0_9 = arith.constant 0 : index
    %c0_10 = arith.constant 0 : index
    %25 = vector.load %arg2[%c0_9, %c0_10] : memref<2x8xf32, #tpu.memory_space<vmem>>, vector<2x8xf32>
    %cst_11 = arith.constant 1.000000e+00 : f32
    %26 = vector.broadcast %cst_11 : f32 to vector<2x8xf32>
    %27 = arith.subf %26, %25 : vector<2x8xf32>
    %cst_12 = arith.constant -3.40282347E+38 : f32
    %28 = vector.broadcast %cst_12 : f32 to vector<2x8xf32>
    %29 = arith.mulf %27, %28 : vector<2x8xf32>
    %c0_13 = arith.constant 0 : index
    %c0_14 = arith.constant 0 : index
    %c0_15 = arith.constant 0 : index
    %30 = vector.load %arg6[%c0_13, %c0_14, %c0_15] : memref<2x32x96xf32, #tpu.memory_space<vmem>>, vector<1x32x96xf32>
    %31 = vector.shape_cast %30 : vector<1x32x96xf32> to vector<32x96xf32>
    %cst_16 = arith.constant dense<0.000000e+00> : vector<16x96xf32>
    %32 = tpu.matmul %24, %31, %cst_16 {dimension_numbers = #tpu.dot_dimension_numbers<[1], [0], [0], [1], [0, 0, 1, 1], [], []>} : vector<16x32xf32>, vector<32x96xf32>, vector<16x96xf32> -> vector<16x96xf32>
    %c0_17 = arith.constant 0 : index
    %c0_18 = arith.constant 0 : index
    %c0_19 = arith.constant 0 : index
    %33 = vector.load %arg7[%c0_17, %c0_18, %c0_19] : memref<2x1x96xf32, #tpu.memory_space<vmem>>, vector<1x1x96xf32>
    %34 = vector.shape_cast %33 : vector<1x1x96xf32> to vector<1x96xf32>
    %35 = vector.broadcast %34 : vector<1x96xf32> to vector<16x96xf32>
    %36 = arith.addf %32, %35 : vector<16x96xf32>
    %37 = vector.extract_strided_slice %36 {offsets = [0, 0], sizes = [16, 32], strides = [1, 1]} : vector<16x96xf32> to vector<16x32xf32>
    %38 = vector.extract_strided_slice %36 {offsets = [0, 32], sizes = [16, 32], strides = [1, 1]} : vector<16x96xf32> to vector<16x32xf32>
    %39 = vector.extract_strided_slice %36 {offsets = [0, 64], sizes = [16, 32], strides = [1, 1]} : vector<16x96xf32> to vector<16x32xf32>
    %40 = vector.extract_strided_slice %29 {offsets = [0, 0], sizes = [1, 8], strides = [1, 1]} : vector<2x8xf32> to vector<1x8xf32>
    %41 = vector.extract_strided_slice %37 {offsets = [0, 0], sizes = [8, 8], strides = [1, 1]} : vector<16x32xf32> to vector<8x8xf32>
    %42 = vector.extract_strided_slice %38 {offsets = [0, 0], sizes = [8, 8], strides = [1, 1]} : vector<16x32xf32> to vector<8x8xf32>
    %43 = vector.extract_strided_slice %39 {offsets = [0, 0], sizes = [8, 8], strides = [1, 1]} : vector<16x32xf32> to vector<8x8xf32>
    %cst_20 = arith.constant dense<0.000000e+00> : vector<8x8xf32>
    %44 = tpu.matmul %41, %42, %cst_20 {dimension_numbers = #tpu.dot_dimension_numbers<[1], [1], [0], [0], [0, 0, 1, 0], [], []>} : vector<8x8xf32>, vector<8x8xf32>, vector<8x8xf32> -> vector<8x8xf32>
    %cst_21 = arith.constant 0.353553385 : f32
    %45 = vector.broadcast %cst_21 : f32 to vector<8x8xf32>
    %46 = arith.mulf %44, %45 : vector<8x8xf32>
    %47 = vector.broadcast %40 : vector<1x8xf32> to vector<8x8xf32>
    %48 = arith.addf %46, %47 : vector<8x8xf32>
    %cst_22 = arith.constant dense<0xFF800000> : vector<8xf32>
    %49 = vector.multi_reduction <maximumf>, %48, %cst_22 [1] : vector<8x8xf32> to vector<8xf32>
    %50 = vector.shape_cast %49 : vector<8xf32> to vector<8x1xf32>
    %51 = vector.broadcast %50 : vector<8x1xf32> to vector<8x8xf32>
    %52 = arith.subf %48, %51 : vector<8x8xf32>
    %53 = math.exp %52 : vector<8x8xf32>
    %cst_23 = arith.constant dense<0.000000e+00> : vector<8xf32>
    %54 = vector.multi_reduction <add>, %53, %cst_23 [1] : vector<8x8xf32> to vector<8xf32>
    %55 = vector.shape_cast %54 : vector<8xf32> to vector<8x1xf32>
    %56 = tpu.reciprocal %55 {approx = true} : vector<8x1xf32> -> vector<8x1xf32>
    %57 = vector.broadcast %56 : vector<8x1xf32> to vector<8x8xf32>
    %58 = arith.mulf %53, %57 : vector<8x8xf32>
    %cst_24 = arith.constant dense<0.000000e+00> : vector<8x8xf32>
    %59 = tpu.matmul %58, %43, %cst_24 {dimension_numbers = #tpu.dot_dimension_numbers<[1], [0], [0], [1], [0, 0, 1, 1], [], []>} : vector<8x8xf32>, vector<8x8xf32>, vector<8x8xf32> -> vector<8x8xf32>
    %c0_25 = arith.constant 0 : index
    %c0_26 = arith.constant 0 : index
    %60 = vector.load %arg24[%c0_25, %c0_26] : memref<16x32xf32, #tpu.memory_space<vmem>>, vector<8x8xf32>
    tpu.vector_store %arg24[%c0_25, %c0_26], %59 {strides = array<i32>} : memref<16x32xf32, #tpu.memory_space<vmem>>, vector<8x8xf32>,
    %61 = vector.extract_strided_slice %37 {offsets = [0, 8], sizes = [8, 8], strides = [1, 1]} : vector<16x32xf32> to vector<8x8xf32>
    %62 = vector.extract_strided_slice %38 {offsets = [0, 8], sizes = [8, 8], strides = [1, 1]} : vector<16x32xf32> to vector<8x8xf32>
    %63 = vector.extract_strided_slice %39 {offsets = [0, 8], sizes = [8, 8], strides = [1, 1]} : vector<16x32xf32> to vector<8x8xf32>
    %cst_27 = arith.constant dense<0.000000e+00> : vector<8x8xf32>
    %64 = tpu.matmul %61, %62, %cst_27 {dimension_numbers = #tpu.dot_dimension_numbers<[1], [1], [0], [0], [0, 0, 1, 0], [], []>} : vector<8x8xf32>, vector<8x8xf32>, vector<8x8xf32> -> vector<8x8xf32>
    %cst_28 = arith.constant 0.353553385 : f32
    %65 = vector.broadcast %cst_28 : f32 to vector<8x8xf32>
    %66 = arith.mulf %64, %65 : vector<8x8xf32>
    %67 = vector.broadcast %40 : vector<1x8xf32> to vector<8x8xf32>
    %68 = arith.addf %66, %67 : vector<8x8xf32>
    %cst_29 = arith.constant dense<0xFF800000> : vector<8xf32>
    %69 = vector.multi_reduction <maximumf>, %68, %cst_29 [1] : vector<8x8xf32> to vector<8xf32>
    %70 = vector.shape_cast %69 : vector<8xf32> to vector<8x1xf32>
    %71 = vector.broadcast %70 : vector<8x1xf32> to vector<8x8xf32>
    %72 = arith.subf %68, %71 : vector<8x8xf32>
    %73 = math.exp %72 : vector<8x8xf32>
    %cst_30 = arith.constant dense<0.000000e+00> : vector<8xf32>
    %74 = vector.multi_reduction <add>, %73, %cst_30 [1] : vector<8x8xf32> to vector<8xf32>
    %75 = vector.shape_cast %74 : vector<8xf32> to vector<8x1xf32>
    %76 = tpu.reciprocal %75 {approx = true} : vector<8x1xf32> -> vector<8x1xf32>
    %77 = vector.broadcast %76 : vector<8x1xf32> to vector<8x8xf32>
    %78 = arith.mulf %73, %77 : vector<8x8xf32>
    %cst_31 = arith.constant dense<0.000000e+00> : vector<8x8xf32>
    %79 = tpu.matmul %78, %63, %cst_31 {dimension_numbers = #tpu.dot_dimension_numbers<[1], [0], [0], [1], [0, 0, 1, 1], [], []>} : vector<8x8xf32>, vector<8x8xf32>, vector<8x8xf32> -> vector<8x8xf32>
    %c0_32 = arith.constant 0 : index
    %c8 = arith.constant 8 : index
    %80 = vector.load %arg24[%c0_32, %c8] : memref<16x32xf32, #tpu.memory_space<vmem>>, vector<8x8xf32>
    tpu.vector_store %arg24[%c0_32, %c8], %79 {strides = array<i32>} : memref<16x32xf32, #tpu.memory_space<vmem>>, vector<8x8xf32>,
    %81 = vector.extract_strided_slice %37 {offsets = [0, 16], sizes = [8, 8], strides = [1, 1]} : vector<16x32xf32> to vector<8x8xf32>
    %82 = vector.extract_strided_slice %38 {offsets = [0, 16], sizes = [8, 8], strides = [1, 1]} : vector<16x32xf32> to vector<8x8xf32>
    %83 = vector.extract_strided_slice %39 {offsets = [0, 16], sizes = [8, 8], strides = [1, 1]} : vector<16x32xf32> to vector<8x8xf32>
    %cst_33 = arith.constant dense<0.000000e+00> : vector<8x8xf32>
    %84 = tpu.matmul %81, %82, %cst_33 {dimension_numbers = #tpu.dot_dimension_numbers<[1], [1], [0], [0], [0, 0, 1, 0], [], []>} : vector<8x8xf32>, vector<8x8xf32>, vector<8x8xf32> -> vector<8x8xf32>
    %cst_34 = arith.constant 0.353553385 : f32
    %85 = vector.broadcast %cst_34 : f32 to vector<8x8xf32>
    %86 = arith.mulf %84, %85 : vector<8x8xf32>
    %87 = vector.broadcast %40 : vector<1x8xf32> to vector<8x8xf32>
    %88 = arith.addf %86, %87 : vector<8x8xf32>
    %cst_35 = arith.constant dense<0xFF800000> : vector<8xf32>
    %89 = vector.multi_reduction <maximumf>, %88, %cst_35 [1] : vector<8x8xf32> to vector<8xf32>
    %90 = vector.shape_cast %89 : vector<8xf32> to vector<8x1xf32>
    %91 = vector.broadcast %90 : vector<8x1xf32> to vector<8x8xf32>
    %92 = arith.subf %88, %91 : vector<8x8xf32>
    %93 = math.exp %92 : vector<8x8xf32>
    %cst_36 = arith.constant dense<0.000000e+00> : vector<8xf32>
    %94 = vector.multi_reduction <add>, %93, %cst_36 [1] : vector<8x8xf32> to vector<8xf32>
    %95 = vector.shape_cast %94 : vector<8xf32> to vector<8x1xf32>
    %96 = tpu.reciprocal %95 {approx = true} : vector<8x1xf32> -> vector<8x1xf32>
    %97 = vector.broadcast %96 : vector<8x1xf32> to vector<8x8xf32>
    %98 = arith.mulf %93, %97 : vector<8x8xf32>
    %cst_37 = arith.constant dense<0.000000e+00> : vector<8x8xf32>
    %99 = tpu.matmul %98, %83, %cst_37 {dimension_numbers = #tpu.dot_dimension_numbers<[1], [0], [0], [1], [0, 0, 1, 1], [], []>} : vector<8x8xf32>, vector<8x8xf32>, vector<8x8xf32> -> vector<8x8xf32>
    %c0_38 = arith.constant 0 : index
    %c16 = arith.constant 16 : index
    %100 = vector.load %arg24[%c0_38, %c16] : memref<16x32xf32, #tpu.memory_space<vmem>>, vector<8x8xf32>
    tpu.vector_store %arg24[%c0_38, %c16], %99 {strides = array<i32>} : memref<16x32xf32, #tpu.memory_space<vmem>>, vector<8x8xf32>,
    %101 = vector.extract_strided_slice %37 {offsets = [0, 24], sizes = [8, 8], strides = [1, 1]} : vector<16x32xf32> to vector<8x8xf32>
    %102 = vector.extract_strided_slice %38 {offsets = [0, 24], sizes = [8, 8], strides = [1, 1]} : vector<16x32xf32> to vector<8x8xf32>
    %103 = vector.extract_strided_slice %39 {offsets = [0, 24], sizes = [8, 8], strides = [1, 1]} : vector<16x32xf32> to vector<8x8xf32>
    %cst_39 = arith.constant dense<0.000000e+00> : vector<8x8xf32>
    %104 = tpu.matmul %101, %102, %cst_39 {dimension_numbers = #tpu.dot_dimension_numbers<[1], [1], [0], [0], [0, 0, 1, 0], [], []>} : vector<8x8xf32>, vector<8x8xf32>, vector<8x8xf32> -> vector<8x8xf32>
    %cst_40 = arith.constant 0.353553385 : f32
    %105 = vector.broadcast %cst_40 : f32 to vector<8x8xf32>
    %106 = arith.mulf %104, %105 : vector<8x8xf32>
    %107 = vector.broadcast %40 : vector<1x8xf32> to vector<8x8xf32>
    %108 = arith.addf %106, %107 : vector<8x8xf32>
    %cst_41 = arith.constant dense<0xFF800000> : vector<8xf32>
    %109 = vector.multi_reduction <maximumf>, %108, %cst_41 [1] : vector<8x8xf32> to vector<8xf32>
    %110 = vector.shape_cast %109 : vector<8xf32> to vector<8x1xf32>
    %111 = vector.broadcast %110 : vector<8x1xf32> to vector<8x8xf32>
    %112 = arith.subf %108, %111 : vector<8x8xf32>
    %113 = math.exp %112 : vector<8x8xf32>
    %cst_42 = arith.constant dense<0.000000e+00> : vector<8xf32>
    %114 = vector.multi_reduction <add>, %113, %cst_42 [1] : vector<8x8xf32> to vector<8xf32>
    %115 = vector.shape_cast %114 : vector<8xf32> to vector<8x1xf32>
    %116 = tpu.reciprocal %115 {approx = true} : vector<8x1xf32> -> vector<8x1xf32>
    %117 = vector.broadcast %116 : vector<8x1xf32> to vector<8x8xf32>
    %118 = arith.mulf %113, %117 : vector<8x8xf32>
    %cst_43 = arith.constant dense<0.000000e+00> : vector<8x8xf32>
    %119 = tpu.matmul %118, %103, %cst_43 {dimension_numbers = #tpu.dot_dimension_numbers<[1], [0], [0], [1], [0, 0, 1, 1], [], []>} : vector<8x8xf32>, vector<8x8xf32>, vector<8x8xf32> -> vector<8x8xf32>
    %c0_44 = arith.constant 0 : index
    %c24 = arith.constant 24 : index
    %120 = vector.load %arg24[%c0_44, %c24] : memref<16x32xf32, #tpu.memory_space<vmem>>, vector<8x8xf32>
    tpu.vector_store %arg24[%c0_44, %c24], %119 {strides = array<i32>} : memref<16x32xf32, #tpu.memory_space<vmem>>, vector<8x8xf32>,
    %121 = vector.extract_strided_slice %29 {offsets = [1, 0], sizes = [1, 8], strides = [1, 1]} : vector<2x8xf32> to vector<1x8xf32>
    %122 = vector.extract_strided_slice %37 {offsets = [8, 0], sizes = [8, 8], strides = [1, 1]} : vector<16x32xf32> to vector<8x8xf32>
    %123 = vector.extract_strided_slice %38 {offsets = [8, 0], sizes = [8, 8], strides = [1, 1]} : vector<16x32xf32> to vector<8x8xf32>
    %124 = vector.extract_strided_slice %39 {offsets = [8, 0], sizes = [8, 8], strides = [1, 1]} : vector<16x32xf32> to vector<8x8xf32>
    %cst_45 = arith.constant dense<0.000000e+00> : vector<8x8xf32>
    %125 = tpu.matmul %122, %123, %cst_45 {dimension_numbers = #tpu.dot_dimension_numbers<[1], [1], [0], [0], [0, 0, 1, 0], [], []>} : vector<8x8xf32>, vector<8x8xf32>, vector<8x8xf32> -> vector<8x8xf32>
    %cst_46 = arith.constant 0.353553385 : f32
    %126 = vector.broadcast %cst_46 : f32 to vector<8x8xf32>
    %127 = arith.mulf %125, %126 : vector<8x8xf32>
    %128 = vector.broadcast %121 : vector<1x8xf32> to vector<8x8xf32>
    %129 = arith.addf %127, %128 : vector<8x8xf32>
    %cst_47 = arith.constant dense<0xFF800000> : vector<8xf32>
    %130 = vector.multi_reduction <maximumf>, %129, %cst_47 [1] : vector<8x8xf32> to vector<8xf32>
    %131 = vector.shape_cast %130 : vector<8xf32> to vector<8x1xf32>
    %132 = vector.broadcast %131 : vector<8x1xf32> to vector<8x8xf32>
    %133 = arith.subf %129, %132 : vector<8x8xf32>
    %134 = math.exp %133 : vector<8x8xf32>
    %cst_48 = arith.constant dense<0.000000e+00> : vector<8xf32>
    %135 = vector.multi_reduction <add>, %134, %cst_48 [1] : vector<8x8xf32> to vector<8xf32>
    %136 = vector.shape_cast %135 : vector<8xf32> to vector<8x1xf32>
    %137 = tpu.reciprocal %136 {approx = true} : vector<8x1xf32> -> vector<8x1xf32>
    %138 = vector.broadcast %137 : vector<8x1xf32> to vector<8x8xf32>
    %139 = arith.mulf %134, %138 : vector<8x8xf32>
    %cst_49 = arith.constant dense<0.000000e+00> : vector<8x8xf32>
    %140 = tpu.matmul %139, %124, %cst_49 {dimension_numbers = #tpu.dot_dimension_numbers<[1], [0], [0], [1], [0, 0, 1, 1], [], []>} : vector<8x8xf32>, vector<8x8xf32>, vector<8x8xf32> -> vector<8x8xf32>
    %c8_50 = arith.constant 8 : index
    %c0_51 = arith.constant 0 : index
    %141 = vector.load %arg24[%c8_50, %c0_51] : memref<16x32xf32, #tpu.memory_space<vmem>>, vector<8x8xf32>
    tpu.vector_store %arg24[%c8_50, %c0_51], %140 {strides = array<i32>} : memref<16x32xf32, #tpu.memory_space<vmem>>, vector<8x8xf32>,
    %142 = vector.extract_strided_slice %37 {offsets = [8, 8], sizes = [8, 8], strides = [1, 1]} : vector<16x32xf32> to vector<8x8xf32>
    %143 = vector.extract_strided_slice %38 {offsets = [8, 8], sizes = [8, 8], strides = [1, 1]} : vector<16x32xf32> to vector<8x8xf32>
    %144 = vector.extract_strided_slice %39 {offsets = [8, 8], sizes = [8, 8], strides = [1, 1]} : vector<16x32xf32> to vector<8x8xf32>
    %cst_52 = arith.constant dense<0.000000e+00> : vector<8x8xf32>
    %145 = tpu.matmul %142, %143, %cst_52 {dimension_numbers = #tpu.dot_dimension_numbers<[1], [1], [0], [0], [0, 0, 1, 0], [], []>} : vector<8x8xf32>, vector<8x8xf32>, vector<8x8xf32> -> vector<8x8xf32>
    %cst_53 = arith.constant 0.353553385 : f32
    %146 = vector.broadcast %cst_53 : f32 to vector<8x8xf32>
    %147 = arith.mulf %145, %146 : vector<8x8xf32>
    %148 = vector.broadcast %121 : vector<1x8xf32> to vector<8x8xf32>
    %149 = arith.addf %147, %148 : vector<8x8xf32>
    %cst_54 = arith.constant dense<0xFF800000> : vector<8xf32>
    %150 = vector.multi_reduction <maximumf>, %149, %cst_54 [1] : vector<8x8xf32> to vector<8xf32>
    %151 = vector.shape_cast %150 : vector<8xf32> to vector<8x1xf32>
    %152 = vector.broadcast %151 : vector<8x1xf32> to vector<8x8xf32>
    %153 = arith.subf %149, %152 : vector<8x8xf32>
    %154 = math.exp %153 : vector<8x8xf32>
    %cst_55 = arith.constant dense<0.000000e+00> : vector<8xf32>
    %155 = vector.multi_reduction <add>, %154, %cst_55 [1] : vector<8x8xf32> to vector<8xf32>
    %156 = vector.shape_cast %155 : vector<8xf32> to vector<8x1xf32>
    %157 = tpu.reciprocal %156 {approx = true} : vector<8x1xf32> -> vector<8x1xf32>
    %158 = vector.broadcast %157 : vector<8x1xf32> to vector<8x8xf32>
    %159 = arith.mulf %154, %158 : vector<8x8xf32>
    %cst_56 = arith.constant dense<0.000000e+00> : vector<8x8xf32>
    %160 = tpu.matmul %159, %144, %cst_56 {dimension_numbers = #tpu.dot_dimension_numbers<[1], [0], [0], [1], [0, 0, 1, 1], [], []>} : vector<8x8xf32>, vector<8x8xf32>, vector<8x8xf32> -> vector<8x8xf32>
    %c8_57 = arith.constant 8 : index
    %c8_58 = arith.constant 8 : index
    %161 = vector.load %arg24[%c8_57, %c8_58] : memref<16x32xf32, #tpu.memory_space<vmem>>, vector<8x8xf32>
    tpu.vector_store %arg24[%c8_57, %c8_58], %160 {strides = array<i32>} : memref<16x32xf32, #tpu.memory_space<vmem>>, vector<8x8xf32>,
    %162 = vector.extract_strided_slice %37 {offsets = [8, 16], sizes = [8, 8], strides = [1, 1]} : vector<16x32xf32> to vector<8x8xf32>
    %163 = vector.extract_strided_slice %38 {offsets = [8, 16], sizes = [8, 8], strides = [1, 1]} : vector<16x32xf32> to vector<8x8xf32>
    %164 = vector.extract_strided_slice %39 {offsets = [8, 16], sizes = [8, 8], strides = [1, 1]} : vector<16x32xf32> to vector<8x8xf32>
    %cst_59 = arith.constant dense<0.000000e+00> : vector<8x8xf32>
    %165 = tpu.matmul %162, %163, %cst_59 {dimension_numbers = #tpu.dot_dimension_numbers<[1], [1], [0], [0], [0, 0, 1, 0], [], []>} : vector<8x8xf32>, vector<8x8xf32>, vector<8x8xf32> -> vector<8x8xf32>
    %cst_60 = arith.constant 0.353553385 : f32
    %166 = vector.broadcast %cst_60 : f32 to vector<8x8xf32>
    %167 = arith.mulf %165, %166 : vector<8x8xf32>
    %168 = vector.broadcast %121 : vector<1x8xf32> to vector<8x8xf32>
    %169 = arith.addf %167, %168 : vector<8x8xf32>
    %cst_61 = arith.constant dense<0xFF800000> : vector<8xf32>
    %170 = vector.multi_reduction <maximumf>, %169, %cst_61 [1] : vector<8x8xf32> to vector<8xf32>
    %171 = vector.shape_cast %170 : vector<8xf32> to vector<8x1xf32>
    %172 = vector.broadcast %171 : vector<8x1xf32> to vector<8x8xf32>
    %173 = arith.subf %169, %172 : vector<8x8xf32>
    %174 = math.exp %173 : vector<8x8xf32>
    %cst_62 = arith.constant dense<0.000000e+00> : vector<8xf32>
    %175 = vector.multi_reduction <add>, %174, %cst_62 [1] : vector<8x8xf32> to vector<8xf32>
    %176 = vector.shape_cast %175 : vector<8xf32> to vector<8x1xf32>
    %177 = tpu.reciprocal %176 {approx = true} : vector<8x1xf32> -> vector<8x1xf32>
    %178 = vector.broadcast %177 : vector<8x1xf32> to vector<8x8xf32>
    %179 = arith.mulf %174, %178 : vector<8x8xf32>
    %cst_63 = arith.constant dense<0.000000e+00> : vector<8x8xf32>
    %180 = tpu.matmul %179, %164, %cst_63 {dimension_numbers = #tpu.dot_dimension_numbers<[1], [0], [0], [1], [0, 0, 1, 1], [], []>} : vector<8x8xf32>, vector<8x8xf32>, vector<8x8xf32> -> vector<8x8xf32>
    %c8_64 = arith.constant 8 : index
    %c16_65 = arith.constant 16 : index
    %181 = vector.load %arg24[%c8_64, %c16_65] : memref<16x32xf32, #tpu.memory_space<vmem>>, vector<8x8xf32>
    tpu.vector_store %arg24[%c8_64, %c16_65], %180 {strides = array<i32>} : memref<16x32xf32, #tpu.memory_space<vmem>>, vector<8x8xf32>,
    %182 = vector.extract_strided_slice %37 {offsets = [8, 24], sizes = [8, 8], strides = [1, 1]} : vector<16x32xf32> to vector<8x8xf32>
    %183 = vector.extract_strided_slice %38 {offsets = [8, 24], sizes = [8, 8], strides = [1, 1]} : vector<16x32xf32> to vector<8x8xf32>
    %184 = vector.extract_strided_slice %39 {offsets = [8, 24], sizes = [8, 8], strides = [1, 1]} : vector<16x32xf32> to vector<8x8xf32>
    %cst_66 = arith.constant dense<0.000000e+00> : vector<8x8xf32>
    %185 = tpu.matmul %182, %183, %cst_66 {dimension_numbers = #tpu.dot_dimension_numbers<[1], [1], [0], [0], [0, 0, 1, 0], [], []>} : vector<8x8xf32>, vector<8x8xf32>, vector<8x8xf32> -> vector<8x8xf32>
    %cst_67 = arith.constant 0.353553385 : f32
    %186 = vector.broadcast %cst_67 : f32 to vector<8x8xf32>
    %187 = arith.mulf %185, %186 : vector<8x8xf32>
    %188 = vector.broadcast %121 : vector<1x8xf32> to vector<8x8xf32>
    %189 = arith.addf %187, %188 : vector<8x8xf32>
    %cst_68 = arith.constant dense<0xFF800000> : vector<8xf32>
    %190 = vector.multi_reduction <maximumf>, %189, %cst_68 [1] : vector<8x8xf32> to vector<8xf32>
    %191 = vector.shape_cast %190 : vector<8xf32> to vector<8x1xf32>
    %192 = vector.broadcast %191 : vector<8x1xf32> to vector<8x8xf32>
    %193 = arith.subf %189, %192 : vector<8x8xf32>
    %194 = math.exp %193 : vector<8x8xf32>
    %cst_69 = arith.constant dense<0.000000e+00> : vector<8xf32>
    %195 = vector.multi_reduction <add>, %194, %cst_69 [1] : vector<8x8xf32> to vector<8xf32>
    %196 = vector.shape_cast %195 : vector<8xf32> to vector<8x1xf32>
    %197 = tpu.reciprocal %196 {approx = true} : vector<8x1xf32> -> vector<8x1xf32>
    %198 = vector.broadcast %197 : vector<8x1xf32> to vector<8x8xf32>
    %199 = arith.mulf %194, %198 : vector<8x8xf32>
    %cst_70 = arith.constant dense<0.000000e+00> : vector<8x8xf32>
    %200 = tpu.matmul %199, %184, %cst_70 {dimension_numbers = #tpu.dot_dimension_numbers<[1], [0], [0], [1], [0, 0, 1, 1], [], []>} : vector<8x8xf32>, vector<8x8xf32>, vector<8x8xf32> -> vector<8x8xf32>
    %c8_71 = arith.constant 8 : index
    %c24_72 = arith.constant 24 : index
    %201 = vector.load %arg24[%c8_71, %c24_72] : memref<16x32xf32, #tpu.memory_space<vmem>>, vector<8x8xf32>
    tpu.vector_store %arg24[%c8_71, %c24_72], %200 {strides = array<i32>} : memref<16x32xf32, #tpu.memory_space<vmem>>, vector<8x8xf32>,
    %c0_73 = arith.constant 0 : index
    %c0_74 = arith.constant 0 : index
    %202 = vector.load %arg24[%c0_73, %c0_74] : memref<16x32xf32, #tpu.memory_space<vmem>>, vector<16x32xf32>
    %c0_75 = arith.constant 0 : index
    %c0_76 = arith.constant 0 : index
    %c0_77 = arith.constant 0 : index
    %203 = vector.load %arg8[%c0_75, %c0_76, %c0_77] : memref<2x32x32xf32, #tpu.memory_space<vmem>>, vector<1x32x32xf32>
    %204 = vector.shape_cast %203 : vector<1x32x32xf32> to vector<32x32xf32>
    %cst_78 = arith.constant dense<0.000000e+00> : vector<16x32xf32>
    %205 = tpu.matmul %202, %204, %cst_78 {dimension_numbers = #tpu.dot_dimension_numbers<[1], [0], [0], [1], [0, 0, 1, 1], [], []>} : vector<16x32xf32>, vector<32x32xf32>, vector<16x32xf32> -> vector<16x32xf32>
    %c0_79 = arith.constant 0 : index
    %c0_80 = arith.constant 0 : index
    %c0_81 = arith.constant 0 : index
    %206 = vector.load %arg9[%c0_79, %c0_80, %c0_81] : memref<2x1x32xf32, #tpu.memory_space<vmem>>, vector<1x1x32xf32>
    %207 = vector.shape_cast %206 : vector<1x1x32xf32> to vector<1x32xf32>
    %208 = vector.broadcast %207 : vector<1x32xf32> to vector<16x32xf32>
    %209 = arith.addf %205, %208 : vector<16x32xf32>
    %210 = arith.addf %209, %24 : vector<16x32xf32>
    %c0_82 = arith.constant 0 : index
    %c0_83 = arith.constant 0 : index
    %c0_84 = arith.constant 0 : index
    %211 = vector.load %arg10[%c0_82, %c0_83, %c0_84] : memref<2x1x32xf32, #tpu.memory_space<vmem>>, vector<1x1x32xf32>
    %212 = vector.shape_cast %211 : vector<1x1x32xf32> to vector<1x32xf32>
    %c0_85 = arith.constant 0 : index
    %c0_86 = arith.constant 0 : index
    %c0_87 = arith.constant 0 : index
    %213 = vector.load %arg11[%c0_85, %c0_86, %c0_87] : memref<2x1x32xf32, #tpu.memory_space<vmem>>, vector<1x1x32xf32>
    %214 = vector.shape_cast %213 : vector<1x1x32xf32> to vector<1x32xf32>
    %cst_88 = arith.constant dense<0.000000e+00> : vector<16xf32>
    %215 = vector.multi_reduction <add>, %210, %cst_88 [1] : vector<16x32xf32> to vector<16xf32>
    %216 = vector.shape_cast %215 : vector<16xf32> to vector<16x1xf32>
    %cst_89 = arith.constant 3.200000e+01 : f32
    %217 = vector.broadcast %cst_89 : f32 to vector<16x1xf32>
    %218 = arith.divf %216, %217 : vector<16x1xf32>
    %219 = vector.broadcast %218 : vector<16x1xf32> to vector<16x32xf32>
    %220 = arith.subf %210, %219 : vector<16x32xf32>
    %221 = arith.mulf %220, %220 : vector<16x32xf32>
    %cst_90 = arith.constant dense<0.000000e+00> : vector<16xf32>
    %222 = vector.multi_reduction <add>, %221, %cst_90 [1] : vector<16x32xf32> to vector<16xf32>
    %223 = vector.shape_cast %222 : vector<16xf32> to vector<16x1xf32>
    %cst_91 = arith.constant 3.200000e+01 : f32
    %224 = vector.broadcast %cst_91 : f32 to vector<16x1xf32>
    %225 = arith.divf %223, %224 : vector<16x1xf32>
    %226 = vector.broadcast %218 : vector<16x1xf32> to vector<16x32xf32>
    %227 = arith.subf %210, %226 : vector<16x32xf32>
    %cst_92 = arith.constant 9.99999974E-6 : f32
    %228 = vector.broadcast %cst_92 : f32 to vector<16x1xf32>
    %229 = arith.addf %225, %228 : vector<16x1xf32>
    %230 = math.rsqrt %229 : vector<16x1xf32>
    %231 = vector.broadcast %230 : vector<16x1xf32> to vector<16x32xf32>
    %232 = arith.mulf %227, %231 : vector<16x32xf32>
    %233 = vector.broadcast %212 : vector<1x32xf32> to vector<16x32xf32>
    %234 = arith.mulf %232, %233 : vector<16x32xf32>
    %235 = vector.broadcast %214 : vector<1x32xf32> to vector<16x32xf32>
    %236 = arith.addf %234, %235 : vector<16x32xf32>
    %c0_93 = arith.constant 0 : index
    %c0_94 = arith.constant 0 : index
    %c0_95 = arith.constant 0 : index
    %237 = vector.load %arg12[%c0_93, %c0_94, %c0_95] : memref<2x32x64xf32, #tpu.memory_space<vmem>>, vector<1x32x64xf32>
    %238 = vector.shape_cast %237 : vector<1x32x64xf32> to vector<32x64xf32>
    %cst_96 = arith.constant dense<0.000000e+00> : vector<16x64xf32>
    %239 = tpu.matmul %236, %238, %cst_96 {dimension_numbers = #tpu.dot_dimension_numbers<[1], [0], [0], [1], [0, 0, 1, 1], [], []>} : vector<16x32xf32>, vector<32x64xf32>, vector<16x64xf32> -> vector<16x64xf32>
    %c0_97 = arith.constant 0 : index
    %c0_98 = arith.constant 0 : index
    %c0_99 = arith.constant 0 : index
    %240 = vector.load %arg13[%c0_97, %c0_98, %c0_99] : memref<2x1x64xf32, #tpu.memory_space<vmem>>, vector<1x1x64xf32>
    %241 = vector.shape_cast %240 : vector<1x1x64xf32> to vector<1x64xf32>
    %242 = vector.broadcast %241 : vector<1x64xf32> to vector<16x64xf32>
    %243 = arith.addf %239, %242 : vector<16x64xf32>
    %cst_100 = arith.constant 5.000000e-01 : f32
    %244 = vector.broadcast %cst_100 : f32 to vector<16x64xf32>
    %245 = arith.mulf %244, %243 : vector<16x64xf32>
    %cst_101 = arith.constant 0.707106769 : f32
    %246 = vector.broadcast %cst_101 : f32 to vector<16x64xf32>
    %247 = arith.mulf %243, %246 : vector<16x64xf32>
    %248 = math.erf %247 : vector<16x64xf32>
    %cst_102 = arith.constant 1.000000e+00 : f32
    %249 = vector.broadcast %cst_102 : f32 to vector<16x64xf32>
    %250 = arith.addf %249, %248 : vector<16x64xf32>
    %251 = arith.mulf %245, %250 : vector<16x64xf32>
    %c0_103 = arith.constant 0 : index
    %c0_104 = arith.constant 0 : index
    %c0_105 = arith.constant 0 : index
    %252 = vector.load %arg14[%c0_103, %c0_104, %c0_105] : memref<2x64x32xf32, #tpu.memory_space<vmem>>, vector<1x64x32xf32>
    %253 = vector.shape_cast %252 : vector<1x64x32xf32> to vector<64x32xf32>
    %cst_106 = arith.constant dense<0.000000e+00> : vector<16x32xf32>
    %254 = tpu.matmul %251, %253, %cst_106 {dimension_numbers = #tpu.dot_dimension_numbers<[1], [0], [0], [1], [0, 0, 1, 1], [], []>} : vector<16x64xf32>, vector<64x32xf32>, vector<16x32xf32> -> vector<16x32xf32>
    %c0_107 = arith.constant 0 : index
    %c0_108 = arith.constant 0 : index
    %c0_109 = arith.constant 0 : index
    %255 = vector.load %arg15[%c0_107, %c0_108, %c0_109] : memref<2x1x32xf32, #tpu.memory_space<vmem>>, vector<1x1x32xf32>
    %256 = vector.shape_cast %255 : vector<1x1x32xf32> to vector<1x32xf32>
    %257 = vector.broadcast %256 : vector<1x32xf32> to vector<16x32xf32>
    %258 = arith.addf %254, %257 : vector<16x32xf32>
    %259 = arith.addf %258, %236 : vector<16x32xf32>
    %c0_110 = arith.constant 0 : index
    %c0_111 = arith.constant 0 : index
    %c0_112 = arith.constant 0 : index
    %260 = vector.load %arg16[%c0_110, %c0_111, %c0_112] : memref<2x1x32xf32, #tpu.memory_space<vmem>>, vector<1x1x32xf32>
    %261 = vector.shape_cast %260 : vector<1x1x32xf32> to vector<1x32xf32>
    %c0_113 = arith.constant 0 : index
    %c0_114 = arith.constant 0 : index
    %c0_115 = arith.constant 0 : index
    %262 = vector.load %arg17[%c0_113, %c0_114, %c0_115] : memref<2x1x32xf32, #tpu.memory_space<vmem>>, vector<1x1x32xf32>
    %263 = vector.shape_cast %262 : vector<1x1x32xf32> to vector<1x32xf32>
    %cst_116 = arith.constant dense<0.000000e+00> : vector<16xf32>
    %264 = vector.multi_reduction <add>, %259, %cst_116 [1] : vector<16x32xf32> to vector<16xf32>
    %265 = vector.shape_cast %264 : vector<16xf32> to vector<16x1xf32>
    %cst_117 = arith.constant 3.200000e+01 : f32
    %266 = vector.broadcast %cst_117 : f32 to vector<16x1xf32>
    %267 = arith.divf %265, %266 : vector<16x1xf32>
    %268 = vector.broadcast %267 : vector<16x1xf32> to vector<16x32xf32>
    %269 = arith.subf %259, %268 : vector<16x32xf32>
    %270 = arith.mulf %269, %269 : vector<16x32xf32>
    %cst_118 = arith.constant dense<0.000000e+00> : vector<16xf32>
    %271 = vector.multi_reduction <add>, %270, %cst_118 [1] : vector<16x32xf32> to vector<16xf32>
    %272 = vector.shape_cast %271 : vector<16xf32> to vector<16x1xf32>
    %cst_119 = arith.constant 3.200000e+01 : f32
    %273 = vector.broadcast %cst_119 : f32 to vector<16x1xf32>
    %274 = arith.divf %272, %273 : vector<16x1xf32>
    %275 = vector.broadcast %267 : vector<16x1xf32> to vector<16x32xf32>
    %276 = arith.subf %259, %275 : vector<16x32xf32>
    %cst_120 = arith.constant 9.99999974E-6 : f32
    %277 = vector.broadcast %cst_120 : f32 to vector<16x1xf32>
    %278 = arith.addf %274, %277 : vector<16x1xf32>
    %279 = math.rsqrt %278 : vector<16x1xf32>
    %280 = vector.broadcast %279 : vector<16x1xf32> to vector<16x32xf32>
    %281 = arith.mulf %276, %280 : vector<16x32xf32>
    %282 = vector.broadcast %261 : vector<1x32xf32> to vector<16x32xf32>
    %283 = arith.mulf %281, %282 : vector<16x32xf32>
    %284 = vector.broadcast %263 : vector<1x32xf32> to vector<16x32xf32>
    %285 = arith.addf %283, %284 : vector<16x32xf32>
    %c1 = arith.constant 1 : index
    %c0_121 = arith.constant 0 : index
    %c0_122 = arith.constant 0 : index
    %286 = vector.load %arg6[%c1, %c0_121, %c0_122] : memref<2x32x96xf32, #tpu.memory_space<vmem>>, vector<1x32x96xf32>
    %287 = vector.shape_cast %286 : vector<1x32x96xf32> to vector<32x96xf32>
    %cst_123 = arith.constant dense<0.000000e+00> : vector<16x96xf32>
    %288 = tpu.matmul %285, %287, %cst_123 {dimension_numbers = #tpu.dot_dimension_numbers<[1], [0], [0], [1], [0, 0, 1, 1], [], []>} : vector<16x32xf32>, vector<32x96xf32>, vector<16x96xf32> -> vector<16x96xf32>
    %c1_124 = arith.constant 1 : index
    %c0_125 = arith.constant 0 : index
    %c0_126 = arith.constant 0 : index
    %289 = vector.load %arg7[%c1_124, %c0_125, %c0_126] : memref<2x1x96xf32, #tpu.memory_space<vmem>>, vector<1x1x96xf32>
    %290 = vector.shape_cast %289 : vector<1x1x96xf32> to vector<1x96xf32>
    %291 = vector.broadcast %290 : vector<1x96xf32> to vector<16x96xf32>
    %292 = arith.addf %288, %291 : vector<16x96xf32>
    %293 = vector.extract_strided_slice %292 {offsets = [0, 0], sizes = [16, 32], strides = [1, 1]} : vector<16x96xf32> to vector<16x32xf32>
    %294 = vector.extract_strided_slice %292 {offsets = [0, 32], sizes = [16, 32], strides = [1, 1]} : vector<16x96xf32> to vector<16x32xf32>
    %295 = vector.extract_strided_slice %292 {offsets = [0, 64], sizes = [16, 32], strides = [1, 1]} : vector<16x96xf32> to vector<16x32xf32>
    %296 = vector.extract_strided_slice %29 {offsets = [0, 0], sizes = [1, 8], strides = [1, 1]} : vector<2x8xf32> to vector<1x8xf32>
    %297 = vector.extract_strided_slice %293 {offsets = [0, 0], sizes = [8, 8], strides = [1, 1]} : vector<16x32xf32> to vector<8x8xf32>
    %298 = vector.extract_strided_slice %294 {offsets = [0, 0], sizes = [8, 8], strides = [1, 1]} : vector<16x32xf32> to vector<8x8xf32>
    %299 = vector.extract_strided_slice %295 {offsets = [0, 0], sizes = [8, 8], strides = [1, 1]} : vector<16x32xf32> to vector<8x8xf32>
    %cst_127 = arith.constant dense<0.000000e+00> : vector<8x8xf32>
    %300 = tpu.matmul %297, %298, %cst_127 {dimension_numbers = #tpu.dot_dimension_numbers<[1], [1], [0], [0], [0, 0, 1, 0], [], []>} : vector<8x8xf32>, vector<8x8xf32>, vector<8x8xf32> -> vector<8x8xf32>
    %cst_128 = arith.constant 0.353553385 : f32
    %301 = vector.broadcast %cst_128 : f32 to vector<8x8xf32>
    %302 = arith.mulf %300, %301 : vector<8x8xf32>
    %303 = vector.broadcast %296 : vector<1x8xf32> to vector<8x8xf32>
    %304 = arith.addf %302, %303 : vector<8x8xf32>
    %cst_129 = arith.constant dense<0xFF800000> : vector<8xf32>
    %305 = vector.multi_reduction <maximumf>, %304, %cst_129 [1] : vector<8x8xf32> to vector<8xf32>
    %306 = vector.shape_cast %305 : vector<8xf32> to vector<8x1xf32>
    %307 = vector.broadcast %306 : vector<8x1xf32> to vector<8x8xf32>
    %308 = arith.subf %304, %307 : vector<8x8xf32>
    %309 = math.exp %308 : vector<8x8xf32>
    %cst_130 = arith.constant dense<0.000000e+00> : vector<8xf32>
    %310 = vector.multi_reduction <add>, %309, %cst_130 [1] : vector<8x8xf32> to vector<8xf32>
    %311 = vector.shape_cast %310 : vector<8xf32> to vector<8x1xf32>
    %312 = tpu.reciprocal %311 {approx = true} : vector<8x1xf32> -> vector<8x1xf32>
    %313 = vector.broadcast %312 : vector<8x1xf32> to vector<8x8xf32>
    %314 = arith.mulf %309, %313 : vector<8x8xf32>
    %cst_131 = arith.constant dense<0.000000e+00> : vector<8x8xf32>
    %315 = tpu.matmul %314, %299, %cst_131 {dimension_numbers = #tpu.dot_dimension_numbers<[1], [0], [0], [1], [0, 0, 1, 1], [], []>} : vector<8x8xf32>, vector<8x8xf32>, vector<8x8xf32> -> vector<8x8xf32>
    %c0_132 = arith.constant 0 : index
    %c0_133 = arith.constant 0 : index
    %316 = vector.load %arg24[%c0_132, %c0_133] : memref<16x32xf32, #tpu.memory_space<vmem>>, vector<8x8xf32>
    tpu.vector_store %arg24[%c0_132, %c0_133], %315 {strides = array<i32>} : memref<16x32xf32, #tpu.memory_space<vmem>>, vector<8x8xf32>,
    %317 = vector.extract_strided_slice %293 {offsets = [0, 8], sizes = [8, 8], strides = [1, 1]} : vector<16x32xf32> to vector<8x8xf32>
    %318 = vector.extract_strided_slice %294 {offsets = [0, 8], sizes = [8, 8], strides = [1, 1]} : vector<16x32xf32> to vector<8x8xf32>
    %319 = vector.extract_strided_slice %295 {offsets = [0, 8], sizes = [8, 8], strides = [1, 1]} : vector<16x32xf32> to vector<8x8xf32>
    %cst_134 = arith.constant dense<0.000000e+00> : vector<8x8xf32>
    %320 = tpu.matmul %317, %318, %cst_134 {dimension_numbers = #tpu.dot_dimension_numbers<[1], [1], [0], [0], [0, 0, 1, 0], [], []>} : vector<8x8xf32>, vector<8x8xf32>, vector<8x8xf32> -> vector<8x8xf32>
    %cst_135 = arith.constant 0.353553385 : f32
    %321 = vector.broadcast %cst_135 : f32 to vector<8x8xf32>
    %322 = arith.mulf %320, %321 : vector<8x8xf32>
    %323 = vector.broadcast %296 : vector<1x8xf32> to vector<8x8xf32>
    %324 = arith.addf %322, %323 : vector<8x8xf32>
    %cst_136 = arith.constant dense<0xFF800000> : vector<8xf32>
    %325 = vector.multi_reduction <maximumf>, %324, %cst_136 [1] : vector<8x8xf32> to vector<8xf32>
    %326 = vector.shape_cast %325 : vector<8xf32> to vector<8x1xf32>
    %327 = vector.broadcast %326 : vector<8x1xf32> to vector<8x8xf32>
    %328 = arith.subf %324, %327 : vector<8x8xf32>
    %329 = math.exp %328 : vector<8x8xf32>
    %cst_137 = arith.constant dense<0.000000e+00> : vector<8xf32>
    %330 = vector.multi_reduction <add>, %329, %cst_137 [1] : vector<8x8xf32> to vector<8xf32>
    %331 = vector.shape_cast %330 : vector<8xf32> to vector<8x1xf32>
    %332 = tpu.reciprocal %331 {approx = true} : vector<8x1xf32> -> vector<8x1xf32>
    %333 = vector.broadcast %332 : vector<8x1xf32> to vector<8x8xf32>
    %334 = arith.mulf %329, %333 : vector<8x8xf32>
    %cst_138 = arith.constant dense<0.000000e+00> : vector<8x8xf32>
    %335 = tpu.matmul %334, %319, %cst_138 {dimension_numbers = #tpu.dot_dimension_numbers<[1], [0], [0], [1], [0, 0, 1, 1], [], []>} : vector<8x8xf32>, vector<8x8xf32>, vector<8x8xf32> -> vector<8x8xf32>
    %c0_139 = arith.constant 0 : index
    %c8_140 = arith.constant 8 : index
    %336 = vector.load %arg24[%c0_139, %c8_140] : memref<16x32xf32, #tpu.memory_space<vmem>>, vector<8x8xf32>
    tpu.vector_store %arg24[%c0_139, %c8_140], %335 {strides = array<i32>} : memref<16x32xf32, #tpu.memory_space<vmem>>, vector<8x8xf32>,
    %337 = vector.extract_strided_slice %293 {offsets = [0, 16], sizes = [8, 8], strides = [1, 1]} : vector<16x32xf32> to vector<8x8xf32>
    %338 = vector.extract_strided_slice %294 {offsets = [0, 16], sizes = [8, 8], strides = [1, 1]} : vector<16x32xf32> to vector<8x8xf32>
    %339 = vector.extract_strided_slice %295 {offsets = [0, 16], sizes = [8, 8], strides = [1, 1]} : vector<16x32xf32> to vector<8x8xf32>
    %cst_141 = arith.constant dense<0.000000e+00> : vector<8x8xf32>
    %340 = tpu.matmul %337, %338, %cst_141 {dimension_numbers = #tpu.dot_dimension_numbers<[1], [1], [0], [0], [0, 0, 1, 0], [], []>} : vector<8x8xf32>, vector<8x8xf32>, vector<8x8xf32> -> vector<8x8xf32>
    %cst_142 = arith.constant 0.353553385 : f32
    %341 = vector.broadcast %cst_142 : f32 to vector<8x8xf32>
    %342 = arith.mulf %340, %341 : vector<8x8xf32>
    %343 = vector.broadcast %296 : vector<1x8xf32> to vector<8x8xf32>
    %344 = arith.addf %342, %343 : vector<8x8xf32>
    %cst_143 = arith.constant dense<0xFF800000> : vector<8xf32>
    %345 = vector.multi_reduction <maximumf>, %344, %cst_143 [1] : vector<8x8xf32> to vector<8xf32>
    %346 = vector.shape_cast %345 : vector<8xf32> to vector<8x1xf32>
    %347 = vector.broadcast %346 : vector<8x1xf32> to vector<8x8xf32>
    %348 = arith.subf %344, %347 : vector<8x8xf32>
    %349 = math.exp %348 : vector<8x8xf32>
    %cst_144 = arith.constant dense<0.000000e+00> : vector<8xf32>
    %350 = vector.multi_reduction <add>, %349, %cst_144 [1] : vector<8x8xf32> to vector<8xf32>
    %351 = vector.shape_cast %350 : vector<8xf32> to vector<8x1xf32>
    %352 = tpu.reciprocal %351 {approx = true} : vector<8x1xf32> -> vector<8x1xf32>
    %353 = vector.broadcast %352 : vector<8x1xf32> to vector<8x8xf32>
    %354 = arith.mulf %349, %353 : vector<8x8xf32>
    %cst_145 = arith.constant dense<0.000000e+00> : vector<8x8xf32>
    %355 = tpu.matmul %354, %339, %cst_145 {dimension_numbers = #tpu.dot_dimension_numbers<[1], [0], [0], [1], [0, 0, 1, 1], [], []>} : vector<8x8xf32>, vector<8x8xf32>, vector<8x8xf32> -> vector<8x8xf32>
    %c0_146 = arith.constant 0 : index
    %c16_147 = arith.constant 16 : index
    %356 = vector.load %arg24[%c0_146, %c16_147] : memref<16x32xf32, #tpu.memory_space<vmem>>, vector<8x8xf32>
    tpu.vector_store %arg24[%c0_146, %c16_147], %355 {strides = array<i32>} : memref<16x32xf32, #tpu.memory_space<vmem>>, vector<8x8xf32>,
    %357 = vector.extract_strided_slice %293 {offsets = [0, 24], sizes = [8, 8], strides = [1, 1]} : vector<16x32xf32> to vector<8x8xf32>
    %358 = vector.extract_strided_slice %294 {offsets = [0, 24], sizes = [8, 8], strides = [1, 1]} : vector<16x32xf32> to vector<8x8xf32>
    %359 = vector.extract_strided_slice %295 {offsets = [0, 24], sizes = [8, 8], strides = [1, 1]} : vector<16x32xf32> to vector<8x8xf32>
    %cst_148 = arith.constant dense<0.000000e+00> : vector<8x8xf32>
    %360 = tpu.matmul %357, %358, %cst_148 {dimension_numbers = #tpu.dot_dimension_numbers<[1], [1], [0], [0], [0, 0, 1, 0], [], []>} : vector<8x8xf32>, vector<8x8xf32>, vector<8x8xf32> -> vector<8x8xf32>
    %cst_149 = arith.constant 0.353553385 : f32
    %361 = vector.broadcast %cst_149 : f32 to vector<8x8xf32>
    %362 = arith.mulf %360, %361 : vector<8x8xf32>
    %363 = vector.broadcast %296 : vector<1x8xf32> to vector<8x8xf32>
    %364 = arith.addf %362, %363 : vector<8x8xf32>
    %cst_150 = arith.constant dense<0xFF800000> : vector<8xf32>
    %365 = vector.multi_reduction <maximumf>, %364, %cst_150 [1] : vector<8x8xf32> to vector<8xf32>
    %366 = vector.shape_cast %365 : vector<8xf32> to vector<8x1xf32>
    %367 = vector.broadcast %366 : vector<8x1xf32> to vector<8x8xf32>
    %368 = arith.subf %364, %367 : vector<8x8xf32>
    %369 = math.exp %368 : vector<8x8xf32>
    %cst_151 = arith.constant dense<0.000000e+00> : vector<8xf32>
    %370 = vector.multi_reduction <add>, %369, %cst_151 [1] : vector<8x8xf32> to vector<8xf32>
    %371 = vector.shape_cast %370 : vector<8xf32> to vector<8x1xf32>
    %372 = tpu.reciprocal %371 {approx = true} : vector<8x1xf32> -> vector<8x1xf32>
    %373 = vector.broadcast %372 : vector<8x1xf32> to vector<8x8xf32>
    %374 = arith.mulf %369, %373 : vector<8x8xf32>
    %cst_152 = arith.constant dense<0.000000e+00> : vector<8x8xf32>
    %375 = tpu.matmul %374, %359, %cst_152 {dimension_numbers = #tpu.dot_dimension_numbers<[1], [0], [0], [1], [0, 0, 1, 1], [], []>} : vector<8x8xf32>, vector<8x8xf32>, vector<8x8xf32> -> vector<8x8xf32>
    %c0_153 = arith.constant 0 : index
    %c24_154 = arith.constant 24 : index
    %376 = vector.load %arg24[%c0_153, %c24_154] : memref<16x32xf32, #tpu.memory_space<vmem>>, vector<8x8xf32>
    tpu.vector_store %arg24[%c0_153, %c24_154], %375 {strides = array<i32>} : memref<16x32xf32, #tpu.memory_space<vmem>>, vector<8x8xf32>,
    %377 = vector.extract_strided_slice %29 {offsets = [1, 0], sizes = [1, 8], strides = [1, 1]} : vector<2x8xf32> to vector<1x8xf32>
    %378 = vector.extract_strided_slice %293 {offsets = [8, 0], sizes = [8, 8], strides = [1, 1]} : vector<16x32xf32> to vector<8x8xf32>
    %379 = vector.extract_strided_slice %294 {offsets = [8, 0], sizes = [8, 8], strides = [1, 1]} : vector<16x32xf32> to vector<8x8xf32>
    %380 = vector.extract_strided_slice %295 {offsets = [8, 0], sizes = [8, 8], strides = [1, 1]} : vector<16x32xf32> to vector<8x8xf32>
    %cst_155 = arith.constant dense<0.000000e+00> : vector<8x8xf32>
    %381 = tpu.matmul %378, %379, %cst_155 {dimension_numbers = #tpu.dot_dimension_numbers<[1], [1], [0], [0], [0, 0, 1, 0], [], []>} : vector<8x8xf32>, vector<8x8xf32>, vector<8x8xf32> -> vector<8x8xf32>
    %cst_156 = arith.constant 0.353553385 : f32
    %382 = vector.broadcast %cst_156 : f32 to vector<8x8xf32>
    %383 = arith.mulf %381, %382 : vector<8x8xf32>
    %384 = vector.broadcast %377 : vector<1x8xf32> to vector<8x8xf32>
    %385 = arith.addf %383, %384 : vector<8x8xf32>
    %cst_157 = arith.constant dense<0xFF800000> : vector<8xf32>
    %386 = vector.multi_reduction <maximumf>, %385, %cst_157 [1] : vector<8x8xf32> to vector<8xf32>
    %387 = vector.shape_cast %386 : vector<8xf32> to vector<8x1xf32>
    %388 = vector.broadcast %387 : vector<8x1xf32> to vector<8x8xf32>
    %389 = arith.subf %385, %388 : vector<8x8xf32>
    %390 = math.exp %389 : vector<8x8xf32>
    %cst_158 = arith.constant dense<0.000000e+00> : vector<8xf32>
    %391 = vector.multi_reduction <add>, %390, %cst_158 [1] : vector<8x8xf32> to vector<8xf32>
    %392 = vector.shape_cast %391 : vector<8xf32> to vector<8x1xf32>
    %393 = tpu.reciprocal %392 {approx = true} : vector<8x1xf32> -> vector<8x1xf32>
    %394 = vector.broadcast %393 : vector<8x1xf32> to vector<8x8xf32>
    %395 = arith.mulf %390, %394 : vector<8x8xf32>
    %cst_159 = arith.constant dense<0.000000e+00> : vector<8x8xf32>
    %396 = tpu.matmul %395, %380, %cst_159 {dimension_numbers = #tpu.dot_dimension_numbers<[1], [0], [0], [1], [0, 0, 1, 1], [], []>} : vector<8x8xf32>, vector<8x8xf32>, vector<8x8xf32> -> vector<8x8xf32>
    %c8_160 = arith.constant 8 : index
    %c0_161 = arith.constant 0 : index
    %397 = vector.load %arg24[%c8_160, %c0_161] : memref<16x32xf32, #tpu.memory_space<vmem>>, vector<8x8xf32>
    tpu.vector_store %arg24[%c8_160, %c0_161], %396 {strides = array<i32>} : memref<16x32xf32, #tpu.memory_space<vmem>>, vector<8x8xf32>,
    %398 = vector.extract_strided_slice %293 {offsets = [8, 8], sizes = [8, 8], strides = [1, 1]} : vector<16x32xf32> to vector<8x8xf32>
    %399 = vector.extract_strided_slice %294 {offsets = [8, 8], sizes = [8, 8], strides = [1, 1]} : vector<16x32xf32> to vector<8x8xf32>
    %400 = vector.extract_strided_slice %295 {offsets = [8, 8], sizes = [8, 8], strides = [1, 1]} : vector<16x32xf32> to vector<8x8xf32>
    %cst_162 = arith.constant dense<0.000000e+00> : vector<8x8xf32>
    %401 = tpu.matmul %398, %399, %cst_162 {dimension_numbers = #tpu.dot_dimension_numbers<[1], [1], [0], [0], [0, 0, 1, 0], [], []>} : vector<8x8xf32>, vector<8x8xf32>, vector<8x8xf32> -> vector<8x8xf32>
    %cst_163 = arith.constant 0.353553385 : f32
    %402 = vector.broadcast %cst_163 : f32 to vector<8x8xf32>
    %403 = arith.mulf %401, %402 : vector<8x8xf32>
    %404 = vector.broadcast %377 : vector<1x8xf32> to vector<8x8xf32>
    %405 = arith.addf %403, %404 : vector<8x8xf32>
    %cst_164 = arith.constant dense<0xFF800000> : vector<8xf32>
    %406 = vector.multi_reduction <maximumf>, %405, %cst_164 [1] : vector<8x8xf32> to vector<8xf32>
    %407 = vector.shape_cast %406 : vector<8xf32> to vector<8x1xf32>
    %408 = vector.broadcast %407 : vector<8x1xf32> to vector<8x8xf32>
    %409 = arith.subf %405, %408 : vector<8x8xf32>
    %410 = math.exp %409 : vector<8x8xf32>
    %cst_165 = arith.constant dense<0.000000e+00> : vector<8xf32>
    %411 = vector.multi_reduction <add>, %410, %cst_165 [1] : vector<8x8xf32> to vector<8xf32>
    %412 = vector.shape_cast %411 : vector<8xf32> to vector<8x1xf32>
    %413 = tpu.reciprocal %412 {approx = true} : vector<8x1xf32> -> vector<8x1xf32>
    %414 = vector.broadcast %413 : vector<8x1xf32> to vector<8x8xf32>
    %415 = arith.mulf %410, %414 : vector<8x8xf32>
    %cst_166 = arith.constant dense<0.000000e+00> : vector<8x8xf32>
    %416 = tpu.matmul %415, %400, %cst_166 {dimension_numbers = #tpu.dot_dimension_numbers<[1], [0], [0], [1], [0, 0, 1, 1], [], []>} : vector<8x8xf32>, vector<8x8xf32>, vector<8x8xf32> -> vector<8x8xf32>
    %c8_167 = arith.constant 8 : index
    %c8_168 = arith.constant 8 : index
    %417 = vector.load %arg24[%c8_167, %c8_168] : memref<16x32xf32, #tpu.memory_space<vmem>>, vector<8x8xf32>
    tpu.vector_store %arg24[%c8_167, %c8_168], %416 {strides = array<i32>} : memref<16x32xf32, #tpu.memory_space<vmem>>, vector<8x8xf32>,
    %418 = vector.extract_strided_slice %293 {offsets = [8, 16], sizes = [8, 8], strides = [1, 1]} : vector<16x32xf32> to vector<8x8xf32>
    %419 = vector.extract_strided_slice %294 {offsets = [8, 16], sizes = [8, 8], strides = [1, 1]} : vector<16x32xf32> to vector<8x8xf32>
    %420 = vector.extract_strided_slice %295 {offsets = [8, 16], sizes = [8, 8], strides = [1, 1]} : vector<16x32xf32> to vector<8x8xf32>
    %cst_169 = arith.constant dense<0.000000e+00> : vector<8x8xf32>
    %421 = tpu.matmul %418, %419, %cst_169 {dimension_numbers = #tpu.dot_dimension_numbers<[1], [1], [0], [0], [0, 0, 1, 0], [], []>} : vector<8x8xf32>, vector<8x8xf32>, vector<8x8xf32> -> vector<8x8xf32>
    %cst_170 = arith.constant 0.353553385 : f32
    %422 = vector.broadcast %cst_170 : f32 to vector<8x8xf32>
    %423 = arith.mulf %421, %422 : vector<8x8xf32>
    %424 = vector.broadcast %377 : vector<1x8xf32> to vector<8x8xf32>
    %425 = arith.addf %423, %424 : vector<8x8xf32>
    %cst_171 = arith.constant dense<0xFF800000> : vector<8xf32>
    %426 = vector.multi_reduction <maximumf>, %425, %cst_171 [1] : vector<8x8xf32> to vector<8xf32>
    %427 = vector.shape_cast %426 : vector<8xf32> to vector<8x1xf32>
    %428 = vector.broadcast %427 : vector<8x1xf32> to vector<8x8xf32>
    %429 = arith.subf %425, %428 : vector<8x8xf32>
    %430 = math.exp %429 : vector<8x8xf32>
    %cst_172 = arith.constant dense<0.000000e+00> : vector<8xf32>
    %431 = vector.multi_reduction <add>, %430, %cst_172 [1] : vector<8x8xf32> to vector<8xf32>
    %432 = vector.shape_cast %431 : vector<8xf32> to vector<8x1xf32>
    %433 = tpu.reciprocal %432 {approx = true} : vector<8x1xf32> -> vector<8x1xf32>
    %434 = vector.broadcast %433 : vector<8x1xf32> to vector<8x8xf32>
    %435 = arith.mulf %430, %434 : vector<8x8xf32>
    %cst_173 = arith.constant dense<0.000000e+00> : vector<8x8xf32>
    %436 = tpu.matmul %435, %420, %cst_173 {dimension_numbers = #tpu.dot_dimension_numbers<[1], [0], [0], [1], [0, 0, 1, 1], [], []>} : vector<8x8xf32>, vector<8x8xf32>, vector<8x8xf32> -> vector<8x8xf32>
    %c8_174 = arith.constant 8 : index
    %c16_175 = arith.constant 16 : index
    %437 = vector.load %arg24[%c8_174, %c16_175] : memref<16x32xf32, #tpu.memory_space<vmem>>, vector<8x8xf32>
    tpu.vector_store %arg24[%c8_174, %c16_175], %436 {strides = array<i32>} : memref<16x32xf32, #tpu.memory_space<vmem>>, vector<8x8xf32>,
    %438 = vector.extract_strided_slice %293 {offsets = [8, 24], sizes = [8, 8], strides = [1, 1]} : vector<16x32xf32> to vector<8x8xf32>
    %439 = vector.extract_strided_slice %294 {offsets = [8, 24], sizes = [8, 8], strides = [1, 1]} : vector<16x32xf32> to vector<8x8xf32>
    %440 = vector.extract_strided_slice %295 {offsets = [8, 24], sizes = [8, 8], strides = [1, 1]} : vector<16x32xf32> to vector<8x8xf32>
    %cst_176 = arith.constant dense<0.000000e+00> : vector<8x8xf32>
    %441 = tpu.matmul %438, %439, %cst_176 {dimension_numbers = #tpu.dot_dimension_numbers<[1], [1], [0], [0], [0, 0, 1, 0], [], []>} : vector<8x8xf32>, vector<8x8xf32>, vector<8x8xf32> -> vector<8x8xf32>
    %cst_177 = arith.constant 0.353553385 : f32
    %442 = vector.broadcast %cst_177 : f32 to vector<8x8xf32>
    %443 = arith.mulf %441, %442 : vector<8x8xf32>
    %444 = vector.broadcast %377 : vector<1x8xf32> to vector<8x8xf32>
    %445 = arith.addf %443, %444 : vector<8x8xf32>
    %cst_178 = arith.constant dense<0xFF800000> : vector<8xf32>
    %446 = vector.multi_reduction <maximumf>, %445, %cst_178 [1] : vector<8x8xf32> to vector<8xf32>
    %447 = vector.shape_cast %446 : vector<8xf32> to vector<8x1xf32>
    %448 = vector.broadcast %447 : vector<8x1xf32> to vector<8x8xf32>
    %449 = arith.subf %445, %448 : vector<8x8xf32>
    %450 = math.exp %449 : vector<8x8xf32>
    %cst_179 = arith.constant dense<0.000000e+00> : vector<8xf32>
    %451 = vector.multi_reduction <add>, %450, %cst_179 [1] : vector<8x8xf32> to vector<8xf32>
    %452 = vector.shape_cast %451 : vector<8xf32> to vector<8x1xf32>
    %453 = tpu.reciprocal %452 {approx = true} : vector<8x1xf32> -> vector<8x1xf32>
    %454 = vector.broadcast %453 : vector<8x1xf32> to vector<8x8xf32>
    %455 = arith.mulf %450, %454 : vector<8x8xf32>
    %cst_180 = arith.constant dense<0.000000e+00> : vector<8x8xf32>
    %456 = tpu.matmul %455, %440, %cst_180 {dimension_numbers = #tpu.dot_dimension_numbers<[1], [0], [0], [1], [0, 0, 1, 1], [], []>} : vector<8x8xf32>, vector<8x8xf32>, vector<8x8xf32> -> vector<8x8xf32>
    %c8_181 = arith.constant 8 : index
    %c24_182 = arith.constant 24 : index
    %457 = vector.load %arg24[%c8_181, %c24_182] : memref<16x32xf32, #tpu.memory_space<vmem>>, vector<8x8xf32>
    tpu.vector_store %arg24[%c8_181, %c24_182], %456 {strides = array<i32>} : memref<16x32xf32, #tpu.memory_space<vmem>>, vector<8x8xf32>,
    %c0_183 = arith.constant 0 : index
    %c0_184 = arith.constant 0 : index
    %458 = vector.load %arg24[%c0_183, %c0_184] : memref<16x32xf32, #tpu.memory_space<vmem>>, vector<16x32xf32>
    %c1_185 = arith.constant 1 : index
    %c0_186 = arith.constant 0 : index
    %c0_187 = arith.constant 0 : index
    %459 = vector.load %arg8[%c1_185, %c0_186, %c0_187] : memref<2x32x32xf32, #tpu.memory_space<vmem>>, vector<1x32x32xf32>
    %460 = vector.shape_cast %459 : vector<1x32x32xf32> to vector<32x32xf32>
    %cst_188 = arith.constant dense<0.000000e+00> : vector<16x32xf32>
    %461 = tpu.matmul %458, %460, %cst_188 {dimension_numbers = #tpu.dot_dimension_numbers<[1], [0], [0], [1], [0, 0, 1, 1], [], []>} : vector<16x32xf32>, vector<32x32xf32>, vector<16x32xf32> -> vector<16x32xf32>
    %c1_189 = arith.constant 1 : index
    %c0_190 = arith.constant 0 : index
    %c0_191 = arith.constant 0 : index
    %462 = vector.load %arg9[%c1_189, %c0_190, %c0_191] : memref<2x1x32xf32, #tpu.memory_space<vmem>>, vector<1x1x32xf32>
    %463 = vector.shape_cast %462 : vector<1x1x32xf32> to vector<1x32xf32>
    %464 = vector.broadcast %463 : vector<1x32xf32> to vector<16x32xf32>
    %465 = arith.addf %461, %464 : vector<16x32xf32>
    %466 = arith.addf %465, %285 : vector<16x32xf32>
    %c1_192 = arith.constant 1 : index
    %c0_193 = arith.constant 0 : index
    %c0_194 = arith.constant 0 : index
    %467 = vector.load %arg10[%c1_192, %c0_193, %c0_194] : memref<2x1x32xf32, #tpu.memory_space<vmem>>, vector<1x1x32xf32>
    %468 = vector.shape_cast %467 : vector<1x1x32xf32> to vector<1x32xf32>
    %c1_195 = arith.constant 1 : index
    %c0_196 = arith.constant 0 : index
    %c0_197 = arith.constant 0 : index
    %469 = vector.load %arg11[%c1_195, %c0_196, %c0_197] : memref<2x1x32xf32, #tpu.memory_space<vmem>>, vector<1x1x32xf32>
    %470 = vector.shape_cast %469 : vector<1x1x32xf32> to vector<1x32xf32>
    %cst_198 = arith.constant dense<0.000000e+00> : vector<16xf32>
    %471 = vector.multi_reduction <add>, %466, %cst_198 [1] : vector<16x32xf32> to vector<16xf32>
    %472 = vector.shape_cast %471 : vector<16xf32> to vector<16x1xf32>
    %cst_199 = arith.constant 3.200000e+01 : f32
    %473 = vector.broadcast %cst_199 : f32 to vector<16x1xf32>
    %474 = arith.divf %472, %473 : vector<16x1xf32>
    %475 = vector.broadcast %474 : vector<16x1xf32> to vector<16x32xf32>
    %476 = arith.subf %466, %475 : vector<16x32xf32>
    %477 = arith.mulf %476, %476 : vector<16x32xf32>
    %cst_200 = arith.constant dense<0.000000e+00> : vector<16xf32>
    %478 = vector.multi_reduction <add>, %477, %cst_200 [1] : vector<16x32xf32> to vector<16xf32>
    %479 = vector.shape_cast %478 : vector<16xf32> to vector<16x1xf32>
    %cst_201 = arith.constant 3.200000e+01 : f32
    %480 = vector.broadcast %cst_201 : f32 to vector<16x1xf32>
    %481 = arith.divf %479, %480 : vector<16x1xf32>
    %482 = vector.broadcast %474 : vector<16x1xf32> to vector<16x32xf32>
    %483 = arith.subf %466, %482 : vector<16x32xf32>
    %cst_202 = arith.constant 9.99999974E-6 : f32
    %484 = vector.broadcast %cst_202 : f32 to vector<16x1xf32>
    %485 = arith.addf %481, %484 : vector<16x1xf32>
    %486 = math.rsqrt %485 : vector<16x1xf32>
    %487 = vector.broadcast %486 : vector<16x1xf32> to vector<16x32xf32>
    %488 = arith.mulf %483, %487 : vector<16x32xf32>
    %489 = vector.broadcast %468 : vector<1x32xf32> to vector<16x32xf32>
    %490 = arith.mulf %488, %489 : vector<16x32xf32>
    %491 = vector.broadcast %470 : vector<1x32xf32> to vector<16x32xf32>
    %492 = arith.addf %490, %491 : vector<16x32xf32>
    %c1_203 = arith.constant 1 : index
    %c0_204 = arith.constant 0 : index
    %c0_205 = arith.constant 0 : index
    %493 = vector.load %arg12[%c1_203, %c0_204, %c0_205] : memref<2x32x64xf32, #tpu.memory_space<vmem>>, vector<1x32x64xf32>
    %494 = vector.shape_cast %493 : vector<1x32x64xf32> to vector<32x64xf32>
    %cst_206 = arith.constant dense<0.000000e+00> : vector<16x64xf32>
    %495 = tpu.matmul %492, %494, %cst_206 {dimension_numbers = #tpu.dot_dimension_numbers<[1], [0], [0], [1], [0, 0, 1, 1], [], []>} : vector<16x32xf32>, vector<32x64xf32>, vector<16x64xf32> -> vector<16x64xf32>
    %c1_207 = arith.constant 1 : index
    %c0_208 = arith.constant 0 : index
    %c0_209 = arith.constant 0 : index
    %496 = vector.load %arg13[%c1_207, %c0_208, %c0_209] : memref<2x1x64xf32, #tpu.memory_space<vmem>>, vector<1x1x64xf32>
    %497 = vector.shape_cast %496 : vector<1x1x64xf32> to vector<1x64xf32>
    %498 = vector.broadcast %497 : vector<1x64xf32> to vector<16x64xf32>
    %499 = arith.addf %495, %498 : vector<16x64xf32>
    %cst_210 = arith.constant 5.000000e-01 : f32
    %500 = vector.broadcast %cst_210 : f32 to vector<16x64xf32>
    %501 = arith.mulf %500, %499 : vector<16x64xf32>
    %cst_211 = arith.constant 0.707106769 : f32
    %502 = vector.broadcast %cst_211 : f32 to vector<16x64xf32>
    %503 = arith.mulf %499, %502 : vector<16x64xf32>
    %504 = math.erf %503 : vector<16x64xf32>
    %cst_212 = arith.constant 1.000000e+00 : f32
    %505 = vector.broadcast %cst_212 : f32 to vector<16x64xf32>
    %506 = arith.addf %505, %504 : vector<16x64xf32>
    %507 = arith.mulf %501, %506 : vector<16x64xf32>
    %c1_213 = arith.constant 1 : index
    %c0_214 = arith.constant 0 : index
    %c0_215 = arith.constant 0 : index
    %508 = vector.load %arg14[%c1_213, %c0_214, %c0_215] : memref<2x64x32xf32, #tpu.memory_space<vmem>>, vector<1x64x32xf32>
    %509 = vector.shape_cast %508 : vector<1x64x32xf32> to vector<64x32xf32>
    %cst_216 = arith.constant dense<0.000000e+00> : vector<16x32xf32>
    %510 = tpu.matmul %507, %509, %cst_216 {dimension_numbers = #tpu.dot_dimension_numbers<[1], [0], [0], [1], [0, 0, 1, 1], [], []>} : vector<16x64xf32>, vector<64x32xf32>, vector<16x32xf32> -> vector<16x32xf32>
    %c1_217 = arith.constant 1 : index
    %c0_218 = arith.constant 0 : index
    %c0_219 = arith.constant 0 : index
    %511 = vector.load %arg15[%c1_217, %c0_218, %c0_219] : memref<2x1x32xf32, #tpu.memory_space<vmem>>, vector<1x1x32xf32>
    %512 = vector.shape_cast %511 : vector<1x1x32xf32> to vector<1x32xf32>
    %513 = vector.broadcast %512 : vector<1x32xf32> to vector<16x32xf32>
    %514 = arith.addf %510, %513 : vector<16x32xf32>
    %515 = arith.addf %514, %492 : vector<16x32xf32>
    %c1_220 = arith.constant 1 : index
    %c0_221 = arith.constant 0 : index
    %c0_222 = arith.constant 0 : index
    %516 = vector.load %arg16[%c1_220, %c0_221, %c0_222] : memref<2x1x32xf32, #tpu.memory_space<vmem>>, vector<1x1x32xf32>
    %517 = vector.shape_cast %516 : vector<1x1x32xf32> to vector<1x32xf32>
    %c1_223 = arith.constant 1 : index
    %c0_224 = arith.constant 0 : index
    %c0_225 = arith.constant 0 : index
    %518 = vector.load %arg17[%c1_223, %c0_224, %c0_225] : memref<2x1x32xf32, #tpu.memory_space<vmem>>, vector<1x1x32xf32>
    %519 = vector.shape_cast %518 : vector<1x1x32xf32> to vector<1x32xf32>
    %cst_226 = arith.constant dense<0.000000e+00> : vector<16xf32>
    %520 = vector.multi_reduction <add>, %515, %cst_226 [1] : vector<16x32xf32> to vector<16xf32>
    %521 = vector.shape_cast %520 : vector<16xf32> to vector<16x1xf32>
    %cst_227 = arith.constant 3.200000e+01 : f32
    %522 = vector.broadcast %cst_227 : f32 to vector<16x1xf32>
    %523 = arith.divf %521, %522 : vector<16x1xf32>
    %524 = vector.broadcast %523 : vector<16x1xf32> to vector<16x32xf32>
    %525 = arith.subf %515, %524 : vector<16x32xf32>
    %526 = arith.mulf %525, %525 : vector<16x32xf32>
    %cst_228 = arith.constant dense<0.000000e+00> : vector<16xf32>
    %527 = vector.multi_reduction <add>, %526, %cst_228 [1] : vector<16x32xf32> to vector<16xf32>
    %528 = vector.shape_cast %527 : vector<16xf32> to vector<16x1xf32>
    %cst_229 = arith.constant 3.200000e+01 : f32
    %529 = vector.broadcast %cst_229 : f32 to vector<16x1xf32>
    %530 = arith.divf %528, %529 : vector<16x1xf32>
    %531 = vector.broadcast %523 : vector<16x1xf32> to vector<16x32xf32>
    %532 = arith.subf %515, %531 : vector<16x32xf32>
    %cst_230 = arith.constant 9.99999974E-6 : f32
    %533 = vector.broadcast %cst_230 : f32 to vector<16x1xf32>
    %534 = arith.addf %530, %533 : vector<16x1xf32>
    %535 = math.rsqrt %534 : vector<16x1xf32>
    %536 = vector.broadcast %535 : vector<16x1xf32> to vector<16x32xf32>
    %537 = arith.mulf %532, %536 : vector<16x32xf32>
    %538 = vector.broadcast %517 : vector<1x32xf32> to vector<16x32xf32>
    %539 = arith.mulf %537, %538 : vector<16x32xf32>
    %540 = vector.broadcast %519 : vector<1x32xf32> to vector<16x32xf32>
    %541 = arith.addf %539, %540 : vector<16x32xf32>
    %542 = vector.extract_strided_slice %541 {offsets = [0, 0], sizes = [1, 32], strides = [1, 1]} : vector<16x32xf32> to vector<1x32xf32>
    %c0_231 = arith.constant 0 : index
    %c0_232 = arith.constant 0 : index
    %543 = vector.load %arg25[%c0_231, %c0_232] : memref<2x32xf32, #tpu.memory_space<vmem>>, vector<1x32xf32>
    tpu.vector_store %arg25[%c0_231, %c0_232], %542 {strides = array<i32>} : memref<2x32xf32, #tpu.memory_space<vmem>>, vector<1x32xf32>,
    %544 = vector.extract_strided_slice %541 {offsets = [8, 0], sizes = [1, 32], strides = [1, 1]} : vector<16x32xf32> to vector<1x32xf32>
    %c1_233 = arith.constant 1 : index
    %c0_234 = arith.constant 0 : index
    %545 = vector.load %arg25[%c1_233, %c0_234] : memref<2x32xf32, #tpu.memory_space<vmem>>, vector<1x32xf32>
    tpu.vector_store %arg25[%c1_233, %c0_234], %544 {strides = array<i32>} : memref<2x32xf32, #tpu.memory_space<vmem>>, vector<1x32xf32>,
    %c0_235 = arith.constant 0 : index
    %c0_236 = arith.constant 0 : index
    %546 = vector.load %arg25[%c0_235, %c0_236] : memref<2x32xf32, #tpu.memory_space<vmem>>, vector<2x32xf32>
    %c0_237 = arith.constant 0 : index
    %c0_238 = arith.constant 0 : index
    %547 = vector.load %arg18[%c0_237, %c0_238] : memref<32x32xf32, #tpu.memory_space<vmem>>, vector<32x32xf32>
    %cst_239 = arith.constant dense<0.000000e+00> : vector<2x32xf32>
    %548 = tpu.matmul %546, %547, %cst_239 {dimension_numbers = #tpu.dot_dimension_numbers<[1], [0], [0], [1], [0, 0, 1, 1], [], []>} : vector<2x32xf32>, vector<32x32xf32>, vector<2x32xf32> -> vector<2x32xf32>
    %c0_240 = arith.constant 0 : index
    %c0_241 = arith.constant 0 : index
    %549 = vector.load %arg19[%c0_240, %c0_241] : memref<1x32xf32, #tpu.memory_space<vmem>>, vector<1x32xf32>
    %550 = vector.broadcast %549 : vector<1x32xf32> to vector<2x32xf32>
    %551 = arith.addf %548, %550 : vector<2x32xf32>
    %552 = math.tanh %551 : vector<2x32xf32>
    %c0_242 = arith.constant 0 : index
    %c0_243 = arith.constant 0 : index
    %553 = vector.load %arg20[%c0_242, %c0_243] : memref<32x2xf32, #tpu.memory_space<vmem>>, vector<32x2xf32>
    %cst_244 = arith.constant dense<0.000000e+00> : vector<2x2xf32>
    %554 = tpu.matmul %552, %553, %cst_244 {dimension_numbers = #tpu.dot_dimension_numbers<[1], [0], [0], [1], [0, 0, 1, 1], [], []>} : vector<2x32xf32>, vector<32x2xf32>, vector<2x2xf32> -> vector<2x2xf32>
    %c0_245 = arith.constant 0 : index
    %c0_246 = arith.constant 0 : index
    %555 = vector.load %arg21[%c0_245, %c0_246] : memref<1x2xf32, #tpu.memory_space<vmem>>, vector<1x2xf32>
    %556 = vector.broadcast %555 : vector<1x2xf32> to vector<2x2xf32>
    %557 = arith.addf %554, %556 : vector<2x2xf32>
    %c0_247 = arith.constant 0 : index
    %c0_248 = arith.constant 0 : index
    %558 = vector.load %arg22[%c0_247, %c0_248] : memref<2x2xf32, #tpu.memory_space<vmem>>, vector<2x2xf32>
    tpu.vector_store %arg22[%c0_247, %c0_248], %557 {strides = array<i32>} : memref<2x2xf32, #tpu.memory_space<vmem>>, vector<2x2xf32>,
    %cst_249 = arith.constant dense<0xFF800000> : vector<2xf32>
    %559 = vector.multi_reduction <maximumf>, %557, %cst_249 [1] : vector<2x2xf32> to vector<2xf32>
    %560 = vector.shape_cast %559 : vector<2xf32> to vector<2x1xf32>
    %561 = vector.broadcast %560 : vector<2x1xf32> to vector<2x2xf32>
    %562 = arith.subf %557, %561 : vector<2x2xf32>
    %563 = math.exp %562 : vector<2x2xf32>
    %cst_250 = arith.constant dense<0.000000e+00> : vector<2xf32>
    %564 = vector.multi_reduction <add>, %563, %cst_250 [1] : vector<2x2xf32> to vector<2xf32>
    %565 = vector.shape_cast %564 : vector<2xf32> to vector<2x1xf32>
    %566 = math.log %565 : vector<2x1xf32>
    %567 = arith.addf %566, %560 : vector<2x1xf32>
    %c0_251 = arith.constant 0 : index
    %c0_252 = arith.constant 0 : index
    %568 = vector.load %arg3[%c0_251, %c0_252] : memref<2x2xf32, #tpu.memory_space<vmem>>, vector<2x2xf32>
    %569 = arith.mulf %568, %557 : vector<2x2xf32>
    %cst_253 = arith.constant dense<0.000000e+00> : vector<2xf32>
    %570 = vector.multi_reduction <add>, %569, %cst_253 [1] : vector<2x2xf32> to vector<2xf32>
    %571 = vector.shape_cast %570 : vector<2xf32> to vector<2x1xf32>
    %572 = arith.subf %567, %571 : vector<2x1xf32>
    %cst_254 = arith.constant dense<0.000000e+00> : vector<1xf32>
    %573 = vector.multi_reduction <add>, %572, %cst_254 [0] : vector<2x1xf32> to vector<1xf32>
    %574 = vector.shape_cast %573 : vector<1xf32> to vector<1x1xf32>
    %cst_255 = arith.constant 2.000000e+00 : f32
    %575 = vector.broadcast %cst_255 : f32 to vector<1x1xf32>
    %576 = arith.divf %574, %575 : vector<1x1xf32>
    %c0_256 = arith.constant 0 : index
    %c0_257 = arith.constant 0 : index
    %577 = vector.load %arg23[%c0_256, %c0_257] : memref<1x1xf32, #tpu.memory_space<vmem>>, vector<1x1xf32>
    tpu.vector_store %arg23[%c0_256, %c0_257], %576 {strides = array<i32>} : memref<1x1xf32, #tpu.memory_space<vmem>>, vector<1x1xf32>,
    return
  }
  func.func @transform_0(%arg0: i32) -> (i32, i32) {
    %c0_i32 = arith.constant 0 : i32
    %c0_i32_0 = arith.constant 0 : i32
    %c0_i32_1 = arith.constant 0 : i32
    return %c0_i32, %c0_i32_0 : i32, i32
  }
  func.func @transform_1(%arg0: i32) -> (i32, i32) {
    %c0_i32 = arith.constant 0 : i32
    %c0_i32_0 = arith.constant 0 : i32
    %c0_i32_1 = arith.constant 0 : i32
    return %c0_i32, %c0_i32_0 : i32, i32
  }
  func.func @transform_2(%arg0: i32) -> (i32, i32) {
    %c0_i32 = arith.constant 0 : i32
    %c0_i32_0 = arith.constant 0 : i32
    %c0_i32_1 = arith.constant 0 : i32
    return %c0_i32, %c0_i32_0 : i32, i32
  }
  func.func @transform_3(%arg0: i32) -> (i32, i32) {
    %c0_i32 = arith.constant 0 : i32
    %c0_i32_0 = arith.constant 0 : i32
    %c0_i32_1 = arith.constant 0 : i32
    return %c0_i32, %c0_i32_0 : i32, i32
  }
  func.func @transform_4(%arg0: i32) -> (i32, i32) {
    %c0_i32 = arith.constant 0 : i32
    %c0_i32_0 = arith.constant 0 : i32
    %c0_i32_1 = arith.constant 0 : i32
    return %c0_i32, %c0_i32_0 : i32, i32
  }
  func.func @transform_5(%arg0: i32) -> (i32, i32, i32) {
    %c0_i32 = arith.constant 0 : i32
    %c0_i32_0 = arith.constant 0 : i32
    %c0_i32_1 = arith.constant 0 : i32
    %c0_i32_2 = arith.constant 0 : i32
    return %c0_i32, %c0_i32_0, %c0_i32_1 : i32, i32, i32
  }
  func.func @transform_6(%arg0: i32) -> (i32, i32, i32) {
    %c0_i32 = arith.constant 0 : i32
    %c0_i32_0 = arith.constant 0 : i32
    %c0_i32_1 = arith.constant 0 : i32
    %c0_i32_2 = arith.constant 0 : i32
    return %c0_i32, %c0_i32_0, %c0_i32_1 : i32, i32, i32
  }
  func.func @transform_7(%arg0: i32) -> (i32, i32, i32) {
    %c0_i32 = arith.constant 0 : i32
    %c0_i32_0 = arith.constant 0 : i32
    %c0_i32_1 = arith.constant 0 : i32
    %c0_i32_2 = arith.constant 0 : i32
    return %c0_i32, %c0_i32_0, %c0_i32_1 : i32, i32, i32
  }
  func.func @transform_8(%arg0: i32) -> (i32, i32, i32) {
    %c0_i32 = arith.constant 0 : i32
    %c0_i32_0 = arith.constant 0 : i32
    %c0_i32_1 = arith.constant 0 : i32
    %c0_i32_2 = arith.constant 0 : i32
    return %c0_i32, %c0_i32_0, %c0_i32_1 : i32, i32, i32
  }
  func.func @transform_9(%arg0: i32) -> (i32, i32, i32) {
    %c0_i32 = arith.constant 0 : i32
    %c0_i32_0 = arith.constant 0 : i32
    %c0_i32_1 = arith.constant 0 : i32
    %c0_i32_2 = arith.constant 0 : i32
    return %c0_i32, %c0_i32_0, %c0_i32_1 : i32, i32, i32
  }
  func.func @transform_10(%arg0: i32) -> (i32, i32, i32) {
    %c0_i32 = arith.constant 0 : i32
    %c0_i32_0 = arith.constant 0 : i32
    %c0_i32_1 = arith.constant 0 : i32
    %c0_i32_2 = arith.constant 0 : i32
    return %c0_i32, %c0_i32_0, %c0_i32_1 : i32, i32, i32
  }
  func.func @transform_11(%arg0: i32) -> (i32, i32, i32) {
    %c0_i32 = arith.constant 0 : i32
    %c0_i32_0 = arith.constant 0 : i32
    %c0_i32_1 = arith.constant 0 : i32
    %c0_i32_2 = arith.constant 0 : i32
    return %c0_i32, %c0_i32_0, %c0_i32_1 : i32, i32, i32
  }
  func.func @transform_12(%arg0: i32) -> (i32, i32, i32) {
    %c0_i32 = arith.constant 0 : i32
    %c0_i32_0 = arith.constant 0 : i32
    %c0_i32_1 = arith.constant 0 : i32
    %c0_i32_2 = arith.constant 0 : i32
    return %c0_i32, %c0_i32_0, %c0_i32_1 : i32, i32, i32
  }
  func.func @transform_13(%arg0: i32) -> (i32, i32, i32) {
    %c0_i32 = arith.constant 0 : i32
    %c0_i32_0 = arith.constant 0 : i32
    %c0_i32_1 = arith.constant 0 : i32
    %c0_i32_2 = arith.constant 0 : i32
    return %c0_i32, %c0_i32_0, %c0_i32_1 : i32, i32, i32
  }
  func.func @transform_14(%arg0: i32) -> (i32, i32, i32) {
    %c0_i32 = arith.constant 0 : i32
    %c0_i32_0 = arith.constant 0 : i32
    %c0_i32_1 = arith.constant 0 : i32
    %c0_i32_2 = arith.constant 0 : i32
    return %c0_i32, %c0_i32_0, %c0_i32_1 : i32, i32, i32
  }
  func.func @transform_15(%arg0: i32) -> (i32, i32, i32) {
    %c0_i32 = arith.constant 0 : i32
    %c0_i32_0 = arith.constant 0 : i32
    %c0_i32_1 = arith.constant 0 : i32
    %c0_i32_2 = arith.constant 0 : i32
    return %c0_i32, %c0_i32_0, %c0_i32_1 : i32, i32, i32
  }
  func.func @transform_16(%arg0: i32) -> (i32, i32, i32) {
    %c0_i32 = arith.constant 0 : i32
    %c0_i32_0 = arith.constant 0 : i32
    %c0_i32_1 = arith.constant 0 : i32
    %c0_i32_2 = arith.constant 0 : i32
    return %c0_i32, %c0_i32_0, %c0_i32_1 : i32, i32, i32
  }
  func.func @transform_17(%arg0: i32) -> (i32, i32) {
    %c0_i32 = arith.constant 0 : i32
    %c0_i32_0 = arith.constant 0 : i32
    %c0_i32_1 = arith.constant 0 : i32
    return %c0_i32, %c0_i32_0 : i32, i32
  }
  func.func @transform_18(%arg0: i32) -> (i32, i32) {
    %c0_i32 = arith.constant 0 : i32
    %c0_i32_0 = arith.constant 0 : i32
    %c0_i32_1 = arith.constant 0 : i32
    return %c0_i32, %c0_i32_0 : i32, i32
  }
  func.func @transform_19(%arg0: i32) -> (i32, i32) {
    %c0_i32 = arith.constant 0 : i32
    %c0_i32_0 = arith.constant 0 : i32
    %c0_i32_1 = arith.constant 0 : i32
    return %c0_i32, %c0_i32_0 : i32, i32
  }
  func.func @transform_20(%arg0: i32) -> (i32, i32) {
    %c0_i32 = arith.constant 0 : i32
    %c0_i32_0 = arith.constant 0 : i32
    %c0_i32_1 = arith.constant 0 : i32
    return %c0_i32, %c0_i32_0 : i32, i32
  }
  func.func @transform_21(%arg0: i32) -> (i32, i32) {
    %c0_i32 = arith.constant 0 : i32
    %c0_i32_0 = arith.constant 0 : i32
    %c0_i32_1 = arith.constant 0 : i32
    return %c0_i32, %c0_i32_0 : i32, i32
  }
  func.func @transform_22(%arg0: i32) -> (i32, i32) {
    %c0_i32 = arith.constant 0 : i32
    %c0_i32_0 = arith.constant 0 : i32
    %c0_i32_1 = arith.constant 0 : i32
    return %c0_i32, %c0_i32_0 : i32, i32
  }
}

</mosaic_0001>

<llo_original>
// kernel: roberta_forward.1
$region0: #{roberta_forward.1}
  #allocation0 [shape = 'u32[]', space=smem, size = 0x4, offset = 0x4, fixed_abs, tag = 'smem constant byte address 0x4 - core index']
  #allocation1 [shape = 'u32[72,128]{1,0:T(1,128)}', space=vmem, size = 0x9000, scoped, tag = 'internal scratch']
  #allocation2 [shape = 'f32[16,32]{1,0:T(8,128)}', space=vmem, size = 0x2000, scoped, tag = 'scratch operand']
  #allocation3 [shape = 'f32[2,32]{1,0:T(2,128)}', space=vmem, size = 0x400, scoped, tag = 'scratch operand']
  %s0 = inlined_call_operand.vmem [shape: f32[16,32], index: 0, kind: input, shape index: {}]
  %s1 = inlined_call_operand.vmem [shape: f32[2,8], index: 1, kind: input, shape index: {}]
  %s2 = inlined_call_operand.vmem [shape: f32[2,2], index: 2, kind: input, shape index: {}]
  %s3 = inlined_call_operand.vmem [shape: f32[1,32], index: 3, kind: input, shape index: {}]
  %s4 = inlined_call_operand.vmem [shape: f32[1,32], index: 4, kind: input, shape index: {}]
  %s5 = inlined_call_operand.vmem [shape: f32[2,32,96], index: 5, kind: input, shape index: {}]
  %s6 = inlined_call_operand.vmem [shape: f32[2,1,96], index: 6, kind: input, shape index: {}]
  %s7 = inlined_call_operand.vmem [shape: f32[2,32,32], index: 7, kind: input, shape index: {}]
  %s8 = inlined_call_operand.vmem [shape: f32[2,1,32], index: 8, kind: input, shape index: {}]
  %s9 = inlined_call_operand.vmem [shape: f32[2,1,32], index: 9, kind: input, shape index: {}]
  %s10 = inlined_call_operand.vmem [shape: f32[2,1,32], index: 10, kind: input, shape index: {}]
  %s11 = inlined_call_operand.vmem [shape: f32[2,32,64], index: 11, kind: input, shape index: {}]
  %s12 = inlined_call_operand.vmem [shape: f32[2,1,64], index: 12, kind: input, shape index: {}]
  %s13 = inlined_call_operand.vmem [shape: f32[2,64,32], index: 13, kind: input, shape index: {}]
  %s14 = inlined_call_operand.vmem [shape: f32[2,1,32], index: 14, kind: input, shape index: {}]
  %s15 = inlined_call_operand.vmem [shape: f32[2,1,32], index: 15, kind: input, shape index: {}]
  %s16 = inlined_call_operand.vmem [shape: f32[2,1,32], index: 16, kind: input, shape index: {}]
  %s17 = inlined_call_operand.vmem [shape: f32[32,32], index: 17, kind: input, shape index: {}]
  %s18 = inlined_call_operand.vmem [shape: f32[1,32], index: 18, kind: input, shape index: {}]
  %s19 = inlined_call_operand.vmem [shape: f32[32,2], index: 19, kind: input, shape index: {}]
  %s20 = inlined_call_operand.vmem [shape: f32[1,2], index: 20, kind: input, shape index: {}]
  %s21 = inlined_call_operand.hbm [shape: f32[2,2], index: 21, kind: output, shape index: {0}]
  %s22 = inlined_call_operand.hbm [shape: f32[1,1], index: 22, kind: output, shape index: {1}]
  %23 = xla_tuple %s21, %s22
  %s24 = sld [smem:[#allocation0]]
  $region102: #{roberta_forward.1} parent=0
    _
  %s26 = ssub.s32 1, %s24
  %s27 = scalar_select 0, %s26, %s24
  $region1: #{roberta_forward.1} parent=0
    #allocation4 [shape = 'u8[1024]{0}', space=vmem, size = 0x400, scoped, tag = 'output window, operand 0, single buffered']
    #allocation5 [shape = 's32[1]{0}', space=sflag, size = 0x4, scoped, tag = 'scoped memory for roberta_forward.1']
    #allocation6 [shape = 'u8[512]{0}', space=vmem, size = 0x400, scoped, tag = 'output window, operand 1, single buffered']
    #allocation7 [shape = 's32[1]{0}', space=sflag, size = 0x4, scoped, tag = 'scoped memory for roberta_forward.1']
    %28 = vsyncpa [#allocation5], 0
    %29 = vsyncpa [#allocation7], 0
    // Predicated region
    $region2: #{roberta_forward.1} parent=1 // pred_check
      _
    $region3: #{roberta_forward.1} parent=1 // pred_check_branch
      %31 = sbr.rel (0) target = $region5
    $region4: #{roberta_forward.1} parent=1 // pred_region
      _
    $region5: #{roberta_forward.1} parent=1 // pred_fallthru
      _
    // Predicated region
    $region6: #{roberta_forward.1} parent=1 // pred_check
      _
    $region7: #{roberta_forward.1} parent=1 // pred_check_branch
      %33 = sbr.rel (0) target = $region9
    $region8: #{roberta_forward.1} parent=1 // pred_region
      _
    $region9: #{roberta_forward.1} parent=1 // pred_fallthru
      _
    // Predicated region
    $region10: #{roberta_forward.1} parent=1 // pred_check
      _
    $region11: #{roberta_forward.1} parent=1 // pred_check_branch
      %35 = sbr.rel (0) target = $region13
    $region12: #{roberta_forward.1} parent=1 // pred_region
      _
    $region13: #{roberta_forward.1} parent=1 // pred_fallthru
      _
    // Predicated region
    $region14: #{roberta_forward.1} parent=1 // pred_check
      _
    $region15: #{roberta_forward.1} parent=1 // pred_check_branch
      %37 = sbr.rel (0) target = $region17
    $region16: #{roberta_forward.1} parent=1 // pred_region
      _
    $region17: #{roberta_forward.1} parent=1 // pred_fallthru
      _
    // Predicated region
    $region18: #{roberta_forward.1} parent=1 // pred_check
      _
    $region19: #{roberta_forward.1} parent=1 // pred_check_branch
      %39 = sbr.rel (0) target = $region21
    $region20: #{roberta_forward.1} parent=1 // pred_region
      _
    $region21: #{roberta_forward.1} parent=1 // pred_fallthru
      _
    // Predicated region
    $region22: #{roberta_forward.1} parent=1 // pred_check
      _
    $region23: #{roberta_forward.1} parent=1 // pred_check_branch
      %41 = sbr.rel (0) target = $region25
    $region24: #{roberta_forward.1} parent=1 // pred_region
      _
    $region25: #{roberta_forward.1} parent=1 // pred_fallthru
      _
    // Predicated region
    $region26: #{roberta_forward.1} parent=1 // pred_check
      _
    $region27: #{roberta_forward.1} parent=1 // pred_check_branch
      %43 = sbr.rel (0) target = $region29
    $region28: #{roberta_forward.1} parent=1 // pred_region
      _
    $region29: #{roberta_forward.1} parent=1 // pred_fallthru
      _
    // Predicated region
    $region30: #{roberta_forward.1} parent=1 // pred_check
      _
    $region31: #{roberta_forward.1} parent=1 // pred_check_branch
      %45 = sbr.rel (0) target = $region33
    $region32: #{roberta_forward.1} parent=1 // pred_region
      _
    $region33: #{roberta_forward.1} parent=1 // pred_fallthru
      _
    // Predicated region
    $region34: #{roberta_forward.1} parent=1 // pred_check
      _
    $region35: #{roberta_forward.1} parent=1 // pred_check_branch
      %47 = sbr.rel (0) target = $region37
    $region36: #{roberta_forward.1} parent=1 // pred_region
      _
    $region37: #{roberta_forward.1} parent=1 // pred_fallthru
      _
    // Predicated region
    $region38: #{roberta_forward.1} parent=1 // pred_check
      _
    $region39: #{roberta_forward.1} parent=1 // pred_check_branch
      %49 = sbr.rel (0) target = $region41
    $region40: #{roberta_forward.1} parent=1 // pred_region
      _
    $region41: #{roberta_forward.1} parent=1 // pred_fallthru
      _
    // Predicated region
    $region42: #{roberta_forward.1} parent=1 // pred_check
      _
    $region43: #{roberta_forward.1} parent=1 // pred_check_branch
      %51 = sbr.rel (0) target = $region45
    $region44: #{roberta_forward.1} parent=1 // pred_region
      _
    $region45: #{roberta_forward.1} parent=1 // pred_fallthru
      _
    // Predicated region
    $region46: #{roberta_forward.1} parent=1 // pred_check
      _
    $region47: #{roberta_forward.1} parent=1 // pred_check_branch
      %53 = sbr.rel (0) target = $region49
    $region48: #{roberta_forward.1} parent=1 // pred_region
      _
    $region49: #{roberta_forward.1} parent=1 // pred_fallthru
      _
    // Predicated region
    $region50: #{roberta_forward.1} parent=1 // pred_check
      _
    $region51: #{roberta_forward.1} parent=1 // pred_check_branch
      %55 = sbr.rel (0) target = $region53
    $region52: #{roberta_forward.1} parent=1 // pred_region
      _
    $region53: #{roberta_forward.1} parent=1 // pred_fallthru
      _
    // Predicated region
    $region54: #{roberta_forward.1} parent=1 // pred_check
      _
    $region55: #{roberta_forward.1} parent=1 // pred_check_branch
      %57 = sbr.rel (0) target = $region57
    $region56: #{roberta_forward.1} parent=1 // pred_region
      _
    $region57: #{roberta_forward.1} parent=1 // pred_fallthru
      _
    // Predicated region
    $region58: #{roberta_forward.1} parent=1 // pred_check
      _
    $region59: #{roberta_forward.1} parent=1 // pred_check_branch
      %59 = sbr.rel (0) target = $region61
    $region60: #{roberta_forward.1} parent=1 // pred_region
      _
    $region61: #{roberta_forward.1} parent=1 // pred_fallthru
      _
    // Predicated region
    $region62: #{roberta_forward.1} parent=1 // pred_check
      _
    $region63: #{roberta_forward.1} parent=1 // pred_check_branch
      %61 = sbr.rel (0) target = $region65
    $region64: #{roberta_forward.1} parent=1 // pred_region
      _
    $region65: #{roberta_forward.1} parent=1 // pred_fallthru
      _
    // Predicated region
    $region66: #{roberta_forward.1} parent=1 // pred_check
      _
    $region67: #{roberta_forward.1} parent=1 // pred_check_branch
      %63 = sbr.rel (0) target = $region69
    $region68: #{roberta_forward.1} parent=1 // pred_region
      _
    $region69: #{roberta_forward.1} parent=1 // pred_fallthru
      _
    // Predicated region
    $region70: #{roberta_forward.1} parent=1 // pred_check
      _
    $region71: #{roberta_forward.1} parent=1 // pred_check_branch
      %65 = sbr.rel (0) target = $region73
    $region72: #{roberta_forward.1} parent=1 // pred_region
      _
    $region73: #{roberta_forward.1} parent=1 // pred_fallthru
      _
    // Predicated region
    $region74: #{roberta_forward.1} parent=1 // pred_check
      _
    $region75: #{roberta_forward.1} parent=1 // pred_check_branch
      %67 = sbr.rel (0) target = $region77
    $region76: #{roberta_forward.1} parent=1 // pred_region
      _
    $region77: #{roberta_forward.1} parent=1 // pred_fallthru
      _
    // Predicated region
    $region78: #{roberta_forward.1} parent=1 // pred_check
      _
    $region79: #{roberta_forward.1} parent=1 // pred_check_branch
      %69 = sbr.rel (0) target = $region81
    $region80: #{roberta_forward.1} parent=1 // pred_region
      _
    $region81: #{roberta_forward.1} parent=1 // pred_fallthru
      _
    // Predicated region
    $region82: #{roberta_forward.1} parent=1 // pred_check
      _
    $region83: #{roberta_forward.1} parent=1 // pred_check_branch
      %71 = sbr.rel (0) target = $region85
    $region84: #{roberta_forward.1} parent=1 // pred_region
      _
    $region85: #{roberta_forward.1} parent=1 // pred_fallthru
      _
    %v72 = vld [vmem:[%s0] sm:$0xff]
    %v73 = vld [vmem:[%s0 + $0x8] sm:$0xff]
    %v74 = vld [vmem:[%s3] sm:$0x1]
    %v75 = vld [vmem:[%s4] sm:$0x1]
    %vm76 = vcmask 261120
    %v77 = vsel %vm76, %v72, 0.0
    %78 = vadd.xlane.f32.xlu0 %v77
    %v79 = vpop.xlane.xlu0 %78
    %v80 = vsel %vm76, %v73, 0.0
    %81 = vadd.xlane.f32.xlu0 %v80
    %v82 = vpop.xlane.xlu0 %81
    %v83 = vrcp.pop 32.0
    %v84 = vmul.f32 32.0, %v83
    %v85 = vsub.f32 1.0, %v84
    %v86 = vmul.f32 %v83, %v85
    %v87 = vadd.f32 %v83, %v86
    %vm88 = vweird.f32 %v83
    %v89 = vsel %vm88, %v83, %v87
    %v90 = vmul.f32 %v79, %v89
    %v91 = vmul.f32 %v82, %v89
    %v92 = vsub.f32 %v72, %v90
    %v93 = vsub.f32 %v73, %v91
    %v94 = vmul.f32 %v92, %v92
    %v95 = vmul.f32 %v93, %v93
    %v96 = vsel %vm76, %v94, 0.0
    %97 = vadd.xlane.f32.xlu0 %v96
    %v98 = vpop.xlane.xlu0 %97
    %v99 = vsel %vm76, %v95, 0.0
    %100 = vadd.xlane.f32.xlu0 %v99
    %v101 = vpop.xlane.xlu0 %100
    %v102 = vmul.f32 %v98, %v89
    %v103 = vmul.f32 %v101, %v89
    %v104 = vadd.f32 %v102, 1e-05
    %v105 = vadd.f32 %v103, 1e-05
    %v106 = vrsqrt.pop %v104
    %v107 = vmul.f32 %v106, %v104
    %v108 = vmul.f32 %v107, %v106
    %v109 = vmul.f32 0.5, %v108
    %v110 = vsub.f32 1.5, %v109
    %v111 = vmul.f32 %v106, %v110
    %vm112 = vweird.f32 %v104
    %vm113 = vweird.f32 %v106
    %vm114 = vmor %vm112, %vm113
    %v115 = vsel %vm114, %v106, %v111
    %v116 = vrsqrt.pop %v105
    %v117 = vmul.f32 %v116, %v105
    %v118 = vmul.f32 %v117, %v116
    %v119 = vmul.f32 0.5, %v118
    %v120 = vsub.f32 1.5, %v119
    %v121 = vmul.f32 %v116, %v120
    %vm122 = vweird.f32 %v105
    %vm123 = vweird.f32 %v116
    %vm124 = vmor %vm122, %vm123
    %v125 = vsel %vm124, %v116, %v121
    %v126 = vmul.f32 %v92, %v115
    %v127 = vmul.f32 %v93, %v125
    %v129 = vperm.slane %v74, 0
    %v131 = vmul.f32 %v126, %v129
    %v132 = vmul.f32 %v127, %v129
    %v134 = vperm.slane %v75, 0
    %v136 = vadd.f32 %v131, %v134
    %v137 = vadd.f32 %v132, %v134
    %v138 = vld [vmem:[%s1] sm:$0x3]
    %v139 = vsub.f32 1.0, %v138
    %v140 = vmul.f32 %v139, -3.4028235e+38
    %v141 = vld [vmem:[%s5] sm:$0xff]
    %v142 = vld [vmem:[%s5 + $0x8] sm:$0xff]
    %v143 = vld [vmem:[%s5 + $0x10] sm:$0xff]
    %v144 = vld [vmem:[%s5 + $0x18] sm:$0xff]
    %v145 = vld [vmem:[%s6] sm:$0x1]
    %v147 = vperm.slane %v145, 0
    %v150 = vsel %vm76, %v136, 0
    %v153 = vsel %vm76, %v137, 0
    %155 = vmatpush.msra.mxu0 0.0
    %156 = vmatpush.msra.mxu0 0.0
    %157 = vmatpush.msra.mxu0 0.0
    %158 = vmatpush.msra.mxu0 0.0
    %159 = vmatpush.msra.mxu0 0.0
    %160 = vmatpush.msra.mxu0 0.0
    %161 = vmatpush.msra.mxu0 0.0
    %162 = vmatpush.msra.mxu0 0.0
    %163 = vmatpush.msra.mxu0 0.0
    %164 = vmatpush.msra.mxu0 0.0
    %165 = vmatpush.msra.mxu0 0.0
    %166 = vmatpush.msra.mxu0 0.0
    %167 = vmatpush.msra.mxu0 %v144
    %168 = vmatpush.msra.mxu0 %v143
    %169 = vmatpush.msra.mxu0 %v142
    %170 = vmatpush.msra.mxu0 %v141
    %171 = vmatmul.f32.gmra.mxu0 %v150
    %v172 = vpop.f32.mrf.mxu0
    %v173 = vadd.f32 %v147, %v172
    %174 = vmatmul.f32.gmra.mxu0 %v153
    %v175 = vpop.f32.mrf.mxu0
    %v176 = vadd.f32 %v147, %v175
    %177 = vdwg.mxu0
    %179 = vrot.lane.b32.xlu0 %v173, 96
    %v180 = vpop.permute.xlu0 %179
    %vm181 = vcmask 64512
    %v182 = vsel %vm181, %v173, 0
    %v184 = vsel %vm181, %v180, 0
    %186 = vmatpush.xpose.msra.mxu0 0.0
    %187 = vmatpush.xpose.msra.mxu0 0.0
    %188 = vmatpush.xpose.msra.mxu0 0.0
    %189 = vmatpush.xpose.msra.mxu0 0.0
    %190 = vmatpush.xpose.msra.mxu0 0.0
    %191 = vmatpush.xpose.msra.mxu0 0.0
    %192 = vmatpush.xpose.msra.mxu0 0.0
    %193 = vmatpush.xpose.msra.mxu0 0.0
    %194 = vmatpush.xpose.msra.mxu0 0.0
    %195 = vmatpush.xpose.msra.mxu0 0.0
    %196 = vmatpush.xpose.msra.mxu0 0.0
    %197 = vmatpush.xpose.msra.mxu0 0.0
    %198 = vmatpush.xpose.msra.mxu0 0.0
    %199 = vmatpush.xpose.msra.mxu0 0.0
    %200 = vmatpush.xpose.msra.mxu0 0.0
    %201 = vmatpush.xpose.msra.mxu0 %v184
    %202 = vmatmul.f32.gmra.mxu0 %v182
    %v203 = vpop.f32.mrf.mxu0
    %v204 = vadd.f32 0.0, %v203
    %205 = vdwg.mxu0
    %v206 = vmul.f32 %v204, 0.35355338
    %v207 = vperm.slane %v140, 0
    %v208 = vadd.f32 %v206, %v207
    %v209 = vsel %vm181, %v208, -inf
    %210 = vmax.xlane.f32.xlu0 %v209
    %v211 = vpop.xlane.xlu0 %210
    %v212 = vsub.f32 %v208, %v211
    %v213 = vmul.f32 %v212, 1.442695
    %v214 = vpow.pop %v213
    %v215 = vsel %vm181, %v214, 0.0
    %216 = vadd.xlane.f32.xlu0 %v215
    %v217 = vpop.xlane.xlu0 %216
    %v218 = vrcp.pop %v217
    %v219 = vmul.f32 %v214, %v218
    %220 = vrot.lane.b32.xlu0 %v173, 64
    %v221 = vpop.permute.xlu0 %220
    %v224 = vsel %vm181, %v219, 0
    %226 = vmatpush.msra.mxu0 0.0
    %227 = vmatpush.msra.mxu0 0.0
    %228 = vmatpush.msra.mxu0 0.0
    %229 = vmatpush.msra.mxu0 0.0
    %230 = vmatpush.msra.mxu0 0.0
    %231 = vmatpush.msra.mxu0 0.0
    %232 = vmatpush.msra.mxu0 0.0
    %233 = vmatpush.msra.mxu0 0.0
    %234 = vmatpush.msra.mxu0 0.0
    %235 = vmatpush.msra.mxu0 0.0
    %236 = vmatpush.msra.mxu0 0.0
    %237 = vmatpush.msra.mxu0 0.0
    %238 = vmatpush.msra.mxu0 0.0
    %239 = vmatpush.msra.mxu0 0.0
    %240 = vmatpush.msra.mxu0 0.0
    %241 = vmatpush.msra.mxu0 %v221
    %242 = vmatmul.f32.gmra.mxu0 %v224
    %v243 = vpop.f32.mrf.mxu0
    %v244 = vadd.f32 0.0, %v243
    %245 = vdwg.mxu0
    %246 = vst.msk [vmem:[#allocation2] sm:$0xff] %vm181, %v244
    %247 = vrot.lane.b32.xlu0 %v173, 120
    %v248 = vpop.permute.xlu0 %247
    %249 = vrot.lane.b32.xlu0 %v173, 88
    %v250 = vpop.permute.xlu0 %249
    %v251 = vsel %vm181, %v248, 0
    %v253 = vsel %vm181, %v250, 0
    %255 = vmatpush.xpose.msra.mxu0 0.0
    %256 = vmatpush.xpose.msra.mxu0 0.0
    %257 = vmatpush.xpose.msra.mxu0 0.0
    %258 = vmatpush.xpose.msra.mxu0 0.0
    %259 = vmatpush.xpose.msra.mxu0 0.0
    %260 = vmatpush.xpose.msra.mxu0 0.0
    %261 = vmatpush.xpose.msra.mxu0 0.0
    %262 = vmatpush.xpose.msra.mxu0 0.0
    %263 = vmatpush.xpose.msra.mxu0 0.0
    %264 = vmatpush.xpose.msra.mxu0 0.0
    %265 = vmatpush.xpose.msra.mxu0 0.0
    %266 = vmatpush.xpose.msra.mxu0 0.0
    %267 = vmatpush.xpose.msra.mxu0 0.0
    %268 = vmatpush.xpose.msra.mxu0 0.0
    %269 = vmatpush.xpose.msra.mxu0 0.0
    %270 = vmatpush.xpose.msra.mxu0 %v253
    %271 = vmatmul.f32.gmra.mxu0 %v251
    %v272 = vpop.f32.mrf.mxu0
    %v273 = vadd.f32 0.0, %v272
    %274 = vdwg.mxu0
    %v275 = vmul.f32 %v273, 0.35355338
    %v276 = vadd.f32 %v275, %v207
    %v277 = vsel %vm181, %v276, -inf
    %278 = vmax.xlane.f32.xlu0 %v277
    %v279 = vpop.xlane.xlu0 %278
    %v280 = vsub.f32 %v276, %v279
    %v281 = vmul.f32 %v280, 1.442695
    %v282 = vpow.pop %v281
    %v283 = vsel %vm181, %v282, 0.0
    %284 = vadd.xlane.f32.xlu0 %v283
    %v285 = vpop.xlane.xlu0 %284
    %v286 = vrcp.pop %v285
    %v287 = vmul.f32 %v282, %v286
    %288 = vrot.lane.b32.xlu0 %v173, 56
    %v289 = vpop.permute.xlu0 %288
    %v292 = vsel %vm181, %v287, 0
    %294 = vmatpush.msra.mxu0 0.0
    %295 = vmatpush.msra.mxu0 0.0
    %296 = vmatpush.msra.mxu0 0.0
    %297 = vmatpush.msra.mxu0 0.0
    %298 = vmatpush.msra.mxu0 0.0
    %299 = vmatpush.msra.mxu0 0.0
    %300 = vmatpush.msra.mxu0 0.0
    %301 = vmatpush.msra.mxu0 0.0
    %302 = vmatpush.msra.mxu0 0.0
    %303 = vmatpush.msra.mxu0 0.0
    %304 = vmatpush.msra.mxu0 0.0
    %305 = vmatpush.msra.mxu0 0.0
    %306 = vmatpush.msra.mxu0 0.0
    %307 = vmatpush.msra.mxu0 0.0
    %308 = vmatpush.msra.mxu0 0.0
    %309 = vmatpush.msra.mxu0 %v289
    %310 = vmatmul.f32.gmra.mxu0 %v292
    %v311 = vpop.f32.mrf.mxu0
    %v312 = vadd.f32 0.0, %v311
    %313 = vdwg.mxu0
    %315 = vrot.lane.b32.xlu0 %v312, 8
    %v316 = vpop.permute.xlu0 %315
    %vm318 = vcmask 130112
    %319 = vst.msk [vmem:[#allocation2] sm:$0xff] %vm318, %v316
    %320 = vrot.lane.b32.xlu0 %v173, 112
    %v321 = vpop.permute.xlu0 %320
    %322 = vrot.lane.b32.xlu0 %v173, 80
    %v323 = vpop.permute.xlu0 %322
    %v324 = vsel %vm181, %v321, 0
    %v326 = vsel %vm181, %v323, 0
    %328 = vmatpush.xpose.msra.mxu0 0.0
    %329 = vmatpush.xpose.msra.mxu0 0.0
    %330 = vmatpush.xpose.msra.mxu0 0.0
    %331 = vmatpush.xpose.msra.mxu0 0.0
    %332 = vmatpush.xpose.msra.mxu0 0.0
    %333 = vmatpush.xpose.msra.mxu0 0.0
    %334 = vmatpush.xpose.msra.mxu0 0.0
    %335 = vmatpush.xpose.msra.mxu0 0.0
    %336 = vmatpush.xpose.msra.mxu0 0.0
    %337 = vmatpush.xpose.msra.mxu0 0.0
    %338 = vmatpush.xpose.msra.mxu0 0.0
    %339 = vmatpush.xpose.msra.mxu0 0.0
    %340 = vmatpush.xpose.msra.mxu0 0.0
    %341 = vmatpush.xpose.msra.mxu0 0.0
    %342 = vmatpush.xpose.msra.mxu0 0.0
    %343 = vmatpush.xpose.msra.mxu0 %v326
    %344 = vmatmul.f32.gmra.mxu0 %v324
    %v345 = vpop.f32.mrf.mxu0
    %v346 = vadd.f32 0.0, %v345
    %347 = vdwg.mxu0
    %v348 = vmul.f32 %v346, 0.35355338
    %v349 = vadd.f32 %v348, %v207
    %v350 = vsel %vm181, %v349, -inf
    %351 = vmax.xlane.f32.xlu0 %v350
    %v352 = vpop.xlane.xlu0 %351
    %v353 = vsub.f32 %v349, %v352
    %v354 = vmul.f32 %v353, 1.442695
    %v355 = vpow.pop %v354
    %v356 = vsel %vm181, %v355, 0.0
    %357 = vadd.xlane.f32.xlu0 %v356
    %v358 = vpop.xlane.xlu0 %357
    %v359 = vrcp.pop %v358
    %v360 = vmul.f32 %v355, %v359
    %361 = vrot.lane.b32.xlu0 %v173, 48
    %v362 = vpop.permute.xlu0 %361
    %v365 = vsel %vm181, %v360, 0
    %367 = vmatpush.msra.mxu0 0.0
    %368 = vmatpush.msra.mxu0 0.0
    %369 = vmatpush.msra.mxu0 0.0
    %370 = vmatpush.msra.mxu0 0.0
    %371 = vmatpush.msra.mxu0 0.0
    %372 = vmatpush.msra.mxu0 0.0
    %373 = vmatpush.msra.mxu0 0.0
    %374 = vmatpush.msra.mxu0 0.0
    %375 = vmatpush.msra.mxu0 0.0
    %376 = vmatpush.msra.mxu0 0.0
    %377 = vmatpush.msra.mxu0 0.0
    %378 = vmatpush.msra.mxu0 0.0
    %379 = vmatpush.msra.mxu0 0.0
    %380 = vmatpush.msra.mxu0 0.0
    %381 = vmatpush.msra.mxu0 0.0
    %382 = vmatpush.msra.mxu0 %v362
    %383 = vmatmul.f32.gmra.mxu0 %v365
    %v384 = vpop.f32.mrf.mxu0
    %v385 = vadd.f32 0.0, %v384
    %386 = vdwg.mxu0
    %388 = vrot.lane.b32.xlu0 %v385, 16
    %v389 = vpop.permute.xlu0 %388
    %vm391 = vcmask 195712
    %392 = vst.msk [vmem:[#allocation2] sm:$0xff] %vm391, %v389
    %393 = vrot.lane.b32.xlu0 %v173, 104
    %v394 = vpop.permute.xlu0 %393
    %395 = vrot.lane.b32.xlu0 %v173, 72
    %v396 = vpop.permute.xlu0 %395
    %v397 = vsel %vm181, %v394, 0
    %v399 = vsel %vm181, %v396, 0
    %401 = vmatpush.xpose.msra.mxu0 0.0
    %402 = vmatpush.xpose.msra.mxu0 0.0
    %403 = vmatpush.xpose.msra.mxu0 0.0
    %404 = vmatpush.xpose.msra.mxu0 0.0
    %405 = vmatpush.xpose.msra.mxu0 0.0
    %406 = vmatpush.xpose.msra.mxu0 0.0
    %407 = vmatpush.xpose.msra.mxu0 0.0
    %408 = vmatpush.xpose.msra.mxu0 0.0
    %409 = vmatpush.xpose.msra.mxu0 0.0
    %410 = vmatpush.xpose.msra.mxu0 0.0
    %411 = vmatpush.xpose.msra.mxu0 0.0
    %412 = vmatpush.xpose.msra.mxu0 0.0
    %413 = vmatpush.xpose.msra.mxu0 0.0
    %414 = vmatpush.xpose.msra.mxu0 0.0
    %415 = vmatpush.xpose.msra.mxu0 0.0
    %416 = vmatpush.xpose.msra.mxu0 %v399
    %417 = vmatmul.f32.gmra.mxu0 %v397
    %v418 = vpop.f32.mrf.mxu0
    %v419 = vadd.f32 0.0, %v418
    %420 = vdwg.mxu0
    %v421 = vmul.f32 %v419, 0.35355338
    %v422 = vadd.f32 %v421, %v207
    %v423 = vsel %vm181, %v422, -inf
    %424 = vmax.xlane.f32.xlu0 %v423
    %v425 = vpop.xlane.xlu0 %424
    %v426 = vsub.f32 %v422, %v425
    %v427 = vmul.f32 %v426, 1.442695
    %v428 = vpow.pop %v427
    %v429 = vsel %vm181, %v428, 0.0
    %430 = vadd.xlane.f32.xlu0 %v429
    %v431 = vpop.xlane.xlu0 %430
    %v432 = vrcp.pop %v431
    %v433 = vmul.f32 %v428, %v432
    %434 = vrot.lane.b32.xlu0 %v173, 40
    %v435 = vpop.permute.xlu0 %434
    %v438 = vsel %vm181, %v433, 0
    %440 = vmatpush.msra.mxu0 0.0
    %441 = vmatpush.msra.mxu0 0.0
    %442 = vmatpush.msra.mxu0 0.0
    %443 = vmatpush.msra.mxu0 0.0
    %444 = vmatpush.msra.mxu0 0.0
    %445 = vmatpush.msra.mxu0 0.0
    %446 = vmatpush.msra.mxu0 0.0
    %447 = vmatpush.msra.mxu0 0.0
    %448 = vmatpush.msra.mxu0 0.0
    %449 = vmatpush.msra.mxu0 0.0
    %450 = vmatpush.msra.mxu0 0.0
    %451 = vmatpush.msra.mxu0 0.0
    %452 = vmatpush.msra.mxu0 0.0
    %453 = vmatpush.msra.mxu0 0.0
    %454 = vmatpush.msra.mxu0 0.0
    %455 = vmatpush.msra.mxu0 %v435
    %456 = vmatmul.f32.gmra.mxu0 %v438
    %v457 = vpop.f32.mrf.mxu0
    %v458 = vadd.f32 0.0, %v457
    %459 = vdwg.mxu0
    %461 = vrot.lane.b32.xlu0 %v458, 24
    %v462 = vpop.permute.xlu0 %461
    %vm464 = vcmask 261312
    %465 = vst.msk [vmem:[#allocation2] sm:$0xff] %vm464, %v462
    %467 = vrot.lane.b32.xlu0 %v176, 96
    %v468 = vpop.permute.xlu0 %467
    %v469 = vsel %vm181, %v176, 0
    %v471 = vsel %vm181, %v468, 0
    %473 = vmatpush.xpose.msra.mxu0 0.0
    %474 = vmatpush.xpose.msra.mxu0 0.0
    %475 = vmatpush.xpose.msra.mxu0 0.0
    %476 = vmatpush.xpose.msra.mxu0 0.0
    %477 = vmatpush.xpose.msra.mxu0 0.0
    %478 = vmatpush.xpose.msra.mxu0 0.0
    %479 = vmatpush.xpose.msra.mxu0 0.0
    %480 = vmatpush.xpose.msra.mxu0 0.0
    %481 = vmatpush.xpose.msra.mxu0 0.0
    %482 = vmatpush.xpose.msra.mxu0 0.0
    %483 = vmatpush.xpose.msra.mxu0 0.0
    %484 = vmatpush.xpose.msra.mxu0 0.0
    %485 = vmatpush.xpose.msra.mxu0 0.0
    %486 = vmatpush.xpose.msra.mxu0 0.0
    %487 = vmatpush.xpose.msra.mxu0 0.0
    %488 = vmatpush.xpose.msra.mxu0 %v471
    %489 = vmatmul.f32.gmra.mxu0 %v469
    %v490 = vpop.f32.mrf.mxu0
    %v491 = vadd.f32 0.0, %v490
    %492 = vdwg.mxu0
    %v493 = vmul.f32 %v491, 0.35355338
    %v494 = vperm.slane %v140, 1
    %v495 = vadd.f32 %v493, %v494
    %v496 = vsel %vm181, %v495, -inf
    %497 = vmax.xlane.f32.xlu0 %v496
    %v498 = vpop.xlane.xlu0 %497
    %v499 = vsub.f32 %v495, %v498
    %v500 = vmul.f32 %v499, 1.442695
    %v501 = vpow.pop %v500
    %v502 = vsel %vm181, %v501, 0.0
    %503 = vadd.xlane.f32.xlu0 %v502
    %v504 = vpop.xlane.xlu0 %503
    %v505 = vrcp.pop %v504
    %v506 = vmul.f32 %v501, %v505
    %507 = vrot.lane.b32.xlu0 %v176, 64
    %v508 = vpop.permute.xlu0 %507
    %v511 = vsel %vm181, %v506, 0
    %513 = vmatpush.msra.mxu0 0.0
    %514 = vmatpush.msra.mxu0 0.0
    %515 = vmatpush.msra.mxu0 0.0
    %516 = vmatpush.msra.mxu0 0.0
    %517 = vmatpush.msra.mxu0 0.0
    %518 = vmatpush.msra.mxu0 0.0
    %519 = vmatpush.msra.mxu0 0.0
    %520 = vmatpush.msra.mxu0 0.0
    %521 = vmatpush.msra.mxu0 0.0
    %522 = vmatpush.msra.mxu0 0.0
    %523 = vmatpush.msra.mxu0 0.0
    %524 = vmatpush.msra.mxu0 0.0
    %525 = vmatpush.msra.mxu0 0.0
    %526 = vmatpush.msra.mxu0 0.0
    %527 = vmatpush.msra.mxu0 0.0
    %528 = vmatpush.msra.mxu0 %v508
    %529 = vmatmul.f32.gmra.mxu0 %v511
    %v530 = vpop.f32.mrf.mxu0
    %v531 = vadd.f32 0.0, %v530
    %532 = vdwg.mxu0
    %533 = vst.msk [vmem:[#allocation2 + $0x8] sm:$0xff] %vm181, %v531
    %534 = vrot.lane.b32.xlu0 %v176, 120
    %v535 = vpop.permute.xlu0 %534
    %536 = vrot.lane.b32.xlu0 %v176, 88
    %v537 = vpop.permute.xlu0 %536
    %v538 = vsel %vm181, %v535, 0
    %v540 = vsel %vm181, %v537, 0
    %542 = vmatpush.xpose.msra.mxu0 0.0
    %543 = vmatpush.xpose.msra.mxu0 0.0
    %544 = vmatpush.xpose.msra.mxu0 0.0
    %545 = vmatpush.xpose.msra.mxu0 0.0
    %546 = vmatpush.xpose.msra.mxu0 0.0
    %547 = vmatpush.xpose.msra.mxu0 0.0
    %548 = vmatpush.xpose.msra.mxu0 0.0
    %549 = vmatpush.xpose.msra.mxu0 0.0
    %550 = vmatpush.xpose.msra.mxu0 0.0
    %551 = vmatpush.xpose.msra.mxu0 0.0
    %552 = vmatpush.xpose.msra.mxu0 0.0
    %553 = vmatpush.xpose.msra.mxu0 0.0
    %554 = vmatpush.xpose.msra.mxu0 0.0
    %555 = vmatpush.xpose.msra.mxu0 0.0
    %556 = vmatpush.xpose.msra.mxu0 0.0
    %557 = vmatpush.xpose.msra.mxu0 %v540
    %558 = vmatmul.f32.gmra.mxu0 %v538
    %v559 = vpop.f32.mrf.mxu0
    %v560 = vadd.f32 0.0, %v559
    %561 = vdwg.mxu0
    %v562 = vmul.f32 %v560, 0.35355338
    %v563 = vadd.f32 %v562, %v494
    %v564 = vsel %vm181, %v563, -inf
    %565 = vmax.xlane.f32.xlu0 %v564
    %v566 = vpop.xlane.xlu0 %565
    %v567 = vsub.f32 %v563, %v566
    %v568 = vmul.f32 %v567, 1.442695
    %v569 = vpow.pop %v568
    %v570 = vsel %vm181, %v569, 0.0
    %571 = vadd.xlane.f32.xlu0 %v570
    %v572 = vpop.xlane.xlu0 %571
    %v573 = vrcp.pop %v572
    %v574 = vmul.f32 %v569, %v573
    %575 = vrot.lane.b32.xlu0 %v176, 56
    %v576 = vpop.permute.xlu0 %575
    %v579 = vsel %vm181, %v574, 0
    %581 = vmatpush.msra.mxu0 0.0
    %582 = vmatpush.msra.mxu0 0.0
    %583 = vmatpush.msra.mxu0 0.0
    %584 = vmatpush.msra.mxu0 0.0
    %585 = vmatpush.msra.mxu0 0.0
    %586 = vmatpush.msra.mxu0 0.0
    %587 = vmatpush.msra.mxu0 0.0
    %588 = vmatpush.msra.mxu0 0.0
    %589 = vmatpush.msra.mxu0 0.0
    %590 = vmatpush.msra.mxu0 0.0
    %591 = vmatpush.msra.mxu0 0.0
    %592 = vmatpush.msra.mxu0 0.0
    %593 = vmatpush.msra.mxu0 0.0
    %594 = vmatpush.msra.mxu0 0.0
    %595 = vmatpush.msra.mxu0 0.0
    %596 = vmatpush.msra.mxu0 %v576
    %597 = vmatmul.f32.gmra.mxu0 %v579
    %v598 = vpop.f32.mrf.mxu0
    %v599 = vadd.f32 0.0, %v598
    %600 = vdwg.mxu0
    %602 = vrot.lane.b32.xlu0 %v599, 8
    %v603 = vpop.permute.xlu0 %602
    %605 = vst.msk [vmem:[#allocation2 + $0x8] sm:$0xff] %vm318, %v603
    %606 = vrot.lane.b32.xlu0 %v176, 112
    %v607 = vpop.permute.xlu0 %606
    %608 = vrot.lane.b32.xlu0 %v176, 80
    %v609 = vpop.permute.xlu0 %608
    %v610 = vsel %vm181, %v607, 0
    %v612 = vsel %vm181, %v609, 0
    %614 = vmatpush.xpose.msra.mxu0 0.0
    %615 = vmatpush.xpose.msra.mxu0 0.0
    %616 = vmatpush.xpose.msra.mxu0 0.0
    %617 = vmatpush.xpose.msra.mxu0 0.0
    %618 = vmatpush.xpose.msra.mxu0 0.0
    %619 = vmatpush.xpose.msra.mxu0 0.0
    %620 = vmatpush.xpose.msra.mxu0 0.0
    %621 = vmatpush.xpose.msra.mxu0 0.0
    %622 = vmatpush.xpose.msra.mxu0 0.0
    %623 = vmatpush.xpose.msra.mxu0 0.0
    %624 = vmatpush.xpose.msra.mxu0 0.0
    %625 = vmatpush.xpose.msra.mxu0 0.0
    %626 = vmatpush.xpose.msra.mxu0 0.0
    %627 = vmatpush.xpose.msra.mxu0 0.0
    %628 = vmatpush.xpose.msra.mxu0 0.0
    %629 = vmatpush.xpose.msra.mxu0 %v612
    %630 = vmatmul.f32.gmra.mxu0 %v610
    %v631 = vpop.f32.mrf.mxu0
    %v632 = vadd.f32 0.0, %v631
    %633 = vdwg.mxu0
    %v634 = vmul.f32 %v632, 0.35355338
    %v635 = vadd.f32 %v634, %v494
    %v636 = vsel %vm181, %v635, -inf
    %637 = vmax.xlane.f32.xlu0 %v636
    %v638 = vpop.xlane.xlu0 %637
    %v639 = vsub.f32 %v635, %v638
    %v640 = vmul.f32 %v639, 1.442695
    %v641 = vpow.pop %v640
    %v642 = vsel %vm181, %v641, 0.0
    %643 = vadd.xlane.f32.xlu0 %v642
    %v644 = vpop.xlane.xlu0 %643
    %v645 = vrcp.pop %v644
    %v646 = vmul.f32 %v641, %v645
    %647 = vrot.lane.b32.xlu0 %v176, 48
    %v648 = vpop.permute.xlu0 %647
    %v651 = vsel %vm181, %v646, 0
    %653 = vmatpush.msra.mxu0 0.0
    %654 = vmatpush.msra.mxu0 0.0
    %655 = vmatpush.msra.mxu0 0.0
    %656 = vmatpush.msra.mxu0 0.0
    %657 = vmatpush.msra.mxu0 0.0
    %658 = vmatpush.msra.mxu0 0.0
    %659 = vmatpush.msra.mxu0 0.0
    %660 = vmatpush.msra.mxu0 0.0
    %661 = vmatpush.msra.mxu0 0.0
    %662 = vmatpush.msra.mxu0 0.0
    %663 = vmatpush.msra.mxu0 0.0
    %664 = vmatpush.msra.mxu0 0.0
    %665 = vmatpush.msra.mxu0 0.0
    %666 = vmatpush.msra.mxu0 0.0
    %667 = vmatpush.msra.mxu0 0.0
    %668 = vmatpush.msra.mxu0 %v648
    %669 = vmatmul.f32.gmra.mxu0 %v651
    %v670 = vpop.f32.mrf.mxu0
    %v671 = vadd.f32 0.0, %v670
    %672 = vdwg.mxu0
    %674 = vrot.lane.b32.xlu0 %v671, 16
    %v675 = vpop.permute.xlu0 %674
    %677 = vst.msk [vmem:[#allocation2 + $0x8] sm:$0xff] %vm391, %v675
    %678 = vrot.lane.b32.xlu0 %v176, 104
    %v679 = vpop.permute.xlu0 %678
    %680 = vrot.lane.b32.xlu0 %v176, 72
    %v681 = vpop.permute.xlu0 %680
    %v682 = vsel %vm181, %v679, 0
    %v684 = vsel %vm181, %v681, 0
    %686 = vmatpush.xpose.msra.mxu0 0.0
    %687 = vmatpush.xpose.msra.mxu0 0.0
    %688 = vmatpush.xpose.msra.mxu0 0.0
    %689 = vmatpush.xpose.msra.mxu0 0.0
    %690 = vmatpush.xpose.msra.mxu0 0.0
    %691 = vmatpush.xpose.msra.mxu0 0.0
    %692 = vmatpush.xpose.msra.mxu0 0.0
    %693 = vmatpush.xpose.msra.mxu0 0.0
    %694 = vmatpush.xpose.msra.mxu0 0.0
    %695 = vmatpush.xpose.msra.mxu0 0.0
    %696 = vmatpush.xpose.msra.mxu0 0.0
    %697 = vmatpush.xpose.msra.mxu0 0.0
    %698 = vmatpush.xpose.msra.mxu0 0.0
    %699 = vmatpush.xpose.msra.mxu0 0.0
    %700 = vmatpush.xpose.msra.mxu0 0.0
    %701 = vmatpush.xpose.msra.mxu0 %v684
    %702 = vmatmul.f32.gmra.mxu0 %v682
    %v703 = vpop.f32.mrf.mxu0
    %v704 = vadd.f32 0.0, %v703
    %705 = vdwg.mxu0
    %v706 = vmul.f32 %v704, 0.35355338
    %v707 = vadd.f32 %v706, %v494
    %v708 = vsel %vm181, %v707, -inf
    %709 = vmax.xlane.f32.xlu0 %v708
    %v710 = vpop.xlane.xlu0 %709
    %v711 = vsub.f32 %v707, %v710
    %v712 = vmul.f32 %v711, 1.442695
    %v713 = vpow.pop %v712
    %v714 = vsel %vm181, %v713, 0.0
    %715 = vadd.xlane.f32.xlu0 %v714
    %v716 = vpop.xlane.xlu0 %715
    %v717 = vrcp.pop %v716
    %v718 = vmul.f32 %v713, %v717
    %719 = vrot.lane.b32.xlu0 %v176, 40
    %v720 = vpop.permute.xlu0 %719
    %v723 = vsel %vm181, %v718, 0
    %725 = vmatpush.msra.mxu0 0.0
    %726 = vmatpush.msra.mxu0 0.0
    %727 = vmatpush.msra.mxu0 0.0
    %728 = vmatpush.msra.mxu0 0.0
    %729 = vmatpush.msra.mxu0 0.0
    %730 = vmatpush.msra.mxu0 0.0
    %731 = vmatpush.msra.mxu0 0.0
    %732 = vmatpush.msra.mxu0 0.0
    %733 = vmatpush.msra.mxu0 0.0
    %734 = vmatpush.msra.mxu0 0.0
    %735 = vmatpush.msra.mxu0 0.0
    %736 = vmatpush.msra.mxu0 0.0
    %737 = vmatpush.msra.mxu0 0.0
    %738 = vmatpush.msra.mxu0 0.0
    %739 = vmatpush.msra.mxu0 0.0
    %740 = vmatpush.msra.mxu0 %v720
    %741 = vmatmul.f32.gmra.mxu0 %v723
    %v742 = vpop.f32.mrf.mxu0
    %v743 = vadd.f32 0.0, %v742
    %744 = vdwg.mxu0
    %746 = vrot.lane.b32.xlu0 %v743, 24
    %v747 = vpop.permute.xlu0 %746
    %749 = vst.msk [vmem:[#allocation2 + $0x8] sm:$0xff] %vm464, %v747
    %v750 = vld [vmem:[#allocation2] sm:$0xff]
    %v751 = vld [vmem:[#allocation2 + $0x8] sm:$0xff]
    %v752 = vld [vmem:[%s7] sm:$0xff]
    %v753 = vld [vmem:[%s7 + $0x8] sm:$0xff]
    %v754 = vld [vmem:[%s7 + $0x10] sm:$0xff]
    %v755 = vld [vmem:[%s7 + $0x18] sm:$0xff]
    %v756 = vld [vmem:[%s8] sm:$0x1]
    %v758 = vperm.slane %v756, 0
    %v761 = vsel %vm76, %v750, 0
    %v764 = vsel %vm76, %v751, 0
    %766 = vmatpush.msra.mxu0 0.0
    %767 = vmatpush.msra.mxu0 0.0
    %768 = vmatpush.msra.mxu0 0.0
    %769 = vmatpush.msra.mxu0 0.0
    %770 = vmatpush.msra.mxu0 0.0
    %771 = vmatpush.msra.mxu0 0.0
    %772 = vmatpush.msra.mxu0 0.0
    %773 = vmatpush.msra.mxu0 0.0
    %774 = vmatpush.msra.mxu0 0.0
    %775 = vmatpush.msra.mxu0 0.0
    %776 = vmatpush.msra.mxu0 0.0
    %777 = vmatpush.msra.mxu0 0.0
    %778 = vmatpush.msra.mxu0 %v755
    %779 = vmatpush.msra.mxu0 %v754
    %780 = vmatpush.msra.mxu0 %v753
    %781 = vmatpush.msra.mxu0 %v752
    %782 = vmatmul.f32.gmra.mxu0 %v761
    %v783 = vpop.f32.mrf.mxu0
    %v784 = vadd.f32 %v758, %v783
    %785 = vmatmul.f32.gmra.mxu0 %v764
    %v786 = vpop.f32.mrf.mxu0
    %v787 = vadd.f32 %v758, %v786
    %788 = vdwg.mxu0
    %v789 = vadd.f32 %v784, %v136
    %v790 = vadd.f32 %v787, %v137
    %v791 = vld [vmem:[%s9] sm:$0x1]
    %v792 = vld [vmem:[%s10] sm:$0x1]
    %v793 = vsel %vm76, %v789, 0.0
    %794 = vadd.xlane.f32.xlu0 %v793
    %v795 = vpop.xlane.xlu0 %794
    %v796 = vsel %vm76, %v790, 0.0
    %797 = vadd.xlane.f32.xlu0 %v796
    %v798 = vpop.xlane.xlu0 %797
    %v799 = vmul.f32 %v795, %v89
    %v800 = vmul.f32 %v798, %v89
    %v801 = vsub.f32 %v789, %v799
    %v802 = vsub.f32 %v790, %v800
    %v803 = vmul.f32 %v801, %v801
    %v804 = vmul.f32 %v802, %v802
    %v805 = vsel %vm76, %v803, 0.0
    %806 = vadd.xlane.f32.xlu0 %v805
    %v807 = vpop.xlane.xlu0 %806
    %v808 = vsel %vm76, %v804, 0.0
    %809 = vadd.xlane.f32.xlu0 %v808
    %v810 = vpop.xlane.xlu0 %809
    %v811 = vmul.f32 %v807, %v89
    %v812 = vmul.f32 %v810, %v89
    %v813 = vadd.f32 %v811, 1e-05
    %v814 = vadd.f32 %v812, 1e-05
    %v815 = vrsqrt.pop %v813
    %v816 = vmul.f32 %v815, %v813
    %v817 = vmul.f32 %v816, %v815
    %v818 = vmul.f32 0.5, %v817
    %v819 = vsub.f32 1.5, %v818
    %v820 = vmul.f32 %v815, %v819
    %vm821 = vweird.f32 %v813
    %vm822 = vweird.f32 %v815
    %vm823 = vmor %vm821, %vm822
    %v824 = vsel %vm823, %v815, %v820
    %v825 = vrsqrt.pop %v814
    %v826 = vmul.f32 %v825, %v814
    %v827 = vmul.f32 %v826, %v825
    %v828 = vmul.f32 0.5, %v827
    %v829 = vsub.f32 1.5, %v828
    %v830 = vmul.f32 %v825, %v829
    %vm831 = vweird.f32 %v814
    %vm832 = vweird.f32 %v825
    %vm833 = vmor %vm831, %vm832
    %v834 = vsel %vm833, %v825, %v830
    %v835 = vmul.f32 %v801, %v824
    %v836 = vmul.f32 %v802, %v834
    %v838 = vperm.slane %v791, 0
    %v840 = vmul.f32 %v835, %v838
    %v841 = vmul.f32 %v836, %v838
    %v843 = vperm.slane %v792, 0
    %v845 = vadd.f32 %v840, %v843
    %v846 = vadd.f32 %v841, %v843
    %v847 = vld [vmem:[%s11] sm:$0xff]
    %v848 = vld [vmem:[%s11 + $0x8] sm:$0xff]
    %v849 = vld [vmem:[%s11 + $0x10] sm:$0xff]
    %v850 = vld [vmem:[%s11 + $0x18] sm:$0xff]
    %v851 = vld [vmem:[%s12] sm:$0x1]
    %v853 = vperm.slane %v851, 0
    %v856 = vsel %vm76, %v845, 0
    %v859 = vsel %vm76, %v846, 0
    %861 = vmatpush.msra.mxu0 0.0
    %862 = vmatpush.msra.mxu0 0.0
    %863 = vmatpush.msra.mxu0 0.0
    %864 = vmatpush.msra.mxu0 0.0
    %865 = vmatpush.msra.mxu0 0.0
    %866 = vmatpush.msra.mxu0 0.0
    %867 = vmatpush.msra.mxu0 0.0
    %868 = vmatpush.msra.mxu0 0.0
    %869 = vmatpush.msra.mxu0 0.0
    %870 = vmatpush.msra.mxu0 0.0
    %871 = vmatpush.msra.mxu0 0.0
    %872 = vmatpush.msra.mxu0 0.0
    %873 = vmatpush.msra.mxu0 %v850
    %874 = vmatpush.msra.mxu0 %v849
    %875 = vmatpush.msra.mxu0 %v848
    %876 = vmatpush.msra.mxu0 %v847
    %877 = vmatmul.f32.gmra.mxu0 %v856
    %v878 = vpop.f32.mrf.mxu0
    %v879 = vadd.f32 %v853, %v878
    %880 = vmatmul.f32.gmra.mxu0 %v859
    %v881 = vpop.f32.mrf.mxu0
    %v882 = vadd.f32 %v853, %v881
    %883 = vdwg.mxu0
    %v884 = vmul.f32 %v879, 0.5
    %v885 = vmul.f32 %v882, 0.5
    %v886 = vmul.f32 %v879, 0.70710677
    %v887 = vmul.f32 %v882, 0.70710677
    %v888 = vmul.f32 %v886, %v886
    %v889 = vmin.f32 16.0, %v888
    %v890 = vmul.f32 %v889, 2.1237322e-06
    %v891 = vadd.f32 %v890, 0.00028619796
    %v892 = vmul.f32 %v889, %v891
    %v893 = vadd.f32 %v892, 0.0036580483
    %v894 = vmul.f32 %v889, %v893
    %v895 = vadd.f32 %v894, 0.05243302
    %v896 = vmul.f32 %v889, %v895
    %v897 = vadd.f32 %v896, 0.18741608
    %v898 = vmul.f32 %v889, %v897
    %v899 = vadd.f32 %v898, 1.1283791
    %v900 = vmul.f32 %v886, %v899
    %v901 = vmul.f32 %v889, 3.8918573e-05
    %v902 = vadd.f32 %v901, 0.001143296
    %v903 = vmul.f32 %v889, %v902
    %v904 = vadd.f32 %v903, 0.014752088
    %v905 = vmul.f32 %v889, %v904
    %v906 = vadd.f32 %v905, 0.112945676
    %v907 = vmul.f32 %v889, %v906
    %v908 = vadd.f32 %v907, 0.4994258
    %v909 = vmul.f32 %v889, %v908
    %v910 = vadd.f32 %v909, 1.0
    %v911 = vrcp.pop %v910
    %v912 = vmul.f32 %v910, %v911
    %v913 = vsub.f32 1.0, %v912
    %v914 = vmul.f32 %v911, %v913
    %v915 = vadd.f32 %v911, %v914
    %vm916 = vweird.f32 %v910
    %vm917 = vweird.f32 %v911
    %vm918 = vmor %vm916, %vm917
    %v919 = vsel %vm918, %v911, %v915
    %v920 = vand.u32 2147483647, %v910
    %vm921 = vcmp.eq.f32.partialorder %v920, 8.507059e+37
    %v922 = vand.u32 %v910, 2147483648
    %v923 = vor.u32 1.1754944e-38, %v922
    %v924 = vsel %vm921, %v923, %v919
    %v925 = vmul.f32 %v900, %v924
    %v926 = vmin.f32 %v925, 1.0
    %v927 = vmax.f32 %v926, -1.0
    %v928 = vmul.f32 %v887, %v887
    %v929 = vmin.f32 16.0, %v928
    %v930 = vmul.f32 %v929, 2.1237322e-06
    %v931 = vadd.f32 %v930, 0.00028619796
    %v932 = vmul.f32 %v929, %v931
    %v933 = vadd.f32 %v932, 0.0036580483
    %v934 = vmul.f32 %v929, %v933
    %v935 = vadd.f32 %v934, 0.05243302
    %v936 = vmul.f32 %v929, %v935
    %v937 = vadd.f32 %v936, 0.18741608
    %v938 = vmul.f32 %v929, %v937
    %v939 = vadd.f32 %v938, 1.1283791
    %v940 = vmul.f32 %v887, %v939
    %v941 = vmul.f32 %v929, 3.8918573e-05
    %v942 = vadd.f32 %v941, 0.001143296
    %v943 = vmul.f32 %v929, %v942
    %v944 = vadd.f32 %v943, 0.014752088
    %v945 = vmul.f32 %v929, %v944
    %v946 = vadd.f32 %v945, 0.112945676
    %v947 = vmul.f32 %v929, %v946
    %v948 = vadd.f32 %v947, 0.4994258
    %v949 = vmul.f32 %v929, %v948
    %v950 = vadd.f32 %v949, 1.0
    %v951 = vrcp.pop %v950
    %v952 = vmul.f32 %v950, %v951
    %v953 = vsub.f32 1.0, %v952
    %v954 = vmul.f32 %v951, %v953
    %v955 = vadd.f32 %v951, %v954
    %vm956 = vweird.f32 %v950
    %vm957 = vweird.f32 %v951
    %vm958 = vmor %vm956, %vm957
    %v959 = vsel %vm958, %v951, %v955
    %v960 = vand.u32 2147483647, %v950
    %vm961 = vcmp.eq.f32.partialorder %v960, 8.507059e+37
    %v962 = vand.u32 %v950, 2147483648
    %v963 = vor.u32 1.1754944e-38, %v962
    %v964 = vsel %vm961, %v963, %v959
    %v965 = vmul.f32 %v940, %v964
    %v966 = vmin.f32 %v965, 1.0
    %v967 = vmax.f32 %v966, -1.0
    %v968 = vadd.f32 %v927, 1.0
    %v969 = vadd.f32 %v967, 1.0
    %v970 = vmul.f32 %v884, %v968
    %v971 = vmul.f32 %v885, %v969
    %v972 = vld [vmem:[%s13] sm:$0xff]
    %v973 = vld [vmem:[%s13 + $0x8] sm:$0xff]
    %v974 = vld [vmem:[%s13 + $0x10] sm:$0xff]
    %v975 = vld [vmem:[%s13 + $0x18] sm:$0xff]
    %v976 = vld [vmem:[%s13 + $0x20] sm:$0xff]
    %v977 = vld [vmem:[%s13 + $0x28] sm:$0xff]
    %v978 = vld [vmem:[%s13 + $0x30] sm:$0xff]
    %v979 = vld [vmem:[%s13 + $0x38] sm:$0xff]
    %v980 = vld [vmem:[%s14] sm:$0x1]
    %v982 = vperm.slane %v980, 0
    %vm984 = vcmask 523264
    %v986 = vsel %vm984, %v970, 0
    %v989 = vsel %vm984, %v971, 0
    %991 = vmatpush.msra.mxu0 0.0
    %992 = vmatpush.msra.mxu0 0.0
    %993 = vmatpush.msra.mxu0 0.0
    %994 = vmatpush.msra.mxu0 0.0
    %995 = vmatpush.msra.mxu0 0.0
    %996 = vmatpush.msra.mxu0 0.0
    %997 = vmatpush.msra.mxu0 0.0
    %998 = vmatpush.msra.mxu0 0.0
    %999 = vmatpush.msra.mxu0 %v979
    %1000 = vmatpush.msra.mxu0 %v978
    %1001 = vmatpush.msra.mxu0 %v977
    %1002 = vmatpush.msra.mxu0 %v976
    %1003 = vmatpush.msra.mxu0 %v975
    %1004 = vmatpush.msra.mxu0 %v974
    %1005 = vmatpush.msra.mxu0 %v973
    %1006 = vmatpush.msra.mxu0 %v972
    %1007 = vmatmul.f32.gmra.mxu0 %v986
    %v1008 = vpop.f32.mrf.mxu0
    %v1009 = vadd.f32 %v982, %v1008
    %1010 = vmatmul.f32.gmra.mxu0 %v989
    %v1011 = vpop.f32.mrf.mxu0
    %v1012 = vadd.f32 %v982, %v1011
    %1013 = vdwg.mxu0
    %v1014 = vadd.f32 %v1009, %v845
    %v1015 = vadd.f32 %v1012, %v846
    %v1016 = vld [vmem:[%s15] sm:$0x1]
    %v1017 = vld [vmem:[%s16] sm:$0x1]
    %v1018 = vsel %vm76, %v1014, 0.0
    %1019 = vadd.xlane.f32.xlu0 %v1018
    %v1020 = vpop.xlane.xlu0 %1019
    %v1021 = vsel %vm76, %v1015, 0.0
    %1022 = vadd.xlane.f32.xlu0 %v1021
    %v1023 = vpop.xlane.xlu0 %1022
    %v1024 = vmul.f32 %v1020, %v89
    %v1025 = vmul.f32 %v1023, %v89
    %v1026 = vsub.f32 %v1014, %v1024
    %v1027 = vsub.f32 %v1015, %v1025
    %v1028 = vmul.f32 %v1026, %v1026
    %v1029 = vmul.f32 %v1027, %v1027
    %v1030 = vsel %vm76, %v1028, 0.0
    %1031 = vadd.xlane.f32.xlu0 %v1030
    %v1032 = vpop.xlane.xlu0 %1031
    %v1033 = vsel %vm76, %v1029, 0.0
    %1034 = vadd.xlane.f32.xlu0 %v1033
    %v1035 = vpop.xlane.xlu0 %1034
    %v1036 = vmul.f32 %v1032, %v89
    %v1037 = vmul.f32 %v1035, %v89
    %v1038 = vadd.f32 %v1036, 1e-05
    %v1039 = vadd.f32 %v1037, 1e-05
    %v1040 = vrsqrt.pop %v1038
    %v1041 = vmul.f32 %v1040, %v1038
    %v1042 = vmul.f32 %v1041, %v1040
    %v1043 = vmul.f32 0.5, %v1042
    %v1044 = vsub.f32 1.5, %v1043
    %v1045 = vmul.f32 %v1040, %v1044
    %vm1046 = vweird.f32 %v1038
    %vm1047 = vweird.f32 %v1040
    %vm1048 = vmor %vm1046, %vm1047
    %v1049 = vsel %vm1048, %v1040, %v1045
    %v1050 = vrsqrt.pop %v1039
    %v1051 = vmul.f32 %v1050, %v1039
    %v1052 = vmul.f32 %v1051, %v1050
    %v1053 = vmul.f32 0.5, %v1052
    %v1054 = vsub.f32 1.5, %v1053
    %v1055 = vmul.f32 %v1050, %v1054
    %vm1056 = vweird.f32 %v1039
    %vm1057 = vweird.f32 %v1050
    %vm1058 = vmor %vm1056, %vm1057
    %v1059 = vsel %vm1058, %v1050, %v1055
    %v1060 = vmul.f32 %v1026, %v1049
    %v1061 = vmul.f32 %v1027, %v1059
    %v1063 = vperm.slane %v1016, 0
    %v1065 = vmul.f32 %v1060, %v1063
    %v1066 = vmul.f32 %v1061, %v1063
    %v1068 = vperm.slane %v1017, 0
    %v1070 = vadd.f32 %v1065, %v1068
    %v1071 = vadd.f32 %v1066, %v1068
    %s1072 = scalar_lea.vmem %s5, 32
    %v1073 = vld [vmem:[%s1072] sm:$0xff]
    %v1074 = vld [vmem:[%s1072 + $0x8] sm:$0xff]
    %v1075 = vld [vmem:[%s1072 + $0x10] sm:$0xff]
    %v1076 = vld [vmem:[%s1072 + $0x18] sm:$0xff]
    %s1077 = scalar_lea.vmem %s6, 1
    %v1078 = vld [vmem:[%s1077] sm:$0x1]
    %v1080 = vperm.slane %v1078, 0
    %v1083 = vsel %vm76, %v1070, 0
    %v1086 = vsel %vm76, %v1071, 0
    %1088 = vmatpush.msra.mxu0 0.0
    %1089 = vmatpush.msra.mxu0 0.0
    %1090 = vmatpush.msra.mxu0 0.0
    %1091 = vmatpush.msra.mxu0 0.0
    %1092 = vmatpush.msra.mxu0 0.0
    %1093 = vmatpush.msra.mxu0 0.0
    %1094 = vmatpush.msra.mxu0 0.0
    %1095 = vmatpush.msra.mxu0 0.0
    %1096 = vmatpush.msra.mxu0 0.0
    %1097 = vmatpush.msra.mxu0 0.0
    %1098 = vmatpush.msra.mxu0 0.0
    %1099 = vmatpush.msra.mxu0 0.0
    %1100 = vmatpush.msra.mxu0 %v1076
    %1101 = vmatpush.msra.mxu0 %v1075
    %1102 = vmatpush.msra.mxu0 %v1074
    %1103 = vmatpush.msra.mxu0 %v1073
    %1104 = vmatmul.f32.gmra.mxu0 %v1083
    %v1105 = vpop.f32.mrf.mxu0
    %v1106 = vadd.f32 %v1080, %v1105
    %1107 = vmatmul.f32.gmra.mxu0 %v1086
    %v1108 = vpop.f32.mrf.mxu0
    %v1109 = vadd.f32 %v1080, %v1108
    %1110 = vdwg.mxu0
    %1112 = vrot.lane.b32.xlu0 %v1106, 96
    %v1113 = vpop.permute.xlu0 %1112
    %v1114 = vsel %vm181, %v1106, 0
    %v1116 = vsel %vm181, %v1113, 0
    %1118 = vmatpush.xpose.msra.mxu0 0.0
    %1119 = vmatpush.xpose.msra.mxu0 0.0
    %1120 = vmatpush.xpose.msra.mxu0 0.0
    %1121 = vmatpush.xpose.msra.mxu0 0.0
    %1122 = vmatpush.xpose.msra.mxu0 0.0
    %1123 = vmatpush.xpose.msra.mxu0 0.0
    %1124 = vmatpush.xpose.msra.mxu0 0.0
    %1125 = vmatpush.xpose.msra.mxu0 0.0
    %1126 = vmatpush.xpose.msra.mxu0 0.0
    %1127 = vmatpush.xpose.msra.mxu0 0.0
    %1128 = vmatpush.xpose.msra.mxu0 0.0
    %1129 = vmatpush.xpose.msra.mxu0 0.0
    %1130 = vmatpush.xpose.msra.mxu0 0.0
    %1131 = vmatpush.xpose.msra.mxu0 0.0
    %1132 = vmatpush.xpose.msra.mxu0 0.0
    %1133 = vmatpush.xpose.msra.mxu0 %v1116
    %1134 = vmatmul.f32.gmra.mxu0 %v1114
    %v1135 = vpop.f32.mrf.mxu0
    %v1136 = vadd.f32 0.0, %v1135
    %1137 = vdwg.mxu0
    %v1138 = vmul.f32 %v1136, 0.35355338
    %v1139 = vadd.f32 %v1138, %v207
    %v1140 = vsel %vm181, %v1139, -inf
    %1141 = vmax.xlane.f32.xlu0 %v1140
    %v1142 = vpop.xlane.xlu0 %1141
    %v1143 = vsub.f32 %v1139, %v1142
    %v1144 = vmul.f32 %v1143, 1.442695
    %v1145 = vpow.pop %v1144
    %v1146 = vsel %vm181, %v1145, 0.0
    %1147 = vadd.xlane.f32.xlu0 %v1146
    %v1148 = vpop.xlane.xlu0 %1147
    %v1149 = vrcp.pop %v1148
    %v1150 = vmul.f32 %v1145, %v1149
    %1151 = vrot.lane.b32.xlu0 %v1106, 64
    %v1152 = vpop.permute.xlu0 %1151
    %v1155 = vsel %vm181, %v1150, 0
    %1157 = vmatpush.msra.mxu0 0.0
    %1158 = vmatpush.msra.mxu0 0.0
    %1159 = vmatpush.msra.mxu0 0.0
    %1160 = vmatpush.msra.mxu0 0.0
    %1161 = vmatpush.msra.mxu0 0.0
    %1162 = vmatpush.msra.mxu0 0.0
    %1163 = vmatpush.msra.mxu0 0.0
    %1164 = vmatpush.msra.mxu0 0.0
    %1165 = vmatpush.msra.mxu0 0.0
    %1166 = vmatpush.msra.mxu0 0.0
    %1167 = vmatpush.msra.mxu0 0.0
    %1168 = vmatpush.msra.mxu0 0.0
    %1169 = vmatpush.msra.mxu0 0.0
    %1170 = vmatpush.msra.mxu0 0.0
    %1171 = vmatpush.msra.mxu0 0.0
    %1172 = vmatpush.msra.mxu0 %v1152
    %1173 = vmatmul.f32.gmra.mxu0 %v1155
    %v1174 = vpop.f32.mrf.mxu0
    %v1175 = vadd.f32 0.0, %v1174
    %1176 = vdwg.mxu0
    %1177 = vst.msk [vmem:[#allocation2] sm:$0xff] %vm181, %v1175
    %1178 = vrot.lane.b32.xlu0 %v1106, 120
    %v1179 = vpop.permute.xlu0 %1178
    %1180 = vrot.lane.b32.xlu0 %v1106, 88
    %v1181 = vpop.permute.xlu0 %1180
    %v1182 = vsel %vm181, %v1179, 0
    %v1184 = vsel %vm181, %v1181, 0
    %1186 = vmatpush.xpose.msra.mxu0 0.0
    %1187 = vmatpush.xpose.msra.mxu0 0.0
    %1188 = vmatpush.xpose.msra.mxu0 0.0
    %1189 = vmatpush.xpose.msra.mxu0 0.0
    %1190 = vmatpush.xpose.msra.mxu0 0.0
    %1191 = vmatpush.xpose.msra.mxu0 0.0
    %1192 = vmatpush.xpose.msra.mxu0 0.0
    %1193 = vmatpush.xpose.msra.mxu0 0.0
    %1194 = vmatpush.xpose.msra.mxu0 0.0
    %1195 = vmatpush.xpose.msra.mxu0 0.0
    %1196 = vmatpush.xpose.msra.mxu0 0.0
    %1197 = vmatpush.xpose.msra.mxu0 0.0
    %1198 = vmatpush.xpose.msra.mxu0 0.0
    %1199 = vmatpush.xpose.msra.mxu0 0.0
    %1200 = vmatpush.xpose.msra.mxu0 0.0
    %1201 = vmatpush.xpose.msra.mxu0 %v1184
    %1202 = vmatmul.f32.gmra.mxu0 %v1182
    %v1203 = vpop.f32.mrf.mxu0
    %v1204 = vadd.f32 0.0, %v1203
    %1205 = vdwg.mxu0
    %v1206 = vmul.f32 %v1204, 0.35355338
    %v1207 = vadd.f32 %v1206, %v207
    %v1208 = vsel %vm181, %v1207, -inf
    %1209 = vmax.xlane.f32.xlu0 %v1208
    %v1210 = vpop.xlane.xlu0 %1209
    %v1211 = vsub.f32 %v1207, %v1210
    %v1212 = vmul.f32 %v1211, 1.442695
    %v1213 = vpow.pop %v1212
    %v1214 = vsel %vm181, %v1213, 0.0
    %1215 = vadd.xlane.f32.xlu0 %v1214
    %v1216 = vpop.xlane.xlu0 %1215
    %v1217 = vrcp.pop %v1216
    %v1218 = vmul.f32 %v1213, %v1217
    %1219 = vrot.lane.b32.xlu0 %v1106, 56
    %v1220 = vpop.permute.xlu0 %1219
    %v1223 = vsel %vm181, %v1218, 0
    %1225 = vmatpush.msra.mxu0 0.0
    %1226 = vmatpush.msra.mxu0 0.0
    %1227 = vmatpush.msra.mxu0 0.0
    %1228 = vmatpush.msra.mxu0 0.0
    %1229 = vmatpush.msra.mxu0 0.0
    %1230 = vmatpush.msra.mxu0 0.0
    %1231 = vmatpush.msra.mxu0 0.0
    %1232 = vmatpush.msra.mxu0 0.0
    %1233 = vmatpush.msra.mxu0 0.0
    %1234 = vmatpush.msra.mxu0 0.0
    %1235 = vmatpush.msra.mxu0 0.0
    %1236 = vmatpush.msra.mxu0 0.0
    %1237 = vmatpush.msra.mxu0 0.0
    %1238 = vmatpush.msra.mxu0 0.0
    %1239 = vmatpush.msra.mxu0 0.0
    %1240 = vmatpush.msra.mxu0 %v1220
    %1241 = vmatmul.f32.gmra.mxu0 %v1223
    %v1242 = vpop.f32.mrf.mxu0
    %v1243 = vadd.f32 0.0, %v1242
    %1244 = vdwg.mxu0
    %1246 = vrot.lane.b32.xlu0 %v1243, 8
    %v1247 = vpop.permute.xlu0 %1246
    %1249 = vst.msk [vmem:[#allocation2] sm:$0xff] %vm318, %v1247
    %1250 = vrot.lane.b32.xlu0 %v1106, 112
    %v1251 = vpop.permute.xlu0 %1250
    %1252 = vrot.lane.b32.xlu0 %v1106, 80
    %v1253 = vpop.permute.xlu0 %1252
    %v1254 = vsel %vm181, %v1251, 0
    %v1256 = vsel %vm181, %v1253, 0
    %1258 = vmatpush.xpose.msra.mxu0 0.0
    %1259 = vmatpush.xpose.msra.mxu0 0.0
    %1260 = vmatpush.xpose.msra.mxu0 0.0
    %1261 = vmatpush.xpose.msra.mxu0 0.0
    %1262 = vmatpush.xpose.msra.mxu0 0.0
    %1263 = vmatpush.xpose.msra.mxu0 0.0
    %1264 = vmatpush.xpose.msra.mxu0 0.0
    %1265 = vmatpush.xpose.msra.mxu0 0.0
    %1266 = vmatpush.xpose.msra.mxu0 0.0
    %1267 = vmatpush.xpose.msra.mxu0 0.0
    %1268 = vmatpush.xpose.msra.mxu0 0.0
    %1269 = vmatpush.xpose.msra.mxu0 0.0
    %1270 = vmatpush.xpose.msra.mxu0 0.0
    %1271 = vmatpush.xpose.msra.mxu0 0.0
    %1272 = vmatpush.xpose.msra.mxu0 0.0
    %1273 = vmatpush.xpose.msra.mxu0 %v1256
    %1274 = vmatmul.f32.gmra.mxu0 %v1254
    %v1275 = vpop.f32.mrf.mxu0
    %v1276 = vadd.f32 0.0, %v1275
    %1277 = vdwg.mxu0
    %v1278 = vmul.f32 %v1276, 0.35355338
    %v1279 = vadd.f32 %v1278, %v207
    %v1280 = vsel %vm181, %v1279, -inf
    %1281 = vmax.xlane.f32.xlu0 %v1280
    %v1282 = vpop.xlane.xlu0 %1281
    %v1283 = vsub.f32 %v1279, %v1282
    %v1284 = vmul.f32 %v1283, 1.442695
    %v1285 = vpow.pop %v1284
    %v1286 = vsel %vm181, %v1285, 0.0
    %1287 = vadd.xlane.f32.xlu0 %v1286
    %v1288 = vpop.xlane.xlu0 %1287
    %v1289 = vrcp.pop %v1288
    %v1290 = vmul.f32 %v1285, %v1289
    %1291 = vrot.lane.b32.xlu0 %v1106, 48
    %v1292 = vpop.permute.xlu0 %1291
    %v1295 = vsel %vm181, %v1290, 0
    %1297 = vmatpush.msra.mxu0 0.0
    %1298 = vmatpush.msra.mxu0 0.0
    %1299 = vmatpush.msra.mxu0 0.0
    %1300 = vmatpush.msra.mxu0 0.0
    %1301 = vmatpush.msra.mxu0 0.0
    %1302 = vmatpush.msra.mxu0 0.0
    %1303 = vmatpush.msra.mxu0 0.0
    %1304 = vmatpush.msra.mxu0 0.0
    %1305 = vmatpush.msra.mxu0 0.0
    %1306 = vmatpush.msra.mxu0 0.0
    %1307 = vmatpush.msra.mxu0 0.0
    %1308 = vmatpush.msra.mxu0 0.0
    %1309 = vmatpush.msra.mxu0 0.0
    %1310 = vmatpush.msra.mxu0 0.0
    %1311 = vmatpush.msra.mxu0 0.0
    %1312 = vmatpush.msra.mxu0 %v1292
    %1313 = vmatmul.f32.gmra.mxu0 %v1295
    %v1314 = vpop.f32.mrf.mxu0
    %v1315 = vadd.f32 0.0, %v1314
    %1316 = vdwg.mxu0
    %1318 = vrot.lane.b32.xlu0 %v1315, 16
    %v1319 = vpop.permute.xlu0 %1318
    %1321 = vst.msk [vmem:[#allocation2] sm:$0xff] %vm391, %v1319
    %1322 = vrot.lane.b32.xlu0 %v1106, 104
    %v1323 = vpop.permute.xlu0 %1322
    %1324 = vrot.lane.b32.xlu0 %v1106, 72
    %v1325 = vpop.permute.xlu0 %1324
    %v1326 = vsel %vm181, %v1323, 0
    %v1328 = vsel %vm181, %v1325, 0
    %1330 = vmatpush.xpose.msra.mxu0 0.0
    %1331 = vmatpush.xpose.msra.mxu0 0.0
    %1332 = vmatpush.xpose.msra.mxu0 0.0
    %1333 = vmatpush.xpose.msra.mxu0 0.0
    %1334 = vmatpush.xpose.msra.mxu0 0.0
    %1335 = vmatpush.xpose.msra.mxu0 0.0
    %1336 = vmatpush.xpose.msra.mxu0 0.0
    %1337 = vmatpush.xpose.msra.mxu0 0.0
    %1338 = vmatpush.xpose.msra.mxu0 0.0
    %1339 = vmatpush.xpose.msra.mxu0 0.0
    %1340 = vmatpush.xpose.msra.mxu0 0.0
    %1341 = vmatpush.xpose.msra.mxu0 0.0
    %1342 = vmatpush.xpose.msra.mxu0 0.0
    %1343 = vmatpush.xpose.msra.mxu0 0.0
    %1344 = vmatpush.xpose.msra.mxu0 0.0
    %1345 = vmatpush.xpose.msra.mxu0 %v1328
    %1346 = vmatmul.f32.gmra.mxu0 %v1326
    %v1347 = vpop.f32.mrf.mxu0
    %v1348 = vadd.f32 0.0, %v1347
    %1349 = vdwg.mxu0
    %v1350 = vmul.f32 %v1348, 0.35355338
    %v1351 = vadd.f32 %v1350, %v207
    %v1352 = vsel %vm181, %v1351, -inf
    %1353 = vmax.xlane.f32.xlu0 %v1352
    %v1354 = vpop.xlane.xlu0 %1353
    %v1355 = vsub.f32 %v1351, %v1354
    %v1356 = vmul.f32 %v1355, 1.442695
    %v1357 = vpow.pop %v1356
    %v1358 = vsel %vm181, %v1357, 0.0
    %1359 = vadd.xlane.f32.xlu0 %v1358
    %v1360 = vpop.xlane.xlu0 %1359
    %v1361 = vrcp.pop %v1360
    %v1362 = vmul.f32 %v1357, %v1361
    %1363 = vrot.lane.b32.xlu0 %v1106, 40
    %v1364 = vpop.permute.xlu0 %1363
    %v1367 = vsel %vm181, %v1362, 0
    %1369 = vmatpush.msra.mxu0 0.0
    %1370 = vmatpush.msra.mxu0 0.0
    %1371 = vmatpush.msra.mxu0 0.0
    %1372 = vmatpush.msra.mxu0 0.0
    %1373 = vmatpush.msra.mxu0 0.0
    %1374 = vmatpush.msra.mxu0 0.0
    %1375 = vmatpush.msra.mxu0 0.0
    %1376 = vmatpush.msra.mxu0 0.0
    %1377 = vmatpush.msra.mxu0 0.0
    %1378 = vmatpush.msra.mxu0 0.0
    %1379 = vmatpush.msra.mxu0 0.0
    %1380 = vmatpush.msra.mxu0 0.0
    %1381 = vmatpush.msra.mxu0 0.0
    %1382 = vmatpush.msra.mxu0 0.0
    %1383 = vmatpush.msra.mxu0 0.0
    %1384 = vmatpush.msra.mxu0 %v1364
    %1385 = vmatmul.f32.gmra.mxu0 %v1367
    %v1386 = vpop.f32.mrf.mxu0
    %v1387 = vadd.f32 0.0, %v1386
    %1388 = vdwg.mxu0
    %1390 = vrot.lane.b32.xlu0 %v1387, 24
    %v1391 = vpop.permute.xlu0 %1390
    %1393 = vst.msk [vmem:[#allocation2] sm:$0xff] %vm464, %v1391
    %1395 = vrot.lane.b32.xlu0 %v1109, 96
    %v1396 = vpop.permute.xlu0 %1395
    %v1397 = vsel %vm181, %v1109, 0
    %v1399 = vsel %vm181, %v1396, 0
    %1401 = vmatpush.xpose.msra.mxu0 0.0
    %1402 = vmatpush.xpose.msra.mxu0 0.0
    %1403 = vmatpush.xpose.msra.mxu0 0.0
    %1404 = vmatpush.xpose.msra.mxu0 0.0
    %1405 = vmatpush.xpose.msra.mxu0 0.0
    %1406 = vmatpush.xpose.msra.mxu0 0.0
    %1407 = vmatpush.xpose.msra.mxu0 0.0
    %1408 = vmatpush.xpose.msra.mxu0 0.0
    %1409 = vmatpush.xpose.msra.mxu0 0.0
    %1410 = vmatpush.xpose.msra.mxu0 0.0
    %1411 = vmatpush.xpose.msra.mxu0 0.0
    %1412 = vmatpush.xpose.msra.mxu0 0.0
    %1413 = vmatpush.xpose.msra.mxu0 0.0
    %1414 = vmatpush.xpose.msra.mxu0 0.0
    %1415 = vmatpush.xpose.msra.mxu0 0.0
    %1416 = vmatpush.xpose.msra.mxu0 %v1399
    %1417 = vmatmul.f32.gmra.mxu0 %v1397
    %v1418 = vpop.f32.mrf.mxu0
    %v1419 = vadd.f32 0.0, %v1418
    %1420 = vdwg.mxu0
    %v1421 = vmul.f32 %v1419, 0.35355338
    %v1422 = vadd.f32 %v1421, %v494
    %v1423 = vsel %vm181, %v1422, -inf
    %1424 = vmax.xlane.f32.xlu0 %v1423
    %v1425 = vpop.xlane.xlu0 %1424
    %v1426 = vsub.f32 %v1422, %v1425
    %v1427 = vmul.f32 %v1426, 1.442695
    %v1428 = vpow.pop %v1427
    %v1429 = vsel %vm181, %v1428, 0.0
    %1430 = vadd.xlane.f32.xlu0 %v1429
    %v1431 = vpop.xlane.xlu0 %1430
    %v1432 = vrcp.pop %v1431
    %v1433 = vmul.f32 %v1428, %v1432
    %1434 = vrot.lane.b32.xlu0 %v1109, 64
    %v1435 = vpop.permute.xlu0 %1434
    %v1438 = vsel %vm181, %v1433, 0
    %1440 = vmatpush.msra.mxu0 0.0
    %1441 = vmatpush.msra.mxu0 0.0
    %1442 = vmatpush.msra.mxu0 0.0
    %1443 = vmatpush.msra.mxu0 0.0
    %1444 = vmatpush.msra.mxu0 0.0
    %1445 = vmatpush.msra.mxu0 0.0
    %1446 = vmatpush.msra.mxu0 0.0
    %1447 = vmatpush.msra.mxu0 0.0
    %1448 = vmatpush.msra.mxu0 0.0
    %1449 = vmatpush.msra.mxu0 0.0
    %1450 = vmatpush.msra.mxu0 0.0
    %1451 = vmatpush.msra.mxu0 0.0
    %1452 = vmatpush.msra.mxu0 0.0
    %1453 = vmatpush.msra.mxu0 0.0
    %1454 = vmatpush.msra.mxu0 0.0
    %1455 = vmatpush.msra.mxu0 %v1435
    %1456 = vmatmul.f32.gmra.mxu0 %v1438
    %v1457 = vpop.f32.mrf.mxu0
    %v1458 = vadd.f32 0.0, %v1457
    %1459 = vdwg.mxu0
    %1460 = vst.msk [vmem:[#allocation2 + $0x8] sm:$0xff] %vm181, %v1458
    %1461 = vrot.lane.b32.xlu0 %v1109, 120
    %v1462 = vpop.permute.xlu0 %1461
    %1463 = vrot.lane.b32.xlu0 %v1109, 88
    %v1464 = vpop.permute.xlu0 %1463
    %v1465 = vsel %vm181, %v1462, 0
    %v1467 = vsel %vm181, %v1464, 0
    %1469 = vmatpush.xpose.msra.mxu0 0.0
    %1470 = vmatpush.xpose.msra.mxu0 0.0
    %1471 = vmatpush.xpose.msra.mxu0 0.0
    %1472 = vmatpush.xpose.msra.mxu0 0.0
    %1473 = vmatpush.xpose.msra.mxu0 0.0
    %1474 = vmatpush.xpose.msra.mxu0 0.0
    %1475 = vmatpush.xpose.msra.mxu0 0.0
    %1476 = vmatpush.xpose.msra.mxu0 0.0
    %1477 = vmatpush.xpose.msra.mxu0 0.0
    %1478 = vmatpush.xpose.msra.mxu0 0.0
    %1479 = vmatpush.xpose.msra.mxu0 0.0
    %1480 = vmatpush.xpose.msra.mxu0 0.0
    %1481 = vmatpush.xpose.msra.mxu0 0.0
    %1482 = vmatpush.xpose.msra.mxu0 0.0
    %1483 = vmatpush.xpose.msra.mxu0 0.0
    %1484 = vmatpush.xpose.msra.mxu0 %v1467
    %1485 = vmatmul.f32.gmra.mxu0 %v1465
    %v1486 = vpop.f32.mrf.mxu0
    %v1487 = vadd.f32 0.0, %v1486
    %1488 = vdwg.mxu0
    %v1489 = vmul.f32 %v1487, 0.35355338
    %v1490 = vadd.f32 %v1489, %v494
    %v1491 = vsel %vm181, %v1490, -inf
    %1492 = vmax.xlane.f32.xlu0 %v1491
    %v1493 = vpop.xlane.xlu0 %1492
    %v1494 = vsub.f32 %v1490, %v1493
    %v1495 = vmul.f32 %v1494, 1.442695
    %v1496 = vpow.pop %v1495
    %v1497 = vsel %vm181, %v1496, 0.0
    %1498 = vadd.xlane.f32.xlu0 %v1497
    %v1499 = vpop.xlane.xlu0 %1498
    %v1500 = vrcp.pop %v1499
    %v1501 = vmul.f32 %v1496, %v1500
    %1502 = vrot.lane.b32.xlu0 %v1109, 56
    %v1503 = vpop.permute.xlu0 %1502
    %v1506 = vsel %vm181, %v1501, 0
    %1508 = vmatpush.msra.mxu0 0.0
    %1509 = vmatpush.msra.mxu0 0.0
    %1510 = vmatpush.msra.mxu0 0.0
    %1511 = vmatpush.msra.mxu0 0.0
    %1512 = vmatpush.msra.mxu0 0.0
    %1513 = vmatpush.msra.mxu0 0.0
    %1514 = vmatpush.msra.mxu0 0.0
    %1515 = vmatpush.msra.mxu0 0.0
    %1516 = vmatpush.msra.mxu0 0.0
    %1517 = vmatpush.msra.mxu0 0.0
    %1518 = vmatpush.msra.mxu0 0.0
    %1519 = vmatpush.msra.mxu0 0.0
    %1520 = vmatpush.msra.mxu0 0.0
    %1521 = vmatpush.msra.mxu0 0.0
    %1522 = vmatpush.msra.mxu0 0.0
    %1523 = vmatpush.msra.mxu0 %v1503
    %1524 = vmatmul.f32.gmra.mxu0 %v1506
    %v1525 = vpop.f32.mrf.mxu0
    %v1526 = vadd.f32 0.0, %v1525
    %1527 = vdwg.mxu0
    %1529 = vrot.lane.b32.xlu0 %v1526, 8
    %v1530 = vpop.permute.xlu0 %1529
    %1532 = vst.msk [vmem:[#allocation2 + $0x8] sm:$0xff] %vm318, %v1530
    %1533 = vrot.lane.b32.xlu0 %v1109, 112
    %v1534 = vpop.permute.xlu0 %1533
    %1535 = vrot.lane.b32.xlu0 %v1109, 80
    %v1536 = vpop.permute.xlu0 %1535
    %v1537 = vsel %vm181, %v1534, 0
    %v1539 = vsel %vm181, %v1536, 0
    %1541 = vmatpush.xpose.msra.mxu0 0.0
    %1542 = vmatpush.xpose.msra.mxu0 0.0
    %1543 = vmatpush.xpose.msra.mxu0 0.0
    %1544 = vmatpush.xpose.msra.mxu0 0.0
    %1545 = vmatpush.xpose.msra.mxu0 0.0
    %1546 = vmatpush.xpose.msra.mxu0 0.0
    %1547 = vmatpush.xpose.msra.mxu0 0.0
    %1548 = vmatpush.xpose.msra.mxu0 0.0
    %1549 = vmatpush.xpose.msra.mxu0 0.0
    %1550 = vmatpush.xpose.msra.mxu0 0.0
    %1551 = vmatpush.xpose.msra.mxu0 0.0
    %1552 = vmatpush.xpose.msra.mxu0 0.0
    %1553 = vmatpush.xpose.msra.mxu0 0.0
    %1554 = vmatpush.xpose.msra.mxu0 0.0
    %1555 = vmatpush.xpose.msra.mxu0 0.0
    %1556 = vmatpush.xpose.msra.mxu0 %v1539
    %1557 = vmatmul.f32.gmra.mxu0 %v1537
    %v1558 = vpop.f32.mrf.mxu0
    %v1559 = vadd.f32 0.0, %v1558
    %1560 = vdwg.mxu0
    %v1561 = vmul.f32 %v1559, 0.35355338
    %v1562 = vadd.f32 %v1561, %v494
    %v1563 = vsel %vm181, %v1562, -inf
    %1564 = vmax.xlane.f32.xlu0 %v1563
    %v1565 = vpop.xlane.xlu0 %1564
    %v1566 = vsub.f32 %v1562, %v1565
    %v1567 = vmul.f32 %v1566, 1.442695
    %v1568 = vpow.pop %v1567
    %v1569 = vsel %vm181, %v1568, 0.0
    %1570 = vadd.xlane.f32.xlu0 %v1569
    %v1571 = vpop.xlane.xlu0 %1570
    %v1572 = vrcp.pop %v1571
    %v1573 = vmul.f32 %v1568, %v1572
    %1574 = vrot.lane.b32.xlu0 %v1109, 48
    %v1575 = vpop.permute.xlu0 %1574
    %v1578 = vsel %vm181, %v1573, 0
    %1580 = vmatpush.msra.mxu0 0.0
    %1581 = vmatpush.msra.mxu0 0.0
    %1582 = vmatpush.msra.mxu0 0.0
    %1583 = vmatpush.msra.mxu0 0.0
    %1584 = vmatpush.msra.mxu0 0.0
    %1585 = vmatpush.msra.mxu0 0.0
    %1586 = vmatpush.msra.mxu0 0.0
    %1587 = vmatpush.msra.mxu0 0.0
    %1588 = vmatpush.msra.mxu0 0.0
    %1589 = vmatpush.msra.mxu0 0.0
    %1590 = vmatpush.msra.mxu0 0.0
    %1591 = vmatpush.msra.mxu0 0.0
    %1592 = vmatpush.msra.mxu0 0.0
    %1593 = vmatpush.msra.mxu0 0.0
    %1594 = vmatpush.msra.mxu0 0.0
    %1595 = vmatpush.msra.mxu0 %v1575
    %1596 = vmatmul.f32.gmra.mxu0 %v1578
    %v1597 = vpop.f32.mrf.mxu0
    %v1598 = vadd.f32 0.0, %v1597
    %1599 = vdwg.mxu0
    %1601 = vrot.lane.b32.xlu0 %v1598, 16
    %v1602 = vpop.permute.xlu0 %1601
    %1604 = vst.msk [vmem:[#allocation2 + $0x8] sm:$0xff] %vm391, %v1602
    %1605 = vrot.lane.b32.xlu0 %v1109, 104
    %v1606 = vpop.permute.xlu0 %1605
    %1607 = vrot.lane.b32.xlu0 %v1109, 72
    %v1608 = vpop.permute.xlu0 %1607
    %v1609 = vsel %vm181, %v1606, 0
    %v1611 = vsel %vm181, %v1608, 0
    %1613 = vmatpush.xpose.msra.mxu0 0.0
    %1614 = vmatpush.xpose.msra.mxu0 0.0
    %1615 = vmatpush.xpose.msra.mxu0 0.0
    %1616 = vmatpush.xpose.msra.mxu0 0.0
    %1617 = vmatpush.xpose.msra.mxu0 0.0
    %1618 = vmatpush.xpose.msra.mxu0 0.0
    %1619 = vmatpush.xpose.msra.mxu0 0.0
    %1620 = vmatpush.xpose.msra.mxu0 0.0
    %1621 = vmatpush.xpose.msra.mxu0 0.0
    %1622 = vmatpush.xpose.msra.mxu0 0.0
    %1623 = vmatpush.xpose.msra.mxu0 0.0
    %1624 = vmatpush.xpose.msra.mxu0 0.0
    %1625 = vmatpush.xpose.msra.mxu0 0.0
    %1626 = vmatpush.xpose.msra.mxu0 0.0
    %1627 = vmatpush.xpose.msra.mxu0 0.0
    %1628 = vmatpush.xpose.msra.mxu0 %v1611
    %1629 = vmatmul.f32.gmra.mxu0 %v1609
    %v1630 = vpop.f32.mrf.mxu0
    %v1631 = vadd.f32 0.0, %v1630
    %1632 = vdwg.mxu0
    %v1633 = vmul.f32 %v1631, 0.35355338
    %v1634 = vadd.f32 %v1633, %v494
    %v1635 = vsel %vm181, %v1634, -inf
    %1636 = vmax.xlane.f32.xlu0 %v1635
    %v1637 = vpop.xlane.xlu0 %1636
    %v1638 = vsub.f32 %v1634, %v1637
    %v1639 = vmul.f32 %v1638, 1.442695
    %v1640 = vpow.pop %v1639
    %v1641 = vsel %vm181, %v1640, 0.0
    %1642 = vadd.xlane.f32.xlu0 %v1641
    %v1643 = vpop.xlane.xlu0 %1642
    %v1644 = vrcp.pop %v1643
    %v1645 = vmul.f32 %v1640, %v1644
    %1646 = vrot.lane.b32.xlu0 %v1109, 40
    %v1647 = vpop.permute.xlu0 %1646
    %v1650 = vsel %vm181, %v1645, 0
    %1652 = vmatpush.msra.mxu0 0.0
    %1653 = vmatpush.msra.mxu0 0.0
    %1654 = vmatpush.msra.mxu0 0.0
    %1655 = vmatpush.msra.mxu0 0.0
    %1656 = vmatpush.msra.mxu0 0.0
    %1657 = vmatpush.msra.mxu0 0.0
    %1658 = vmatpush.msra.mxu0 0.0
    %1659 = vmatpush.msra.mxu0 0.0
    %1660 = vmatpush.msra.mxu0 0.0
    %1661 = vmatpush.msra.mxu0 0.0
    %1662 = vmatpush.msra.mxu0 0.0
    %1663 = vmatpush.msra.mxu0 0.0
    %1664 = vmatpush.msra.mxu0 0.0
    %1665 = vmatpush.msra.mxu0 0.0
    %1666 = vmatpush.msra.mxu0 0.0
    %1667 = vmatpush.msra.mxu0 %v1647
    %1668 = vmatmul.f32.gmra.mxu0 %v1650
    %v1669 = vpop.f32.mrf.mxu0
    %v1670 = vadd.f32 0.0, %v1669
    %1671 = vdwg.mxu0
    %1673 = vrot.lane.b32.xlu0 %v1670, 24
    %v1674 = vpop.permute.xlu0 %1673
    %1676 = vst.msk [vmem:[#allocation2 + $0x8] sm:$0xff] %vm464, %v1674
    %v1677 = vld [vmem:[#allocation2] sm:$0xff]
    %v1678 = vld [vmem:[#allocation2 + $0x8] sm:$0xff]
    %s1679 = scalar_lea.vmem %s7, 32
    %v1680 = vld [vmem:[%s1679] sm:$0xff]
    %v1681 = vld [vmem:[%s1679 + $0x8] sm:$0xff]
    %v1682 = vld [vmem:[%s1679 + $0x10] sm:$0xff]
    %v1683 = vld [vmem:[%s1679 + $0x18] sm:$0xff]
    %s1684 = scalar_lea.vmem %s8, 1
    %v1685 = vld [vmem:[%s1684] sm:$0x1]
    %v1687 = vperm.slane %v1685, 0
    %v1690 = vsel %vm76, %v1677, 0
    %v1693 = vsel %vm76, %v1678, 0
    %1695 = vmatpush.msra.mxu0 0.0
    %1696 = vmatpush.msra.mxu0 0.0
    %1697 = vmatpush.msra.mxu0 0.0
    %1698 = vmatpush.msra.mxu0 0.0
    %1699 = vmatpush.msra.mxu0 0.0
    %1700 = vmatpush.msra.mxu0 0.0
    %1701 = vmatpush.msra.mxu0 0.0
    %1702 = vmatpush.msra.mxu0 0.0
    %1703 = vmatpush.msra.mxu0 0.0
    %1704 = vmatpush.msra.mxu0 0.0
    %1705 = vmatpush.msra.mxu0 0.0
    %1706 = vmatpush.msra.mxu0 0.0
    %1707 = vmatpush.msra.mxu0 %v1683
    %1708 = vmatpush.msra.mxu0 %v1682
    %1709 = vmatpush.msra.mxu0 %v1681
    %1710 = vmatpush.msra.mxu0 %v1680
    %1711 = vmatmul.f32.gmra.mxu0 %v1690
    %v1712 = vpop.f32.mrf.mxu0
    %v1713 = vadd.f32 %v1687, %v1712
    %1714 = vmatmul.f32.gmra.mxu0 %v1693
    %v1715 = vpop.f32.mrf.mxu0
    %v1716 = vadd.f32 %v1687, %v1715
    %1717 = vdwg.mxu0
    %v1718 = vadd.f32 %v1713, %v1070
    %v1719 = vadd.f32 %v1716, %v1071
    %s1720 = scalar_lea.vmem %s9, 1
    %v1721 = vld [vmem:[%s1720] sm:$0x1]
    %s1722 = scalar_lea.vmem %s10, 1
    %v1723 = vld [vmem:[%s1722] sm:$0x1]
    %v1724 = vsel %vm76, %v1718, 0.0
    %1725 = vadd.xlane.f32.xlu0 %v1724
    %v1726 = vpop.xlane.xlu0 %1725
    %v1727 = vsel %vm76, %v1719, 0.0
    %1728 = vadd.xlane.f32.xlu0 %v1727
    %v1729 = vpop.xlane.xlu0 %1728
    %v1730 = vmul.f32 %v1726, %v89
    %v1731 = vmul.f32 %v1729, %v89
    %v1732 = vsub.f32 %v1718, %v1730
    %v1733 = vsub.f32 %v1719, %v1731
    %v1734 = vmul.f32 %v1732, %v1732
    %v1735 = vmul.f32 %v1733, %v1733
    %v1736 = vsel %vm76, %v1734, 0.0
    %1737 = vadd.xlane.f32.xlu0 %v1736
    %v1738 = vpop.xlane.xlu0 %1737
    %v1739 = vsel %vm76, %v1735, 0.0
    %1740 = vadd.xlane.f32.xlu0 %v1739
    %v1741 = vpop.xlane.xlu0 %1740
    %v1742 = vmul.f32 %v1738, %v89
    %v1743 = vmul.f32 %v1741, %v89
    %v1744 = vadd.f32 %v1742, 1e-05
    %v1745 = vadd.f32 %v1743, 1e-05
    %v1746 = vrsqrt.pop %v1744
    %v1747 = vmul.f32 %v1746, %v1744
    %v1748 = vmul.f32 %v1747, %v1746
    %v1749 = vmul.f32 0.5, %v1748
    %v1750 = vsub.f32 1.5, %v1749
    %v1751 = vmul.f32 %v1746, %v1750
    %vm1752 = vweird.f32 %v1744
    %vm1753 = vweird.f32 %v1746
    %vm1754 = vmor %vm1752, %vm1753
    %v1755 = vsel %vm1754, %v1746, %v1751
    %v1756 = vrsqrt.pop %v1745
    %v1757 = vmul.f32 %v1756, %v1745
    %v1758 = vmul.f32 %v1757, %v1756
    %v1759 = vmul.f32 0.5, %v1758
    %v1760 = vsub.f32 1.5, %v1759
    %v1761 = vmul.f32 %v1756, %v1760
    %vm1762 = vweird.f32 %v1745
    %vm1763 = vweird.f32 %v1756
    %vm1764 = vmor %vm1762, %vm1763
    %v1765 = vsel %vm1764, %v1756, %v1761
    %v1766 = vmul.f32 %v1732, %v1755
    %v1767 = vmul.f32 %v1733, %v1765
    %v1769 = vperm.slane %v1721, 0
    %v1771 = vmul.f32 %v1766, %v1769
    %v1772 = vmul.f32 %v1767, %v1769
    %v1774 = vperm.slane %v1723, 0
    %v1776 = vadd.f32 %v1771, %v1774
    %v1777 = vadd.f32 %v1772, %v1774
    %s1778 = scalar_lea.vmem %s11, 32
    %v1779 = vld [vmem:[%s1778] sm:$0xff]
    %v1780 = vld [vmem:[%s1778 + $0x8] sm:$0xff]
    %v1781 = vld [vmem:[%s1778 + $0x10] sm:$0xff]
    %v1782 = vld [vmem:[%s1778 + $0x18] sm:$0xff]
    %s1783 = scalar_lea.vmem %s12, 1
    %v1784 = vld [vmem:[%s1783] sm:$0x1]
    %v1786 = vperm.slane %v1784, 0
    %v1789 = vsel %vm76, %v1776, 0
    %v1792 = vsel %vm76, %v1777, 0
    %1794 = vmatpush.msra.mxu0 0.0
    %1795 = vmatpush.msra.mxu0 0.0
    %1796 = vmatpush.msra.mxu0 0.0
    %1797 = vmatpush.msra.mxu0 0.0
    %1798 = vmatpush.msra.mxu0 0.0
    %1799 = vmatpush.msra.mxu0 0.0
    %1800 = vmatpush.msra.mxu0 0.0
    %1801 = vmatpush.msra.mxu0 0.0
    %1802 = vmatpush.msra.mxu0 0.0
    %1803 = vmatpush.msra.mxu0 0.0
    %1804 = vmatpush.msra.mxu0 0.0
    %1805 = vmatpush.msra.mxu0 0.0
    %1806 = vmatpush.msra.mxu0 %v1782
    %1807 = vmatpush.msra.mxu0 %v1781
    %1808 = vmatpush.msra.mxu0 %v1780
    %1809 = vmatpush.msra.mxu0 %v1779
    %1810 = vmatmul.f32.gmra.mxu0 %v1789
    %v1811 = vpop.f32.mrf.mxu0
    %v1812 = vadd.f32 %v1786, %v1811
    %1813 = vmatmul.f32.gmra.mxu0 %v1792
    %v1814 = vpop.f32.mrf.mxu0
    %v1815 = vadd.f32 %v1786, %v1814
    %1816 = vdwg.mxu0
    %v1817 = vmul.f32 %v1812, 0.5
    %v1818 = vmul.f32 %v1815, 0.5
    %v1819 = vmul.f32 %v1812, 0.70710677
    %v1820 = vmul.f32 %v1815, 0.70710677
    %v1821 = vmul.f32 %v1819, %v1819
    %v1822 = vmin.f32 16.0, %v1821
    %v1823 = vmul.f32 %v1822, 2.1237322e-06
    %v1824 = vadd.f32 %v1823, 0.00028619796
    %v1825 = vmul.f32 %v1822, %v1824
    %v1826 = vadd.f32 %v1825, 0.0036580483
    %v1827 = vmul.f32 %v1822, %v1826
    %v1828 = vadd.f32 %v1827, 0.05243302
    %v1829 = vmul.f32 %v1822, %v1828
    %v1830 = vadd.f32 %v1829, 0.18741608
    %v1831 = vmul.f32 %v1822, %v1830
    %v1832 = vadd.f32 %v1831, 1.1283791
    %v1833 = vmul.f32 %v1819, %v1832
    %v1834 = vmul.f32 %v1822, 3.8918573e-05
    %v1835 = vadd.f32 %v1834, 0.001143296
    %v1836 = vmul.f32 %v1822, %v1835
    %v1837 = vadd.f32 %v1836, 0.014752088
    %v1838 = vmul.f32 %v1822, %v1837
    %v1839 = vadd.f32 %v1838, 0.112945676
    %v1840 = vmul.f32 %v1822, %v1839
    %v1841 = vadd.f32 %v1840, 0.4994258
    %v1842 = vmul.f32 %v1822, %v1841
    %v1843 = vadd.f32 %v1842, 1.0
    %v1844 = vrcp.pop %v1843
    %v1845 = vmul.f32 %v1843, %v1844
    %v1846 = vsub.f32 1.0, %v1845
    %v1847 = vmul.f32 %v1844, %v1846
    %v1848 = vadd.f32 %v1844, %v1847
    %vm1849 = vweird.f32 %v1843
    %vm1850 = vweird.f32 %v1844
    %vm1851 = vmor %vm1849, %vm1850
    %v1852 = vsel %vm1851, %v1844, %v1848
    %v1853 = vand.u32 2147483647, %v1843
    %vm1854 = vcmp.eq.f32.partialorder %v1853, 8.507059e+37
    %v1855 = vand.u32 %v1843, 2147483648
    %v1856 = vor.u32 1.1754944e-38, %v1855
    %v1857 = vsel %vm1854, %v1856, %v1852
    %v1858 = vmul.f32 %v1833, %v1857
    %v1859 = vmin.f32 %v1858, 1.0
    %v1860 = vmax.f32 %v1859, -1.0
    %v1861 = vmul.f32 %v1820, %v1820
    %v1862 = vmin.f32 16.0, %v1861
    %v1863 = vmul.f32 %v1862, 2.1237322e-06
    %v1864 = vadd.f32 %v1863, 0.00028619796
    %v1865 = vmul.f32 %v1862, %v1864
    %v1866 = vadd.f32 %v1865, 0.0036580483
    %v1867 = vmul.f32 %v1862, %v1866
    %v1868 = vadd.f32 %v1867, 0.05243302
    %v1869 = vmul.f32 %v1862, %v1868
    %v1870 = vadd.f32 %v1869, 0.18741608
    %v1871 = vmul.f32 %v1862, %v1870
    %v1872 = vadd.f32 %v1871, 1.1283791
    %v1873 = vmul.f32 %v1820, %v1872
    %v1874 = vmul.f32 %v1862, 3.8918573e-05
    %v1875 = vadd.f32 %v1874, 0.001143296
    %v1876 = vmul.f32 %v1862, %v1875
    %v1877 = vadd.f32 %v1876, 0.014752088
    %v1878 = vmul.f32 %v1862, %v1877
    %v1879 = vadd.f32 %v1878, 0.112945676
    %v1880 = vmul.f32 %v1862, %v1879
    %v1881 = vadd.f32 %v1880, 0.4994258
    %v1882 = vmul.f32 %v1862, %v1881
    %v1883 = vadd.f32 %v1882, 1.0
    %v1884 = vrcp.pop %v1883
    %v1885 = vmul.f32 %v1883, %v1884
    %v1886 = vsub.f32 1.0, %v1885
    %v1887 = vmul.f32 %v1884, %v1886
    %v1888 = vadd.f32 %v1884, %v1887
    %vm1889 = vweird.f32 %v1883
    %vm1890 = vweird.f32 %v1884
    %vm1891 = vmor %vm1889, %vm1890
    %v1892 = vsel %vm1891, %v1884, %v1888
    %v1893 = vand.u32 2147483647, %v1883
    %vm1894 = vcmp.eq.f32.partialorder %v1893, 8.507059e+37
    %v1895 = vand.u32 %v1883, 2147483648
    %v1896 = vor.u32 1.1754944e-38, %v1895
    %v1897 = vsel %vm1894, %v1896, %v1892
    %v1898 = vmul.f32 %v1873, %v1897
    %v1899 = vmin.f32 %v1898, 1.0
    %v1900 = vmax.f32 %v1899, -1.0
    %v1901 = vadd.f32 %v1860, 1.0
    %v1902 = vadd.f32 %v1900, 1.0
    %v1903 = vmul.f32 %v1817, %v1901
    %v1904 = vmul.f32 %v1818, %v1902
    %s1905 = scalar_lea.vmem %s13, 64
    %v1906 = vld [vmem:[%s1905] sm:$0xff]
    %v1907 = vld [vmem:[%s1905 + $0x8] sm:$0xff]
    %v1908 = vld [vmem:[%s1905 + $0x10] sm:$0xff]
    %v1909 = vld [vmem:[%s1905 + $0x18] sm:$0xff]
    %v1910 = vld [vmem:[%s1905 + $0x20] sm:$0xff]
    %v1911 = vld [vmem:[%s1905 + $0x28] sm:$0xff]
    %v1912 = vld [vmem:[%s1905 + $0x30] sm:$0xff]
    %v1913 = vld [vmem:[%s1905 + $0x38] sm:$0xff]
    %s1914 = scalar_lea.vmem %s14, 1
    %v1915 = vld [vmem:[%s1914] sm:$0x1]
    %v1917 = vperm.slane %v1915, 0
    %v1920 = vsel %vm984, %v1903, 0
    %v1923 = vsel %vm984, %v1904, 0
    %1925 = vmatpush.msra.mxu0 0.0
    %1926 = vmatpush.msra.mxu0 0.0
    %1927 = vmatpush.msra.mxu0 0.0
    %1928 = vmatpush.msra.mxu0 0.0
    %1929 = vmatpush.msra.mxu0 0.0
    %1930 = vmatpush.msra.mxu0 0.0
    %1931 = vmatpush.msra.mxu0 0.0
    %1932 = vmatpush.msra.mxu0 0.0
    %1933 = vmatpush.msra.mxu0 %v1913
    %1934 = vmatpush.msra.mxu0 %v1912
    %1935 = vmatpush.msra.mxu0 %v1911
    %1936 = vmatpush.msra.mxu0 %v1910
    %1937 = vmatpush.msra.mxu0 %v1909
    %1938 = vmatpush.msra.mxu0 %v1908
    %1939 = vmatpush.msra.mxu0 %v1907
    %1940 = vmatpush.msra.mxu0 %v1906
    %1941 = vmatmul.f32.gmra.mxu0 %v1920
    %v1942 = vpop.f32.mrf.mxu0
    %v1943 = vadd.f32 %v1917, %v1942
    %1944 = vmatmul.f32.gmra.mxu0 %v1923
    %v1945 = vpop.f32.mrf.mxu0
    %v1946 = vadd.f32 %v1917, %v1945
    %1947 = vdwg.mxu0
    %v1948 = vadd.f32 %v1943, %v1776
    %v1949 = vadd.f32 %v1946, %v1777
    %s1950 = scalar_lea.vmem %s15, 1
    %v1951 = vld [vmem:[%s1950] sm:$0x1]
    %s1952 = scalar_lea.vmem %s16, 1
    %v1953 = vld [vmem:[%s1952] sm:$0x1]
    %v1954 = vsel %vm76, %v1948, 0.0
    %1955 = vadd.xlane.f32.xlu0 %v1954
    %v1956 = vpop.xlane.xlu0 %1955
    %v1957 = vsel %vm76, %v1949, 0.0
    %1958 = vadd.xlane.f32.xlu0 %v1957
    %v1959 = vpop.xlane.xlu0 %1958
    %v1960 = vmul.f32 %v1956, %v89
    %v1961 = vmul.f32 %v1959, %v89
    %v1962 = vsub.f32 %v1948, %v1960
    %v1963 = vsub.f32 %v1949, %v1961
    %v1964 = vmul.f32 %v1962, %v1962
    %v1965 = vmul.f32 %v1963, %v1963
    %v1966 = vsel %vm76, %v1964, 0.0
    %1967 = vadd.xlane.f32.xlu0 %v1966
    %v1968 = vpop.xlane.xlu0 %1967
    %v1969 = vsel %vm76, %v1965, 0.0
    %1970 = vadd.xlane.f32.xlu0 %v1969
    %v1971 = vpop.xlane.xlu0 %1970
    %v1972 = vmul.f32 %v1968, %v89
    %v1973 = vmul.f32 %v1971, %v89
    %v1974 = vadd.f32 %v1972, 1e-05
    %v1975 = vadd.f32 %v1973, 1e-05
    %v1976 = vrsqrt.pop %v1974
    %v1977 = vmul.f32 %v1976, %v1974
    %v1978 = vmul.f32 %v1977, %v1976
    %v1979 = vmul.f32 0.5, %v1978
    %v1980 = vsub.f32 1.5, %v1979
    %v1981 = vmul.f32 %v1976, %v1980
    %vm1982 = vweird.f32 %v1974
    %vm1983 = vweird.f32 %v1976
    %vm1984 = vmor %vm1982, %vm1983
    %v1985 = vsel %vm1984, %v1976, %v1981
    %v1986 = vrsqrt.pop %v1975
    %v1987 = vmul.f32 %v1986, %v1975
    %v1988 = vmul.f32 %v1987, %v1986
    %v1989 = vmul.f32 0.5, %v1988
    %v1990 = vsub.f32 1.5, %v1989
    %v1991 = vmul.f32 %v1986, %v1990
    %vm1992 = vweird.f32 %v1975
    %vm1993 = vweird.f32 %v1986
    %vm1994 = vmor %vm1992, %vm1993
    %v1995 = vsel %vm1994, %v1986, %v1991
    %v1996 = vmul.f32 %v1962, %v1985
    %v1997 = vmul.f32 %v1963, %v1995
    %v1999 = vperm.slane %v1951, 0
    %v2001 = vmul.f32 %v1996, %v1999
    %v2002 = vmul.f32 %v1997, %v1999
    %v2004 = vperm.slane %v1953, 0
    %v2006 = vadd.f32 %v2001, %v2004
    %v2007 = vadd.f32 %v2002, %v2004
    %vm2008 = vcmask 253952
    %2009 = vst.msk [vmem:[#allocation3] sm:$0x1] %vm2008, %v2006
    %2010 = vst.msk [vmem:[#allocation3 + $0x1] sm:$0x1] %vm2008, %v2007
    %v2011 = vld [vmem:[#allocation3] sm:$0x3]
    %v2012 = vld [vmem:[%s17] sm:$0xff]
    %v2013 = vld [vmem:[%s17 + $0x8] sm:$0xff]
    %v2014 = vld [vmem:[%s17 + $0x10] sm:$0xff]
    %v2015 = vld [vmem:[%s17 + $0x18] sm:$0xff]
    %v2016 = vld [vmem:[%s18] sm:$0x1]
    %v2018 = vperm.slane %v2016, 0
    %v2021 = vsel %vm76, %v2011, 0
    %2023 = vmatpush.msra.mxu0 0.0
    %2024 = vmatpush.msra.mxu0 0.0
    %2025 = vmatpush.msra.mxu0 0.0
    %2026 = vmatpush.msra.mxu0 0.0
    %2027 = vmatpush.msra.mxu0 0.0
    %2028 = vmatpush.msra.mxu0 0.0
    %2029 = vmatpush.msra.mxu0 0.0
    %2030 = vmatpush.msra.mxu0 0.0
    %2031 = vmatpush.msra.mxu0 0.0
    %2032 = vmatpush.msra.mxu0 0.0
    %2033 = vmatpush.msra.mxu0 0.0
    %2034 = vmatpush.msra.mxu0 0.0
    %2035 = vmatpush.msra.mxu0 %v2015
    %2036 = vmatpush.msra.mxu0 %v2014
    %2037 = vmatpush.msra.mxu0 %v2013
    %2038 = vmatpush.msra.mxu0 %v2012
    %2039 = vmatmul.f32.gmra.mxu0 %v2021
    %v2040 = vpop.f32.mrf.mxu0
    %v2041 = vadd.f32 %v2018, %v2040
    %2042 = vdwg.mxu0
    %v2043 = vtanh.pop %v2041
    %v2044 = vld [vmem:[%s19] sm:$0xff]
    %v2045 = vld [vmem:[%s19 + $0x8] sm:$0xff]
    %v2046 = vld [vmem:[%s19 + $0x10] sm:$0xff]
    %v2047 = vld [vmem:[%s19 + $0x18] sm:$0xff]
    %v2048 = vld [vmem:[%s20] sm:$0x1]
    %v2050 = vperm.slane %v2048, 0
    %v2053 = vsel %vm76, %v2043, 0
    %2055 = vmatpush.msra.mxu0 0.0
    %2056 = vmatpush.msra.mxu0 0.0
    %2057 = vmatpush.msra.mxu0 0.0
    %2058 = vmatpush.msra.mxu0 0.0
    %2059 = vmatpush.msra.mxu0 0.0
    %2060 = vmatpush.msra.mxu0 0.0
    %2061 = vmatpush.msra.mxu0 0.0
    %2062 = vmatpush.msra.mxu0 0.0
    %2063 = vmatpush.msra.mxu0 0.0
    %2064 = vmatpush.msra.mxu0 0.0
    %2065 = vmatpush.msra.mxu0 0.0
    %2066 = vmatpush.msra.mxu0 0.0
    %2067 = vmatpush.msra.mxu0 %v2047
    %2068 = vmatpush.msra.mxu0 %v2046
    %2069 = vmatpush.msra.mxu0 %v2045
    %2070 = vmatpush.msra.mxu0 %v2044
    %2071 = vmatmul.f32.gmra.mxu0 %v2053
    %v2072 = vpop.f32.mrf.mxu0
    %v2073 = vadd.f32 %v2050, %v2072
    %2074 = vdwg.mxu0
    %vm2075 = vcmask 9216
    %2076 = vst.msk [vmem:[#allocation4] sm:$0x3] %vm2075, %v2073
    %v2077 = vsel %vm2075, %v2073, -inf
    %2078 = vmax.xlane.f32.xlu0 %v2077
    %v2079 = vpop.xlane.xlu0 %2078
    %v2080 = vsub.f32 %v2073, %v2079
    %v2081 = vmul.f32 %v2080, 1.442695
    %v2082 = vpow.pop %v2081
    %v2083 = vsel %vm2075, %v2082, 0.0
    %2084 = vadd.xlane.f32.xlu0 %v2083
    %v2085 = vpop.xlane.xlu0 %2084
    %v2086 = vlog2.pop %v2085
    %v2087 = vmul.f32 %v2086, 0.6931472
    %v2088 = vadd.f32 %v2087, %v2079
    %v2089 = vld [vmem:[%s2] sm:$0x3]
    %v2090 = vmul.f32 %v2089, %v2073
    %v2091 = vsel %vm2075, %v2090, 0.0
    %2092 = vadd.xlane.f32.xlu0 %v2091
    %v2093 = vpop.xlane.xlu0 %2092
    %v2094 = vsub.f32 %v2088, %v2093
    %vm2095 = vcmask 1041408
    %v2096 = vsel %vm2095, %v2094, 0.0
    %v2097 = vrot.slane %v2096, 4
    %v2098 = vadd.f32 %v2096, %v2097
    %v2099 = vrot.slane %v2098, 2
    %v2100 = vadd.f32 %v2098, %v2099
    %v2101 = vrot.slane %v2100, 1
    %v2102 = vadd.f32 %v2100, %v2101
    %v2103 = vrcp.pop 2.0
    %v2104 = vmul.f32 2.0, %v2103
    %v2105 = vsub.f32 1.0, %v2104
    %v2106 = vmul.f32 %v2103, %v2105
    %v2107 = vadd.f32 %v2103, %v2106
    %vm2108 = vweird.f32 %v2103
    %v2109 = vsel %vm2108, %v2103, %v2107
    %v2110 = vmul.f32 %v2102, %v2109
    %vm2111 = vcmask 0
    %2112 = vst.msk [vmem:[#allocation6] sm:$0x1] %vm2111, %v2110
    // Predicated region
    $region86: #{roberta_forward.1} parent=1 // pred_check
      _
    $region87: #{roberta_forward.1} parent=1 // pred_check_branch
      %2114 = sbr.rel (0) target = $region89
    $region88: #{roberta_forward.1} parent=1 // pred_region
      %2116 = vsyncadd [#allocation5], 0
      %s2118 = sshll.u32 [#allocation4], 4
      %s2119 = int_to_ptr.vmem [resolvable:$true] %s2118
      %s2120 = sshll.u32 %s21, 4
      %s2121 = int_to_ptr.hbm [resolvable:$true] %s2120
      %2123 = dma.vmem_to_hbm [thread:$0]  %s2119, 32, %s2121, [#allocation5]
    $region89: #{roberta_forward.1} parent=1 // pred_fallthru
      _
    // Predicated region
    $region90: #{roberta_forward.1} parent=1 // pred_check
      _
    $region91: #{roberta_forward.1} parent=1 // pred_check_branch
      %2125 = sbr.rel (0) target = $region93
    $region92: #{roberta_forward.1} parent=1 // pred_region
      %2127 = vsyncadd [#allocation7], 0
      %s2129 = sshll.u32 [#allocation6], 4
      %s2130 = int_to_ptr.vmem [resolvable:$true] %s2129
      %s2131 = sshll.u32 %s22, 4
      %s2132 = int_to_ptr.hbm [resolvable:$true] %s2131
      %2134 = dma.vmem_to_hbm [thread:$0]  %s2130, 16, %s2132, [#allocation7]
    $region93: #{roberta_forward.1} parent=1 // pred_fallthru
      _
    // Predicated region
    $region94: #{roberta_forward.1} parent=1 // pred_check
      _
    $region95: #{roberta_forward.1} parent=1 // pred_check_branch
      %2136 = sbr.rel (0) target = $region97
    $region96: #{roberta_forward.1} parent=1 // pred_region
      %2138 = dma.done [#allocation5], 32
    $region97: #{roberta_forward.1} parent=1 // pred_fallthru
      _
    // Predicated region
    $region98: #{roberta_forward.1} parent=1 // pred_check
      _
    $region99: #{roberta_forward.1} parent=1 // pred_check_branch
      %2140 = sbr.rel (0) target = $region101
    $region100: #{roberta_forward.1} parent=1 // pred_region
      %2142 = dma.done [#allocation7], 16
    $region101: #{roberta_forward.1} parent=1 // pred_fallthru
      _
    %2143 = vsyncpa [#allocation5], 1
    %2144 = vsyncpa [#allocation7], 1

</llo_original>
